<compile_context>
chip_gen: v6e
topology: v6e:2x2x1
jax: 0.10.0
libtpu: 0.0.40
codegen_flags: <defaults>
</compile_context>

<pallas_src>
import functools

import jax
import jax.numpy as jnp
from jax import lax
from jax.experimental import pallas as pl
from jax.experimental.pallas import tpu as pltpu

EPS = 1e-5


def _conv3x3_instnorm(x_flat, w_ref, xp_ref, slab_ref, H, W, do_relu):
    """reflect-pad(1) -> 3x3 conv (+bias) as one matmul -> instance norm.

    x_flat:   (C, H*W) f32 value (lane-dense image)
    w_ref:    (C, 9*C + 1) Ref; column (kh*3+kw)*C + cin, last column = bias
    xp_ref:   VMEM scratch (C, H+2, W+2)
    slab_ref: VMEM scratch (9*C + 1, H*W); its last (ones) row is set by caller
    returns   (C, H*W) f32
    """
    C, HW = x_flat.shape
    img = x_flat.reshape(C, H, W)

    # Reflection pad by 1 pixel, entirely in VMEM (interior + mirrored edges).
    xp_ref[:, 1:H + 1, 1:W + 1] = img
    xp_ref[:, 0:1, 1:W + 1] = img[:, 1:2, :]                   # top    <- row 1
    xp_ref[:, H + 1:H + 2, 1:W + 1] = img[:, H - 2:H - 1, :]   # bottom <- row H-2
    xp_ref[:, :, 0:1] = xp_ref[:, :, 2:3]                      # left col (incl. corners)
    xp_ref[:, :, W + 1:W + 2] = xp_ref[:, :, W - 1:W]          # right col

    # im2col slab: row (kh*3+kw)*C + cin = tap (kh,kw) of input channel cin.
    for kh in range(3):
        for kw in range(3):
            t = kh * 3 + kw
            slab_ref[t * C:(t + 1) * C, :] = (
                xp_ref[:, kh:kh + H, kw:kw + W].reshape(C, HW))

    # 3x3 conv + bias as a single MXU matmul, K = 9*C + 1.
    acc = jnp.dot(w_ref[...], slab_ref[...],
                  preferred_element_type=jnp.float32)          # (C, HW)

    # InstanceNorm2d(affine=False): per-channel mean / biased variance over H*W.
    mean = jnp.mean(acc, axis=1, keepdims=True)
    var = jnp.mean((acc - mean) ** 2, axis=1, keepdims=True)
    y = (acc - mean) * lax.rsqrt(var + EPS)
    return jnp.maximum(y, 0.0) if do_relu else y


def _residual_block_kernel(x_ref, w1_ref, w2_ref, o_ref, xp_ref, slab_ref,
                           *, H, W):
    # x_ref / o_ref: (1, C, H*W) lane-dense; w1_ref / w2_ref: (C, 9*C+1)
    _, C, HW = x_ref.shape

    # Ones row of the im2col slab (multiplies the bias column of the weights).
    slab_ref[9 * C:9 * C + 1, :] = jnp.ones((1, HW), jnp.float32)

    x = x_ref[0]                                               # (C, HW)
    h = _conv3x3_instnorm(x, w1_ref, xp_ref, slab_ref, H, W, do_relu=True)
    y = _conv3x3_instnorm(h, w2_ref, xp_ref, slab_ref, H, W, do_relu=False)
    o_ref[...] = (x + y).reshape(1, C, HW)                     # residual add


def _pack_weight(w, b):
    """(Cout, Cin, 3, 3) + (Cout,) -> (Cout, 9*Cin + 1) im2col weight, bias last."""
    C = w.shape[0]
    w2d = jnp.transpose(w, (0, 2, 3, 1)).reshape(C, 9 * C)     # (kh*3+kw)*Cin+cin
    return jnp.concatenate([w2d, b[:, None]], axis=1).astype(jnp.float32)


@jax.jit
def residual_block(x, w1, b1, w2, b2):
    N, C, H, W = x.shape
    HW = H * W
    xf = x.reshape(N, C, HW)          # free (row-major) relayout -> lane-dense
    w1p = _pack_weight(w1, b1)
    w2p = _pack_weight(w2, b2)

    act_spec = pl.BlockSpec((1, C, HW), lambda n: (n, 0, 0))
    w_spec = pl.BlockSpec((C, 9 * C + 1), lambda n: (0, 0))

    out_flat = pl.pallas_call(
        functools.partial(_residual_block_kernel, H=H, W=W),
        out_shape=jax.ShapeDtypeStruct((N, C, HW), jnp.float32),
        grid=(N,),
        in_specs=[act_spec, w_spec, w_spec],
        out_specs=act_spec,
        scratch_shapes=[
            pltpu.VMEM((C, H + 2, W + 2), jnp.float32),        # padded image
            pltpu.VMEM((9 * C + 1, HW), jnp.float32),          # im2col slab
        ],
        compiler_params=pltpu.CompilerParams(
            dimension_semantics=("parallel",)),
    )(xf, w1p, w2p)
    return out_flat.reshape(N, C, H, W)


def _reference(x, w1, b1, w2, b2):
    """Pure-JAX reference mirroring the PyTorch module."""
    def conv_in(inp, w, b):
        p = jnp.pad(inp, ((0, 0), (0, 0), (1, 1), (1, 1)), mode="reflect")
        y = lax.conv_general_dilated(
            p, w, window_strides=(1, 1), padding="VALID",
            dimension_numbers=("NCHW", "OIHW", "NCHW"))
        y = y + b[None, :, None, None]
        m = jnp.mean(y, axis=(2, 3), keepdims=True)
        v = jnp.mean((y - m) ** 2, axis=(2, 3), keepdims=True)
        return (y - m) * lax.rsqrt(v + EPS)

    h = jnp.maximum(conv_in(x, w1, b1), 0.0)
    return x + conv_in(h, w2, b2)


if __name__ == "__main__":
    N, C, H, W = 2, 4, 16, 16
    key = jax.random.PRNGKey(0)
    kx, kw1, kb1, kw2, kb2 = jax.random.split(key, 5)

    x = jax.random.normal(kx, (N, C, H, W), dtype=jnp.float32)
    # Deterministic synthetic parameters (Conv2d(in=C, out=C, k=3) shapes).
    fan_in = C * 3 * 3
    bound = 1.0 / (fan_in ** 0.5)
    w1 = jax.random.uniform(kw1, (C, C, 3, 3), jnp.float32, -bound, bound)
    b1 = jax.random.uniform(kb1, (C,), jnp.float32, -bound, bound)
    w2 = jax.random.uniform(kw2, (C, C, 3, 3), jnp.float32, -bound, bound)
    b2 = jax.random.uniform(kb2, (C,), jnp.float32, -bound, bound)

    out = jax.block_until_ready(residual_block(x, w1, b1, w2, b2))
    ref = jax.block_until_ready(_reference(x, w1, b1, w2, b2))
    assert out.shape == (N, C, H, W)
    assert jnp.allclose(out, ref, atol=1e-4, rtol=1e-4), "mismatch vs reference"
    print("KERNEL_OK")
</pallas_src>

<mosaic_0001>
module attributes {stable_mosaic.version = 11 : i64} {
  func.func @_residual_block_kernel(%arg0: i32, %arg1: memref<1x4x256xf32, #tpu.memory_space<vmem>>, %arg2: memref<4x37xf32, #tpu.memory_space<vmem>>, %arg3: memref<4x37xf32, #tpu.memory_space<vmem>>, %arg4: memref<1x4x256xf32, #tpu.memory_space<vmem>>, %arg5: memref<4x18x18xf32, #tpu.memory_space<vmem>>, %arg6: memref<37x256xf32, #tpu.memory_space<vmem>>) attributes {dimension_semantics = [#tpu.dimension_semantics<parallel>], iteration_bounds = array<i64: 2>, scalar_prefetch = 0 : i64, scratch_operands = 2 : i64, tpu.core_type = #tpu.core_type<tc>, window_params = [{transform_indices = @transform_0, window_bounds = array<i64: 1, 4, 256>}, {pipeline_mode = #tpu.pipeline_mode<synchronous>, transform_indices = @transform_1, window_bounds = array<i64: 4, 37>}, {pipeline_mode = #tpu.pipeline_mode<synchronous>, transform_indices = @transform_2, window_bounds = array<i64: 4, 37>}, {transform_indices = @transform_3, window_bounds = array<i64: 1, 4, 256>}]} {
    %cst = arith.constant 1.000000e+00 : f32
    %0 = vector.broadcast %cst : f32 to vector<1x256xf32>
    %c36 = arith.constant 36 : index
    %c0 = arith.constant 0 : index
    %1 = vector.load %arg6[%c36, %c0] : memref<37x256xf32, #tpu.memory_space<vmem>>, vector<1x256xf32>
    tpu.vector_store %arg6[%c36, %c0], %0 {strides = array<i32>} : memref<37x256xf32, #tpu.memory_space<vmem>>, vector<1x256xf32>,
    %c0_0 = arith.constant 0 : index
    %c0_1 = arith.constant 0 : index
    %c0_2 = arith.constant 0 : index
    %2 = vector.load %arg1[%c0_0, %c0_1, %c0_2] : memref<1x4x256xf32, #tpu.memory_space<vmem>>, vector<1x4x256xf32>
    %3 = vector.shape_cast %2 : vector<1x4x256xf32> to vector<4x256xf32>
    %4 = vector.shape_cast %3 : vector<4x256xf32> to vector<4x16x16xf32>
    %c0_3 = arith.constant 0 : index
    %c1 = arith.constant 1 : index
    %c1_4 = arith.constant 1 : index
    %5 = vector.load %arg5[%c0_3, %c1, %c1_4] : memref<4x18x18xf32, #tpu.memory_space<vmem>>, vector<4x16x16xf32>
    tpu.vector_store %arg5[%c0_3, %c1, %c1_4], %4 {strides = array<i32>} : memref<4x18x18xf32, #tpu.memory_space<vmem>>, vector<4x16x16xf32>,
    %6 = vector.extract_strided_slice %4 {offsets = [0, 1, 0], sizes = [4, 1, 16], strides = [1, 1, 1]} : vector<4x16x16xf32> to vector<4x1x16xf32>
    %c0_5 = arith.constant 0 : index
    %c0_6 = arith.constant 0 : index
    %c1_7 = arith.constant 1 : index
    %7 = vector.load %arg5[%c0_5, %c0_6, %c1_7] : memref<4x18x18xf32, #tpu.memory_space<vmem>>, vector<4x1x16xf32>
    tpu.vector_store %arg5[%c0_5, %c0_6, %c1_7], %6 {strides = array<i32>} : memref<4x18x18xf32, #tpu.memory_space<vmem>>, vector<4x1x16xf32>,
    %8 = vector.extract_strided_slice %4 {offsets = [0, 14, 0], sizes = [4, 1, 16], strides = [1, 1, 1]} : vector<4x16x16xf32> to vector<4x1x16xf32>
    %c0_8 = arith.constant 0 : index
    %c17 = arith.constant 17 : index
    %c1_9 = arith.constant 1 : index
    %9 = vector.load %arg5[%c0_8, %c17, %c1_9] : memref<4x18x18xf32, #tpu.memory_space<vmem>>, vector<4x1x16xf32>
    tpu.vector_store %arg5[%c0_8, %c17, %c1_9], %8 {strides = array<i32>} : memref<4x18x18xf32, #tpu.memory_space<vmem>>, vector<4x1x16xf32>,
    %c0_10 = arith.constant 0 : index
    %c0_11 = arith.constant 0 : index
    %c2 = arith.constant 2 : index
    %10 = vector.load %arg5[%c0_10, %c0_11, %c2] : memref<4x18x18xf32, #tpu.memory_space<vmem>>, vector<4x18x1xf32>
    %c0_12 = arith.constant 0 : index
    %c0_13 = arith.constant 0 : index
    %c0_14 = arith.constant 0 : index
    %11 = vector.load %arg5[%c0_12, %c0_13, %c0_14] : memref<4x18x18xf32, #tpu.memory_space<vmem>>, vector<4x18x1xf32>
    tpu.vector_store %arg5[%c0_12, %c0_13, %c0_14], %10 {strides = array<i32>} : memref<4x18x18xf32, #tpu.memory_space<vmem>>, vector<4x18x1xf32>,
    %c0_15 = arith.constant 0 : index
    %c0_16 = arith.constant 0 : index
    %c15 = arith.constant 15 : index
    %12 = vector.load %arg5[%c0_15, %c0_16, %c15] : memref<4x18x18xf32, #tpu.memory_space<vmem>>, vector<4x18x1xf32>
    %c0_17 = arith.constant 0 : index
    %c0_18 = arith.constant 0 : index
    %c17_19 = arith.constant 17 : index
    %13 = vector.load %arg5[%c0_17, %c0_18, %c17_19] : memref<4x18x18xf32, #tpu.memory_space<vmem>>, vector<4x18x1xf32>
    tpu.vector_store %arg5[%c0_17, %c0_18, %c17_19], %12 {strides = array<i32>} : memref<4x18x18xf32, #tpu.memory_space<vmem>>, vector<4x18x1xf32>,
    %c0_20 = arith.constant 0 : index
    %c0_21 = arith.constant 0 : index
    %c0_22 = arith.constant 0 : index
    %14 = vector.load %arg5[%c0_20, %c0_21, %c0_22] : memref<4x18x18xf32, #tpu.memory_space<vmem>>, vector<4x16x16xf32>
    %15 = vector.shape_cast %14 : vector<4x16x16xf32> to vector<4x256xf32>
    %c0_23 = arith.constant 0 : index
    %c0_24 = arith.constant 0 : index
    %16 = vector.load %arg6[%c0_23, %c0_24] : memref<37x256xf32, #tpu.memory_space<vmem>>, vector<4x256xf32>
    tpu.vector_store %arg6[%c0_23, %c0_24], %15 {strides = array<i32>} : memref<37x256xf32, #tpu.memory_space<vmem>>, vector<4x256xf32>,
    %c0_25 = arith.constant 0 : index
    %c0_26 = arith.constant 0 : index
    %c1_27 = arith.constant 1 : index
    %17 = vector.load %arg5[%c0_25, %c0_26, %c1_27] : memref<4x18x18xf32, #tpu.memory_space<vmem>>, vector<4x16x16xf32>
    %18 = vector.shape_cast %17 : vector<4x16x16xf32> to vector<4x256xf32>
    %c4 = arith.constant 4 : index
    %c0_28 = arith.constant 0 : index
    %19 = vector.load %arg6[%c4, %c0_28] : memref<37x256xf32, #tpu.memory_space<vmem>>, vector<4x256xf32>
    tpu.vector_store %arg6[%c4, %c0_28], %18 {strides = array<i32>} : memref<37x256xf32, #tpu.memory_space<vmem>>, vector<4x256xf32>,
    %c0_29 = arith.constant 0 : index
    %c0_30 = arith.constant 0 : index
    %c2_31 = arith.constant 2 : index
    %20 = vector.load %arg5[%c0_29, %c0_30, %c2_31] : memref<4x18x18xf32, #tpu.memory_space<vmem>>, vector<4x16x16xf32>
    %21 = vector.shape_cast %20 : vector<4x16x16xf32> to vector<4x256xf32>
    %c8 = arith.constant 8 : index
    %c0_32 = arith.constant 0 : index
    %22 = vector.load %arg6[%c8, %c0_32] : memref<37x256xf32, #tpu.memory_space<vmem>>, vector<4x256xf32>
    tpu.vector_store %arg6[%c8, %c0_32], %21 {strides = array<i32>} : memref<37x256xf32, #tpu.memory_space<vmem>>, vector<4x256xf32>,
    %c0_33 = arith.constant 0 : index
    %c1_34 = arith.constant 1 : index
    %c0_35 = arith.constant 0 : index
    %23 = vector.load %arg5[%c0_33, %c1_34, %c0_35] : memref<4x18x18xf32, #tpu.memory_space<vmem>>, vector<4x16x16xf32>
    %24 = vector.shape_cast %23 : vector<4x16x16xf32> to vector<4x256xf32>
    %c12 = arith.constant 12 : index
    %c0_36 = arith.constant 0 : index
    %25 = vector.load %arg6[%c12, %c0_36] : memref<37x256xf32, #tpu.memory_space<vmem>>, vector<4x256xf32>
    tpu.vector_store %arg6[%c12, %c0_36], %24 {strides = array<i32>} : memref<37x256xf32, #tpu.memory_space<vmem>>, vector<4x256xf32>,
    %c0_37 = arith.constant 0 : index
    %c1_38 = arith.constant 1 : index
    %c1_39 = arith.constant 1 : index
    %26 = vector.load %arg5[%c0_37, %c1_38, %c1_39] : memref<4x18x18xf32, #tpu.memory_space<vmem>>, vector<4x16x16xf32>
    %27 = vector.shape_cast %26 : vector<4x16x16xf32> to vector<4x256xf32>
    %c16 = arith.constant 16 : index
    %c0_40 = arith.constant 0 : index
    %28 = vector.load %arg6[%c16, %c0_40] : memref<37x256xf32, #tpu.memory_space<vmem>>, vector<4x256xf32>
    tpu.vector_store %arg6[%c16, %c0_40], %27 {strides = array<i32>} : memref<37x256xf32, #tpu.memory_space<vmem>>, vector<4x256xf32>,
    %c0_41 = arith.constant 0 : index
    %c1_42 = arith.constant 1 : index
    %c2_43 = arith.constant 2 : index
    %29 = vector.load %arg5[%c0_41, %c1_42, %c2_43] : memref<4x18x18xf32, #tpu.memory_space<vmem>>, vector<4x16x16xf32>
    %30 = vector.shape_cast %29 : vector<4x16x16xf32> to vector<4x256xf32>
    %c20 = arith.constant 20 : index
    %c0_44 = arith.constant 0 : index
    %31 = vector.load %arg6[%c20, %c0_44] : memref<37x256xf32, #tpu.memory_space<vmem>>, vector<4x256xf32>
    tpu.vector_store %arg6[%c20, %c0_44], %30 {strides = array<i32>} : memref<37x256xf32, #tpu.memory_space<vmem>>, vector<4x256xf32>,
    %c0_45 = arith.constant 0 : index
    %c2_46 = arith.constant 2 : index
    %c0_47 = arith.constant 0 : index
    %32 = vector.load %arg5[%c0_45, %c2_46, %c0_47] : memref<4x18x18xf32, #tpu.memory_space<vmem>>, vector<4x16x16xf32>
    %33 = vector.shape_cast %32 : vector<4x16x16xf32> to vector<4x256xf32>
    %c24 = arith.constant 24 : index
    %c0_48 = arith.constant 0 : index
    %34 = vector.load %arg6[%c24, %c0_48] : memref<37x256xf32, #tpu.memory_space<vmem>>, vector<4x256xf32>
    tpu.vector_store %arg6[%c24, %c0_48], %33 {strides = array<i32>} : memref<37x256xf32, #tpu.memory_space<vmem>>, vector<4x256xf32>,
    %c0_49 = arith.constant 0 : index
    %c2_50 = arith.constant 2 : index
    %c1_51 = arith.constant 1 : index
    %35 = vector.load %arg5[%c0_49, %c2_50, %c1_51] : memref<4x18x18xf32, #tpu.memory_space<vmem>>, vector<4x16x16xf32>
    %36 = vector.shape_cast %35 : vector<4x16x16xf32> to vector<4x256xf32>
    %c28 = arith.constant 28 : index
    %c0_52 = arith.constant 0 : index
    %37 = vector.load %arg6[%c28, %c0_52] : memref<37x256xf32, #tpu.memory_space<vmem>>, vector<4x256xf32>
    tpu.vector_store %arg6[%c28, %c0_52], %36 {strides = array<i32>} : memref<37x256xf32, #tpu.memory_space<vmem>>, vector<4x256xf32>,
    %c0_53 = arith.constant 0 : index
    %c2_54 = arith.constant 2 : index
    %c2_55 = arith.constant 2 : index
    %38 = vector.load %arg5[%c0_53, %c2_54, %c2_55] : memref<4x18x18xf32, #tpu.memory_space<vmem>>, vector<4x16x16xf32>
    %39 = vector.shape_cast %38 : vector<4x16x16xf32> to vector<4x256xf32>
    %c32 = arith.constant 32 : index
    %c0_56 = arith.constant 0 : index
    %40 = vector.load %arg6[%c32, %c0_56] : memref<37x256xf32, #tpu.memory_space<vmem>>, vector<4x256xf32>
    tpu.vector_store %arg6[%c32, %c0_56], %39 {strides = array<i32>} : memref<37x256xf32, #tpu.memory_space<vmem>>, vector<4x256xf32>,
    %c0_57 = arith.constant 0 : index
    %c0_58 = arith.constant 0 : index
    %41 = vector.load %arg2[%c0_57, %c0_58] : memref<4x37xf32, #tpu.memory_space<vmem>>, vector<4x37xf32>
    %c0_59 = arith.constant 0 : index
    %c0_60 = arith.constant 0 : index
    %42 = vector.load %arg6[%c0_59, %c0_60] : memref<37x256xf32, #tpu.memory_space<vmem>>, vector<37x256xf32>
    %cst_61 = arith.constant dense<0.000000e+00> : vector<4x256xf32>
    %43 = tpu.matmul %41, %42, %cst_61 {dimension_numbers = #tpu.dot_dimension_numbers<[1], [0], [0], [1], [0, 0, 1, 1], [], []>} : vector<4x37xf32>, vector<37x256xf32>, vector<4x256xf32> -> vector<4x256xf32>
    %cst_62 = arith.constant dense<0.000000e+00> : vector<4xf32>
    %44 = vector.multi_reduction <add>, %43, %cst_62 [1] : vector<4x256xf32> to vector<4xf32>
    %45 = vector.shape_cast %44 : vector<4xf32> to vector<4x1xf32>
    %cst_63 = arith.constant 2.560000e+02 : f32
    %46 = vector.broadcast %cst_63 : f32 to vector<4x1xf32>
    %47 = arith.divf %45, %46 : vector<4x1xf32>
    %48 = vector.broadcast %47 : vector<4x1xf32> to vector<4x256xf32>
    %49 = arith.subf %43, %48 : vector<4x256xf32>
    %50 = arith.mulf %49, %49 : vector<4x256xf32>
    %cst_64 = arith.constant dense<0.000000e+00> : vector<4xf32>
    %51 = vector.multi_reduction <add>, %50, %cst_64 [1] : vector<4x256xf32> to vector<4xf32>
    %52 = vector.shape_cast %51 : vector<4xf32> to vector<4x1xf32>
    %cst_65 = arith.constant 2.560000e+02 : f32
    %53 = vector.broadcast %cst_65 : f32 to vector<4x1xf32>
    %54 = arith.divf %52, %53 : vector<4x1xf32>
    %55 = vector.broadcast %47 : vector<4x1xf32> to vector<4x256xf32>
    %56 = arith.subf %43, %55 : vector<4x256xf32>
    %cst_66 = arith.constant 9.99999974E-6 : f32
    %57 = vector.broadcast %cst_66 : f32 to vector<4x1xf32>
    %58 = arith.addf %54, %57 : vector<4x1xf32>
    %59 = math.rsqrt %58 : vector<4x1xf32>
    %60 = vector.broadcast %59 : vector<4x1xf32> to vector<4x256xf32>
    %61 = arith.mulf %56, %60 : vector<4x256xf32>
    %cst_67 = arith.constant 0.000000e+00 : f32
    %62 = vector.broadcast %cst_67 : f32 to vector<4x256xf32>
    %63 = arith.maximumf %61, %62 : vector<4x256xf32>
    %64 = vector.shape_cast %63 : vector<4x256xf32> to vector<4x16x16xf32>
    %c0_68 = arith.constant 0 : index
    %c1_69 = arith.constant 1 : index
    %c1_70 = arith.constant 1 : index
    %65 = vector.load %arg5[%c0_68, %c1_69, %c1_70] : memref<4x18x18xf32, #tpu.memory_space<vmem>>, vector<4x16x16xf32>
    tpu.vector_store %arg5[%c0_68, %c1_69, %c1_70], %64 {strides = array<i32>} : memref<4x18x18xf32, #tpu.memory_space<vmem>>, vector<4x16x16xf32>,
    %66 = vector.extract_strided_slice %64 {offsets = [0, 1, 0], sizes = [4, 1, 16], strides = [1, 1, 1]} : vector<4x16x16xf32> to vector<4x1x16xf32>
    %c0_71 = arith.constant 0 : index
    %c0_72 = arith.constant 0 : index
    %c1_73 = arith.constant 1 : index
    %67 = vector.load %arg5[%c0_71, %c0_72, %c1_73] : memref<4x18x18xf32, #tpu.memory_space<vmem>>, vector<4x1x16xf32>
    tpu.vector_store %arg5[%c0_71, %c0_72, %c1_73], %66 {strides = array<i32>} : memref<4x18x18xf32, #tpu.memory_space<vmem>>, vector<4x1x16xf32>,
    %68 = vector.extract_strided_slice %64 {offsets = [0, 14, 0], sizes = [4, 1, 16], strides = [1, 1, 1]} : vector<4x16x16xf32> to vector<4x1x16xf32>
    %c0_74 = arith.constant 0 : index
    %c17_75 = arith.constant 17 : index
    %c1_76 = arith.constant 1 : index
    %69 = vector.load %arg5[%c0_74, %c17_75, %c1_76] : memref<4x18x18xf32, #tpu.memory_space<vmem>>, vector<4x1x16xf32>
    tpu.vector_store %arg5[%c0_74, %c17_75, %c1_76], %68 {strides = array<i32>} : memref<4x18x18xf32, #tpu.memory_space<vmem>>, vector<4x1x16xf32>,
    %c0_77 = arith.constant 0 : index
    %c0_78 = arith.constant 0 : index
    %c2_79 = arith.constant 2 : index
    %70 = vector.load %arg5[%c0_77, %c0_78, %c2_79] : memref<4x18x18xf32, #tpu.memory_space<vmem>>, vector<4x18x1xf32>
    %c0_80 = arith.constant 0 : index
    %c0_81 = arith.constant 0 : index
    %c0_82 = arith.constant 0 : index
    %71 = vector.load %arg5[%c0_80, %c0_81, %c0_82] : memref<4x18x18xf32, #tpu.memory_space<vmem>>, vector<4x18x1xf32>
    tpu.vector_store %arg5[%c0_80, %c0_81, %c0_82], %70 {strides = array<i32>} : memref<4x18x18xf32, #tpu.memory_space<vmem>>, vector<4x18x1xf32>,
    %c0_83 = arith.constant 0 : index
    %c0_84 = arith.constant 0 : index
    %c15_85 = arith.constant 15 : index
    %72 = vector.load %arg5[%c0_83, %c0_84, %c15_85] : memref<4x18x18xf32, #tpu.memory_space<vmem>>, vector<4x18x1xf32>
    %c0_86 = arith.constant 0 : index
    %c0_87 = arith.constant 0 : index
    %c17_88 = arith.constant 17 : index
    %73 = vector.load %arg5[%c0_86, %c0_87, %c17_88] : memref<4x18x18xf32, #tpu.memory_space<vmem>>, vector<4x18x1xf32>
    tpu.vector_store %arg5[%c0_86, %c0_87, %c17_88], %72 {strides = array<i32>} : memref<4x18x18xf32, #tpu.memory_space<vmem>>, vector<4x18x1xf32>,
    %c0_89 = arith.constant 0 : index
    %c0_90 = arith.constant 0 : index
    %c0_91 = arith.constant 0 : index
    %74 = vector.load %arg5[%c0_89, %c0_90, %c0_91] : memref<4x18x18xf32, #tpu.memory_space<vmem>>, vector<4x16x16xf32>
    %75 = vector.shape_cast %74 : vector<4x16x16xf32> to vector<4x256xf32>
    %c0_92 = arith.constant 0 : index
    %c0_93 = arith.constant 0 : index
    %76 = vector.load %arg6[%c0_92, %c0_93] : memref<37x256xf32, #tpu.memory_space<vmem>>, vector<4x256xf32>
    tpu.vector_store %arg6[%c0_92, %c0_93], %75 {strides = array<i32>} : memref<37x256xf32, #tpu.memory_space<vmem>>, vector<4x256xf32>,
    %c0_94 = arith.constant 0 : index
    %c0_95 = arith.constant 0 : index
    %c1_96 = arith.constant 1 : index
    %77 = vector.load %arg5[%c0_94, %c0_95, %c1_96] : memref<4x18x18xf32, #tpu.memory_space<vmem>>, vector<4x16x16xf32>
    %78 = vector.shape_cast %77 : vector<4x16x16xf32> to vector<4x256xf32>
    %c4_97 = arith.constant 4 : index
    %c0_98 = arith.constant 0 : index
    %79 = vector.load %arg6[%c4_97, %c0_98] : memref<37x256xf32, #tpu.memory_space<vmem>>, vector<4x256xf32>
    tpu.vector_store %arg6[%c4_97, %c0_98], %78 {strides = array<i32>} : memref<37x256xf32, #tpu.memory_space<vmem>>, vector<4x256xf32>,
    %c0_99 = arith.constant 0 : index
    %c0_100 = arith.constant 0 : index
    %c2_101 = arith.constant 2 : index
    %80 = vector.load %arg5[%c0_99, %c0_100, %c2_101] : memref<4x18x18xf32, #tpu.memory_space<vmem>>, vector<4x16x16xf32>
    %81 = vector.shape_cast %80 : vector<4x16x16xf32> to vector<4x256xf32>
    %c8_102 = arith.constant 8 : index
    %c0_103 = arith.constant 0 : index
    %82 = vector.load %arg6[%c8_102, %c0_103] : memref<37x256xf32, #tpu.memory_space<vmem>>, vector<4x256xf32>
    tpu.vector_store %arg6[%c8_102, %c0_103], %81 {strides = array<i32>} : memref<37x256xf32, #tpu.memory_space<vmem>>, vector<4x256xf32>,
    %c0_104 = arith.constant 0 : index
    %c1_105 = arith.constant 1 : index
    %c0_106 = arith.constant 0 : index
    %83 = vector.load %arg5[%c0_104, %c1_105, %c0_106] : memref<4x18x18xf32, #tpu.memory_space<vmem>>, vector<4x16x16xf32>
    %84 = vector.shape_cast %83 : vector<4x16x16xf32> to vector<4x256xf32>
    %c12_107 = arith.constant 12 : index
    %c0_108 = arith.constant 0 : index
    %85 = vector.load %arg6[%c12_107, %c0_108] : memref<37x256xf32, #tpu.memory_space<vmem>>, vector<4x256xf32>
    tpu.vector_store %arg6[%c12_107, %c0_108], %84 {strides = array<i32>} : memref<37x256xf32, #tpu.memory_space<vmem>>, vector<4x256xf32>,
    %c0_109 = arith.constant 0 : index
    %c1_110 = arith.constant 1 : index
    %c1_111 = arith.constant 1 : index
    %86 = vector.load %arg5[%c0_109, %c1_110, %c1_111] : memref<4x18x18xf32, #tpu.memory_space<vmem>>, vector<4x16x16xf32>
    %87 = vector.shape_cast %86 : vector<4x16x16xf32> to vector<4x256xf32>
    %c16_112 = arith.constant 16 : index
    %c0_113 = arith.constant 0 : index
    %88 = vector.load %arg6[%c16_112, %c0_113] : memref<37x256xf32, #tpu.memory_space<vmem>>, vector<4x256xf32>
    tpu.vector_store %arg6[%c16_112, %c0_113], %87 {strides = array<i32>} : memref<37x256xf32, #tpu.memory_space<vmem>>, vector<4x256xf32>,
    %c0_114 = arith.constant 0 : index
    %c1_115 = arith.constant 1 : index
    %c2_116 = arith.constant 2 : index
    %89 = vector.load %arg5[%c0_114, %c1_115, %c2_116] : memref<4x18x18xf32, #tpu.memory_space<vmem>>, vector<4x16x16xf32>
    %90 = vector.shape_cast %89 : vector<4x16x16xf32> to vector<4x256xf32>
    %c20_117 = arith.constant 20 : index
    %c0_118 = arith.constant 0 : index
    %91 = vector.load %arg6[%c20_117, %c0_118] : memref<37x256xf32, #tpu.memory_space<vmem>>, vector<4x256xf32>
    tpu.vector_store %arg6[%c20_117, %c0_118], %90 {strides = array<i32>} : memref<37x256xf32, #tpu.memory_space<vmem>>, vector<4x256xf32>,
    %c0_119 = arith.constant 0 : index
    %c2_120 = arith.constant 2 : index
    %c0_121 = arith.constant 0 : index
    %92 = vector.load %arg5[%c0_119, %c2_120, %c0_121] : memref<4x18x18xf32, #tpu.memory_space<vmem>>, vector<4x16x16xf32>
    %93 = vector.shape_cast %92 : vector<4x16x16xf32> to vector<4x256xf32>
    %c24_122 = arith.constant 24 : index
    %c0_123 = arith.constant 0 : index
    %94 = vector.load %arg6[%c24_122, %c0_123] : memref<37x256xf32, #tpu.memory_space<vmem>>, vector<4x256xf32>
    tpu.vector_store %arg6[%c24_122, %c0_123], %93 {strides = array<i32>} : memref<37x256xf32, #tpu.memory_space<vmem>>, vector<4x256xf32>,
    %c0_124 = arith.constant 0 : index
    %c2_125 = arith.constant 2 : index
    %c1_126 = arith.constant 1 : index
    %95 = vector.load %arg5[%c0_124, %c2_125, %c1_126] : memref<4x18x18xf32, #tpu.memory_space<vmem>>, vector<4x16x16xf32>
    %96 = vector.shape_cast %95 : vector<4x16x16xf32> to vector<4x256xf32>
    %c28_127 = arith.constant 28 : index
    %c0_128 = arith.constant 0 : index
    %97 = vector.load %arg6[%c28_127, %c0_128] : memref<37x256xf32, #tpu.memory_space<vmem>>, vector<4x256xf32>
    tpu.vector_store %arg6[%c28_127, %c0_128], %96 {strides = array<i32>} : memref<37x256xf32, #tpu.memory_space<vmem>>, vector<4x256xf32>,
    %c0_129 = arith.constant 0 : index
    %c2_130 = arith.constant 2 : index
    %c2_131 = arith.constant 2 : index
    %98 = vector.load %arg5[%c0_129, %c2_130, %c2_131] : memref<4x18x18xf32, #tpu.memory_space<vmem>>, vector<4x16x16xf32>
    %99 = vector.shape_cast %98 : vector<4x16x16xf32> to vector<4x256xf32>
    %c32_132 = arith.constant 32 : index
    %c0_133 = arith.constant 0 : index
    %100 = vector.load %arg6[%c32_132, %c0_133] : memref<37x256xf32, #tpu.memory_space<vmem>>, vector<4x256xf32>
    tpu.vector_store %arg6[%c32_132, %c0_133], %99 {strides = array<i32>} : memref<37x256xf32, #tpu.memory_space<vmem>>, vector<4x256xf32>,
    %c0_134 = arith.constant 0 : index
    %c0_135 = arith.constant 0 : index
    %101 = vector.load %arg3[%c0_134, %c0_135] : memref<4x37xf32, #tpu.memory_space<vmem>>, vector<4x37xf32>
    %c0_136 = arith.constant 0 : index
    %c0_137 = arith.constant 0 : index
    %102 = vector.load %arg6[%c0_136, %c0_137] : memref<37x256xf32, #tpu.memory_space<vmem>>, vector<37x256xf32>
    %cst_138 = arith.constant dense<0.000000e+00> : vector<4x256xf32>
    %103 = tpu.matmul %101, %102, %cst_138 {dimension_numbers = #tpu.dot_dimension_numbers<[1], [0], [0], [1], [0, 0, 1, 1], [], []>} : vector<4x37xf32>, vector<37x256xf32>, vector<4x256xf32> -> vector<4x256xf32>
    %cst_139 = arith.constant dense<0.000000e+00> : vector<4xf32>
    %104 = vector.multi_reduction <add>, %103, %cst_139 [1] : vector<4x256xf32> to vector<4xf32>
    %105 = vector.shape_cast %104 : vector<4xf32> to vector<4x1xf32>
    %cst_140 = arith.constant 2.560000e+02 : f32
    %106 = vector.broadcast %cst_140 : f32 to vector<4x1xf32>
    %107 = arith.divf %105, %106 : vector<4x1xf32>
    %108 = vector.broadcast %107 : vector<4x1xf32> to vector<4x256xf32>
    %109 = arith.subf %103, %108 : vector<4x256xf32>
    %110 = arith.mulf %109, %109 : vector<4x256xf32>
    %cst_141 = arith.constant dense<0.000000e+00> : vector<4xf32>
    %111 = vector.multi_reduction <add>, %110, %cst_141 [1] : vector<4x256xf32> to vector<4xf32>
    %112 = vector.shape_cast %111 : vector<4xf32> to vector<4x1xf32>
    %cst_142 = arith.constant 2.560000e+02 : f32
    %113 = vector.broadcast %cst_142 : f32 to vector<4x1xf32>
    %114 = arith.divf %112, %113 : vector<4x1xf32>
    %115 = vector.broadcast %107 : vector<4x1xf32> to vector<4x256xf32>
    %116 = arith.subf %103, %115 : vector<4x256xf32>
    %cst_143 = arith.constant 9.99999974E-6 : f32
    %117 = vector.broadcast %cst_143 : f32 to vector<4x1xf32>
    %118 = arith.addf %114, %117 : vector<4x1xf32>
    %119 = math.rsqrt %118 : vector<4x1xf32>
    %120 = vector.broadcast %119 : vector<4x1xf32> to vector<4x256xf32>
    %121 = arith.mulf %116, %120 : vector<4x256xf32>
    %122 = arith.addf %3, %121 : vector<4x256xf32>
    %123 = vector.shape_cast %122 : vector<4x256xf32> to vector<1x4x256xf32>
    %c0_144 = arith.constant 0 : index
    %c0_145 = arith.constant 0 : index
    %c0_146 = arith.constant 0 : index
    %124 = vector.load %arg4[%c0_144, %c0_145, %c0_146] : memref<1x4x256xf32, #tpu.memory_space<vmem>>, vector<1x4x256xf32>
    tpu.vector_store %arg4[%c0_144, %c0_145, %c0_146], %123 {strides = array<i32>} : memref<1x4x256xf32, #tpu.memory_space<vmem>>, vector<1x4x256xf32>,
    return
  }
  func.func @transform_0(%arg0: i32) -> (i32, i32, i32) {
    %c0_i32 = arith.constant 0 : i32
    %c0_i32_0 = arith.constant 0 : i32
    %c0_i32_1 = arith.constant 0 : i32
    return %arg0, %c0_i32, %c0_i32_0 : i32, i32, i32
  }
  func.func @transform_1(%arg0: i32) -> (i32, i32) {
    %c0_i32 = arith.constant 0 : i32
    %c0_i32_0 = arith.constant 0 : i32
    %c0_i32_1 = arith.constant 0 : i32
    return %c0_i32, %c0_i32_0 : i32, i32
  }
  func.func @transform_2(%arg0: i32) -> (i32, i32) {
    %c0_i32 = arith.constant 0 : i32
    %c0_i32_0 = arith.constant 0 : i32
    %c0_i32_1 = arith.constant 0 : i32
    return %c0_i32, %c0_i32_0 : i32, i32
  }
  func.func @transform_3(%arg0: i32) -> (i32, i32, i32) {
    %c0_i32 = arith.constant 0 : i32
    %c0_i32_0 = arith.constant 0 : i32
    %c0_i32_1 = arith.constant 0 : i32
    return %arg0, %c0_i32, %c0_i32_0 : i32, i32, i32
  }
}

</mosaic_0001>

<llo_original>
// kernel: residual_block.1
$region0: #{residual_block.1}
  #allocation0 [shape = 'u32[]', space=smem, size = 0x4, offset = 0x4, fixed_abs, tag = 'smem constant byte address 0x4 - core index']
  #allocation1 [shape = 'u32[144,128]{1,0:T(1,128)}', space=vmem, size = 0x12000, scoped, tag = 'internal scratch']
  #allocation2 [shape = 'f32[4,18,18]{2,1,0:T(8,128)}', space=vmem, size = 0xc000, scoped, tag = 'scratch operand']
  #allocation3 [shape = 'f32[37,256]{1,0:T(8,128)}', space=vmem, size = 0xa000, scoped, tag = 'scratch operand']
  %s0 = inlined_call_operand.vmem [shape: f32[2,4,256], index: 0, kind: input, shape index: {}]
  %s1 = inlined_call_operand.vmem [shape: f32[4,37], index: 1, kind: input, shape index: {}]
  %s2 = inlined_call_operand.vmem [shape: f32[4,37], index: 2, kind: input, shape index: {}]
  %s3 = inlined_call_operand.vmem [shape: f32[2,4,256], index: 3, kind: output, shape index: {}]
  %s4 = sld [smem:[#allocation0]]
  $region45: #{residual_block.1} parent=0
    _
  %s6 = ssub.s32 1, %s4
  %s7 = scalar_select 0, %s6, %s4
  loop: start=0, step=1, limit=4
  $region2: #{residual_block.1} parent=0 // loop_pre_header
    _
  $region3: #{residual_block.1} parent=0 // loop_header
    %s9 = sphi 0, %s13
    %p10 = scmp.ge.s32.totalorder %s9, 4
    %s19 = sphi 0, %s21
    %s22 = sphi 0, %s19
    %s23 = sphi 0, %s22
    %s39 = sphi 0, %s23
    %s43 = sphi 0, %s43
    %s45 = sphi 0, %s43
    %s46 = sphi 0, %s45
    %s60 = sphi 0, %s46
    %s64 = sphi 0, %s64
    %s66 = sphi 0, %s64
    %s67 = sphi 0, %s66
    %s81 = sphi 0, %s67
    %s87 = sphi 0, %s89
    %s90 = sphi 0, %s87
    %s91 = sphi 0, %s90
    %s107 = sphi 0, %s91
  $region4: #{residual_block.1} parent=0 // loop_header_branch
    %12 = sbr.rel (%p10) target = $region8
  $region5: #{residual_block.1} parent=0 // loop_body
    %s14 = ssub.s32 %s9, 1
    %s15 = ssub.s32 %s9, 2
    %s16 = sadd.s32 %s9, 1
    %s17 = ssub.s32 %s9, %s16
    %p18 = scmp.eq.s32.totalorder %s17, 0
    %s20 = sadd.s32 %s19, 1
    %s21 = scalar_select %p18, %s19, %s20
    %p24 = pneg %p18
    %p25 = scmp.eq.s32.totalorder %s9, 1
    %p26 = por %p24, %p25
    %p27 = scmp.ne.s32.totalorder %s19, %s22
    %p28 = scmp.eq.s32.totalorder %s9, 0
    %p29 = por %p27, %p28
    %p30 = scmp.ne.s32.totalorder %s19, %s22
    %p31 = scmp.eq.s32.totalorder %s14, 1
    %p32 = por %p30, %p31
    %p33 = scmp.ne.s32.totalorder %s22, %s23
    %p34 = scmp.eq.s32.totalorder %s14, 0
    %p35 = por %p33, %p34
    %p36 = scmp.ne.s32.totalorder %s22, %s23
    %p37 = scmp.eq.s32.totalorder %s15, 1
    %p38 = por %p36, %p37
    %p40 = scmp.ne.s32.totalorder %s23, %s39
    %p41 = scmp.eq.s32.totalorder %s15, 0
    %p42 = por %p40, %p41
    %s44 = sadd.s32 %s43, 1
    %p47 = scmp.eq.s32.totalorder %s9, 1
    %p48 = scmp.ne.s32.totalorder %s43, %s45
    %p49 = scmp.eq.s32.totalorder %s9, 0
    %p50 = por %p48, %p49
    %p51 = scmp.ne.s32.totalorder %s43, %s45
    %p52 = scmp.eq.s32.totalorder %s14, 1
    %p53 = por %p51, %p52
    %p54 = scmp.ne.s32.totalorder %s45, %s46
    %p55 = scmp.eq.s32.totalorder %s14, 0
    %p56 = por %p54, %p55
    %p57 = scmp.ne.s32.totalorder %s45, %s46
    %p58 = scmp.eq.s32.totalorder %s15, 1
    %p59 = por %p57, %p58
    %p61 = scmp.ne.s32.totalorder %s46, %s60
    %p62 = scmp.eq.s32.totalorder %s15, 0
    %p63 = por %p61, %p62
    %s65 = sadd.s32 %s64, 1
    %p68 = scmp.eq.s32.totalorder %s9, 1
    %p69 = scmp.ne.s32.totalorder %s64, %s66
    %p70 = scmp.eq.s32.totalorder %s9, 0
    %p71 = por %p69, %p70
    %p72 = scmp.ne.s32.totalorder %s64, %s66
    %p73 = scmp.eq.s32.totalorder %s14, 1
    %p74 = por %p72, %p73
    %p75 = scmp.ne.s32.totalorder %s66, %s67
    %p76 = scmp.eq.s32.totalorder %s14, 0
    %p77 = por %p75, %p76
    %p78 = scmp.ne.s32.totalorder %s66, %s67
    %p79 = scmp.eq.s32.totalorder %s15, 1
    %p80 = por %p78, %p79
    %p82 = scmp.ne.s32.totalorder %s67, %s81
    %p83 = scmp.eq.s32.totalorder %s15, 0
    %p84 = por %p82, %p83
    %s85 = ssub.s32 %s9, %s16
    %p86 = scmp.eq.s32.totalorder %s85, 0
    %s88 = sadd.s32 %s87, 1
    %s89 = scalar_select %p86, %s87, %s88
    %p92 = pneg %p86
    %p93 = scmp.eq.s32.totalorder %s9, 1
    %p94 = por %p92, %p93
    %p95 = scmp.ne.s32.totalorder %s87, %s90
    %p96 = scmp.eq.s32.totalorder %s9, 0
    %p97 = por %p95, %p96
    %p98 = scmp.ne.s32.totalorder %s87, %s90
    %p99 = scmp.eq.s32.totalorder %s14, 1
    %p100 = por %p98, %p99
    %p101 = scmp.ne.s32.totalorder %s90, %s91
    %p102 = scmp.eq.s32.totalorder %s14, 0
    %p103 = por %p101, %p102
    %p104 = scmp.ne.s32.totalorder %s90, %s91
    %p105 = scmp.eq.s32.totalorder %s15, 1
    %p106 = por %p104, %p105
    %p108 = scmp.ne.s32.totalorder %s91, %s107
    %p109 = scmp.eq.s32.totalorder %s15, 0
    %p110 = por %p108, %p109
    %p111 = scmp.le.s32.totalorder 1, %s9
    %p112 = scmp.lt.s32.totalorder %s9, 3
    %p113 = pnand %p111, %p112
    %p114 = pneg %p113
    // Predicated region
    $region9: #{residual_block.1} parent=5 // pred_check
      _
    $region10: #{residual_block.1} parent=5 // pred_check_branch
      %116 = sbr.rel (%p113) target = $region12
    $region11: #{residual_block.1} parent=5 // pred_region
      %s117 = ssub.s32 %s9, 1
      // Predicated region
      $region13: #{residual_block.1} parent=11 // pred_check
        %p118 = pneg %p56
      $region14: #{residual_block.1} parent=11 // pred_check_branch
        %120 = sbr.rel (%p118) target = $region16
      $region15: #{residual_block.1} parent=11 // pred_region
        _
      $region16: #{residual_block.1} parent=11 // pred_fallthru
        _
      // Predicated region
      $region17: #{residual_block.1} parent=11 // pred_check
        %p121 = pneg %p77
      $region18: #{residual_block.1} parent=11 // pred_check_branch
        %123 = sbr.rel (%p121) target = $region20
      $region19: #{residual_block.1} parent=11 // pred_region
        _
      $region20: #{residual_block.1} parent=11 // pred_fallthru
        _
    $region12: #{residual_block.1} parent=5 // pred_fallthru
      _
    %p124 = scmp.lt.s32.totalorder %s9, 2
    // Predicated region
    $region21: #{residual_block.1} parent=5 // pred_check
      %p125 = pneg %p124
    $region22: #{residual_block.1} parent=5 // pred_check_branch
      %127 = sbr.rel (%p125) target = $region24
    $region23: #{residual_block.1} parent=5 // pred_region
      // Predicated region
      $region25: #{residual_block.1} parent=23 // pred_check
        %p128 = pneg %p29
      $region26: #{residual_block.1} parent=23 // pred_check_branch
        %130 = sbr.rel (%p128) target = $region28
      $region27: #{residual_block.1} parent=23 // pred_region
        %p131 = scmp.lt.s32.totalorder %s9, 1
        %s132 = scalar_select %p131, %s9, 1
        %s133 = smul.addr %s132, 2
        %s134 = smul.addr %s133, 4
        %s135 = scalar_lea.vmem %s0, %s134
      $region28: #{residual_block.1} parent=23 // pred_fallthru
        _
    $region24: #{residual_block.1} parent=5 // pred_fallthru
      _
    %p136 = scmp.le.s32.totalorder 1, %s9
    %p137 = scmp.lt.s32.totalorder %s9, 3
    %p138 = pnand %p136, %p137
    %p139 = pneg %p138
    // Predicated region
    $region29: #{residual_block.1} parent=5 // pred_check
      _
    $region30: #{residual_block.1} parent=5 // pred_check_branch
      %141 = sbr.rel (%p138) target = $region32
    $region31: #{residual_block.1} parent=5 // pred_region
      %s142 = ssub.s32 %s9, 1
      %p143 = scmp.lt.s32.totalorder %s14, 1
      %s144 = scalar_select %p143, %s14, 1
      %s145 = smul.addr %s144, 2
      %s146 = smul.addr %s145, 4
      %s147 = scalar_lea.vmem %s0, %s146
      %p148 = pneg %p35
      %p149 = pneg %p32
      %p150 = pneg %p56
      %p151 = pneg %p53
      %p152 = pneg %p77
      %p153 = pneg %p74
      %p154 = pneg %p103
      %p155 = pneg %p100
      %p156 = scmp.lt.s32.totalorder %s14, 1
      %s157 = scalar_select %p156, %s14, 1
      %s158 = smul.addr %s157, 2
      %s159 = smul.addr %s158, 4
      %s160 = scalar_lea.vmem %s3, %s159
      %p161 = scmp.lt.s32.totalorder %s14, 1
      %s162 = scalar_select %p161, %s14, 1
      %s163 = smul.addr %s162, 2
      %s164 = smul.addr %s163, 4
      %s165 = scalar_lea.vmem %s0, %s164
      %p166 = scmp.lt.s32.totalorder %s14, 1
      %s167 = scalar_select %p166, %s14, 1
      %s168 = smul.addr %s167, 2
      %s169 = smul.addr %s168, 4
      %s170 = scalar_lea.vmem %s3, %s169
      %v171 = vlaneseq
      %vm172 = vcmp.ge.s32.totalorder %v171, 0
      %vm173 = vcmp.lt.s32.totalorder %v171, 256
      %vm174 = vmand %vm172, %vm173
      %s175 = scalar_lea.vmem [#allocation3], 68
      %176 = vst.msk [vmem:[%s175] ss:$8 sm:$0x3] %vm174, 1.0
      %177 = vst.msk [vmem:[%s175] ss:$8 sm:$0x0] %vm174, 1.0
      %v178 = vld [vmem:[%s165] sm:$0xff]
      %v180 = vrot.slane %v178, 4
      %182 = vrot.lane.b32.xlu0 %v178, 112
      %v183 = vpop.permute.xlu0 %182
      %v184 = vrot.slane %v183, 4
      %186 = vrot.lane.b32.xlu0 %v178, 96
      %v187 = vpop.permute.xlu0 %186
      %v188 = vrot.slane %v187, 4
      %190 = vrot.lane.b32.xlu0 %v178, 80
      %v191 = vpop.permute.xlu0 %190
      %v192 = vrot.slane %v191, 4
      %194 = vrot.lane.b32.xlu0 %v178, 64
      %v195 = vpop.permute.xlu0 %194
      %v196 = vrot.slane %v195, 4
      %198 = vrot.lane.b32.xlu0 %v178, 48
      %v199 = vpop.permute.xlu0 %198
      %v200 = vrot.slane %v199, 4
      %202 = vrot.lane.b32.xlu0 %v178, 32
      %v203 = vpop.permute.xlu0 %202
      %v204 = vrot.slane %v203, 4
      %206 = vrot.lane.b32.xlu0 %v178, 16
      %v207 = vpop.permute.xlu0 %206
      %v208 = vrot.slane %v207, 4
      %v217 = vcombine.low %v178, %v187
      %v219 = vunpack.c.l.s4 1983009808
      %v220 = vunpack.c.0.s8 %v219
      %v221 = vlaneseq
      %v222 = vshrl.u32 %v221, 7
      %v223 = vsub.s32 %v220, %v222
      %v224 = vrot.slane %v217, %v223
      %v225 = vcombine.low %v183, %v191
      %v227 = vunpack.c.l.s4 1983009808
      %v228 = vunpack.c.0.s8 %v227
      %v229 = vlaneseq
      %v230 = vshrl.u32 %v229, 7
      %v231 = vsub.s32 %v228, %v230
      %v232 = vrot.slane %v225, %v231
      %v233 = vcombine.low %v224, %v232
      %v234 = vcombine.high %v224, %v232
      %v236 = vunpack.c.l.s4 1934713408
      %v237 = vunpack.c.0.s8 %v236
      %v238 = vlaneseq
      %v239 = vshrl.u32 %v238, 7
      %v240 = vsub.s32 %v237, %v239
      %v241 = vrot.slane %v233, %v240
      %v243 = vunpack.c.l.s4 1934713408
      %v244 = vunpack.c.0.s8 %v243
      %v245 = vlaneseq
      %v246 = vshrl.u32 %v245, 7
      %v247 = vsub.s32 %v244, %v246
      %v248 = vrot.slane %v234, %v247
      %v249 = vcombine.high %v241, 0.0
      %v250 = vcombine.high %v248, 0.0
      %v251 = vcombine.low %v195, %v203
      %v253 = vunpack.c.l.s4 1983009808
      %v254 = vunpack.c.0.s8 %v253
      %v255 = vlaneseq
      %v256 = vshrl.u32 %v255, 7
      %v257 = vsub.s32 %v254, %v256
      %v258 = vrot.slane %v251, %v257
      %v259 = vcombine.low %v199, %v207
      %v261 = vunpack.c.l.s4 1983009808
      %v262 = vunpack.c.0.s8 %v261
      %v263 = vlaneseq
      %v264 = vshrl.u32 %v263, 7
      %v265 = vsub.s32 %v262, %v264
      %v266 = vrot.slane %v259, %v265
      %v267 = vcombine.low %v258, %v266
      %v268 = vcombine.high %v258, %v266
      %v270 = vunpack.c.l.s4 1934713408
      %v271 = vunpack.c.0.s8 %v270
      %v272 = vlaneseq
      %v273 = vshrl.u32 %v272, 7
      %v274 = vsub.s32 %v271, %v273
      %v275 = vrot.slane %v267, %v274
      %v277 = vunpack.c.l.s4 1934713408
      %v278 = vunpack.c.0.s8 %v277
      %v279 = vlaneseq
      %v280 = vshrl.u32 %v279, 7
      %v281 = vsub.s32 %v278, %v280
      %v282 = vrot.slane %v268, %v281
      %v283 = vcombine.high %v275, 0.0
      %v284 = vcombine.high %v282, 0.0
      %v285 = vcombine.low %v180, %v188
      %v287 = vunpack.c.l.s4 1983009808
      %v288 = vunpack.c.0.s8 %v287
      %v289 = vlaneseq
      %v290 = vshrl.u32 %v289, 7
      %v291 = vsub.s32 %v288, %v290
      %v292 = vrot.slane %v285, %v291
      %v293 = vcombine.low %v184, %v192
      %v295 = vunpack.c.l.s4 1983009808
      %v296 = vunpack.c.0.s8 %v295
      %v297 = vlaneseq
      %v298 = vshrl.u32 %v297, 7
      %v299 = vsub.s32 %v296, %v298
      %v300 = vrot.slane %v293, %v299
      %v301 = vcombine.low %v292, %v300
      %v302 = vcombine.high %v292, %v300
      %v304 = vunpack.c.l.s4 1934713408
      %v305 = vunpack.c.0.s8 %v304
      %v306 = vlaneseq
      %v307 = vshrl.u32 %v306, 7
      %v308 = vsub.s32 %v305, %v307
      %v309 = vrot.slane %v301, %v308
      %v311 = vunpack.c.l.s4 1934713408
      %v312 = vunpack.c.0.s8 %v311
      %v313 = vlaneseq
      %v314 = vshrl.u32 %v313, 7
      %v315 = vsub.s32 %v312, %v314
      %v316 = vrot.slane %v302, %v315
      %v317 = vcombine.high %v309, 0.0
      %v318 = vcombine.high %v316, 0.0
      %v319 = vcombine.low %v196, %v204
      %v321 = vunpack.c.l.s4 1983009808
      %v322 = vunpack.c.0.s8 %v321
      %v323 = vlaneseq
      %v324 = vshrl.u32 %v323, 7
      %v325 = vsub.s32 %v322, %v324
      %v326 = vrot.slane %v319, %v325
      %v327 = vcombine.low %v200, %v208
      %v329 = vunpack.c.l.s4 1983009808
      %v330 = vunpack.c.0.s8 %v329
      %v331 = vlaneseq
      %v332 = vshrl.u32 %v331, 7
      %v333 = vsub.s32 %v330, %v332
      %v334 = vrot.slane %v327, %v333
      %v335 = vcombine.low %v326, %v334
      %v336 = vcombine.high %v326, %v334
      %v338 = vunpack.c.l.s4 1934713408
      %v339 = vunpack.c.0.s8 %v338
      %v340 = vlaneseq
      %v341 = vshrl.u32 %v340, 7
      %v342 = vsub.s32 %v339, %v341
      %v343 = vrot.slane %v335, %v342
      %v345 = vunpack.c.l.s4 1934713408
      %v346 = vunpack.c.0.s8 %v345
      %v347 = vlaneseq
      %v348 = vshrl.u32 %v347, 7
      %v349 = vsub.s32 %v346, %v348
      %v350 = vrot.slane %v336, %v349
      %v351 = vcombine.high %v343, 0.0
      %v352 = vcombine.high %v350, 0.0
      %v369 = vcombine.low %v241, %v275
      %v370 = vcombine.low %v309, %v343
      %v371 = vcombine.low %v249, %v283
      %v372 = vcombine.low %v317, %v351
      %v373 = vcombine.low %v248, %v282
      %v374 = vcombine.low %v316, %v350
      %v375 = vcombine.low %v250, %v284
      %v376 = vcombine.low %v318, %v352
      %377 = vrot.lane.b32.xlu0 %v369, 1
      %v378 = vpop.permute.xlu0 %377
      %379 = vrot.lane.b32.xlu0 %v370, 1
      %v380 = vpop.permute.xlu0 %379
      %381 = vrot.lane.b32.xlu0 %v371, 1
      %v382 = vpop.permute.xlu0 %381
      %383 = vrot.lane.b32.xlu0 %v372, 1
      %v384 = vpop.permute.xlu0 %383
      %385 = vrot.lane.b32.xlu0 %v373, 1
      %v386 = vpop.permute.xlu0 %385
      %387 = vrot.lane.b32.xlu0 %v374, 1
      %v388 = vpop.permute.xlu0 %387
      %389 = vrot.lane.b32.xlu0 %v375, 1
      %v390 = vpop.permute.xlu0 %389
      %391 = vrot.lane.b32.xlu0 %v376, 1
      %v392 = vpop.permute.xlu0 %391
      %vm401 = vcmask 138248
      %402 = vst.msk [vmem:[#allocation2 + $0x1] sm:$0xff] %vm401, %v378
      %403 = vst.msk [vmem:[#allocation2 + $0x9] sm:$0xff] %vm401, %v380
      %404 = vst.msk [vmem:[#allocation2 + $0x19] sm:$0xff] %vm401, %v382
      %405 = vst.msk [vmem:[#allocation2 + $0x21] sm:$0xff] %vm401, %v384
      %406 = vst.msk [vmem:[#allocation2 + $0x31] sm:$0xff] %vm401, %v386
      %407 = vst.msk [vmem:[#allocation2 + $0x39] sm:$0xff] %vm401, %v388
      %408 = vst.msk [vmem:[#allocation2 + $0x49] sm:$0xff] %vm401, %v390
      %409 = vst.msk [vmem:[#allocation2 + $0x51] sm:$0xff] %vm401, %v392
      %v410 = vlaneseq
      %v411 = vshrl.u32 %v410, 7
      %v412 = vsub.s32 1, %v411
      %v413 = vrot.slane %v241, %v412
      %v414 = vlaneseq
      %v415 = vshrl.u32 %v414, 7
      %v416 = vsub.s32 1, %v415
      %v417 = vrot.slane %v249, %v416
      %v418 = vlaneseq
      %v419 = vshrl.u32 %v418, 7
      %v420 = vsub.s32 1, %v419
      %v421 = vrot.slane %v248, %v420
      %v422 = vlaneseq
      %v423 = vshrl.u32 %v422, 7
      %v424 = vsub.s32 1, %v423
      %v425 = vrot.slane %v250, %v424
      %426 = vrot.lane.b32.xlu0 %v413, 1
      %v427 = vpop.permute.xlu0 %426
      %428 = vrot.lane.b32.xlu0 %v417, 1
      %v429 = vpop.permute.xlu0 %428
      %430 = vrot.lane.b32.xlu0 %v421, 1
      %v431 = vpop.permute.xlu0 %430
      %432 = vrot.lane.b32.xlu0 %v425, 1
      %v433 = vpop.permute.xlu0 %432
      %vm438 = vcmask 132105
      %439 = vst.msk [vmem:[#allocation2 - $0x1] sm:$0x2] %vm438, %v427
      %440 = vst.msk [vmem:[#allocation2 + $0x17] sm:$0x2] %vm438, %v429
      %441 = vst.msk [vmem:[#allocation2 + $0x2f] sm:$0x2] %vm438, %v431
      %442 = vst.msk [vmem:[#allocation2 + $0x47] sm:$0x2] %vm438, %v433
      %v443 = vlaneseq
      %v444 = vshrl.u32 %v443, 7
      %v445 = vsub.s32 2, %v444
      %v446 = vrot.slane %v343, %v445
      %v447 = vlaneseq
      %v448 = vshrl.u32 %v447, 7
      %v449 = vsub.s32 2, %v448
      %v450 = vrot.slane %v351, %v449
      %v451 = vlaneseq
      %v452 = vshrl.u32 %v451, 7
      %v453 = vsub.s32 2, %v452
      %v454 = vrot.slane %v350, %v453
      %v455 = vlaneseq
      %v456 = vshrl.u32 %v455, 7
      %v457 = vsub.s32 2, %v456
      %v458 = vrot.slane %v352, %v457
      %459 = vrot.lane.b32.xlu0 %v446, 1
      %v460 = vpop.permute.xlu0 %459
      %461 = vrot.lane.b32.xlu0 %v450, 1
      %v462 = vpop.permute.xlu0 %461
      %463 = vrot.lane.b32.xlu0 %v454, 1
      %v464 = vpop.permute.xlu0 %463
      %465 = vrot.lane.b32.xlu0 %v458, 1
      %v466 = vpop.permute.xlu0 %465
      %vm471 = vcmask 133130
      %472 = vst.msk [vmem:[#allocation2 + $0xf] sm:$0x4] %vm471, %v460
      %473 = vst.msk [vmem:[#allocation2 + $0x27] sm:$0x4] %vm471, %v462
      %474 = vst.msk [vmem:[#allocation2 + $0x3f] sm:$0x4] %vm471, %v464
      %475 = vst.msk [vmem:[#allocation2 + $0x57] sm:$0x4] %vm471, %v466
      %v476 = vld [vmem:[#allocation2] sm:$0xff]
      %v477 = vld [vmem:[#allocation2 + $0x8] sm:$0xff]
      %v478 = vld [vmem:[#allocation2 + $0x10] sm:$0x3]
      %v479 = vld [vmem:[#allocation2 + $0x18] sm:$0xff]
      %v480 = vld [vmem:[#allocation2 + $0x20] sm:$0xff]
      %v481 = vld [vmem:[#allocation2 + $0x28] sm:$0x3]
      %v482 = vld [vmem:[#allocation2 + $0x30] sm:$0xff]
      %v483 = vld [vmem:[#allocation2 + $0x38] sm:$0xff]
      %v484 = vld [vmem:[#allocation2 + $0x40] sm:$0x3]
      %v485 = vld [vmem:[#allocation2 + $0x48] sm:$0xff]
      %v486 = vld [vmem:[#allocation2 + $0x50] sm:$0xff]
      %v487 = vld [vmem:[#allocation2 + $0x58] sm:$0x3]
      %500 = vrot.lane.b32.xlu0 %v476, 126
      %v501 = vpop.permute.xlu0 %500
      %502 = vrot.lane.b32.xlu0 %v477, 126
      %v503 = vpop.permute.xlu0 %502
      %504 = vrot.lane.b32.xlu0 %v478, 126
      %v505 = vpop.permute.xlu0 %504
      %506 = vrot.lane.b32.xlu0 %v479, 126
      %v507 = vpop.permute.xlu0 %506
      %508 = vrot.lane.b32.xlu0 %v480, 126
      %v509 = vpop.permute.xlu0 %508
      %510 = vrot.lane.b32.xlu0 %v481, 126
      %v511 = vpop.permute.xlu0 %510
      %512 = vrot.lane.b32.xlu0 %v482, 126
      %v513 = vpop.permute.xlu0 %512
      %514 = vrot.lane.b32.xlu0 %v483, 126
      %v515 = vpop.permute.xlu0 %514
      %516 = vrot.lane.b32.xlu0 %v484, 126
      %v517 = vpop.permute.xlu0 %516
      %518 = vrot.lane.b32.xlu0 %v485, 126
      %v519 = vpop.permute.xlu0 %518
      %520 = vrot.lane.b32.xlu0 %v486, 126
      %v521 = vpop.permute.xlu0 %520
      %522 = vrot.lane.b32.xlu0 %v487, 126
      %v523 = vpop.permute.xlu0 %522
      %vm536 = vcmask 7168
      %537 = vst.msk [vmem:[#allocation2] sm:$0xff] %vm536, %v501
      %538 = vst.msk [vmem:[#allocation2 + $0x8] sm:$0xff] %vm536, %v503
      %vm539 = vcmask 1024
      %540 = vst.msk [vmem:[#allocation2 + $0x10] sm:$0x3] %vm539, %v505
      %541 = vst.msk [vmem:[#allocation2 + $0x18] sm:$0xff] %vm536, %v507
      %542 = vst.msk [vmem:[#allocation2 + $0x20] sm:$0xff] %vm536, %v509
      %543 = vst.msk [vmem:[#allocation2 + $0x28] sm:$0x3] %vm539, %v511
      %544 = vst.msk [vmem:[#allocation2 + $0x30] sm:$0xff] %vm536, %v513
      %545 = vst.msk [vmem:[#allocation2 + $0x38] sm:$0xff] %vm536, %v515
      %546 = vst.msk [vmem:[#allocation2 + $0x40] sm:$0x3] %vm539, %v517
      %547 = vst.msk [vmem:[#allocation2 + $0x48] sm:$0xff] %vm536, %v519
      %548 = vst.msk [vmem:[#allocation2 + $0x50] sm:$0xff] %vm536, %v521
      %549 = vst.msk [vmem:[#allocation2 + $0x58] sm:$0x3] %vm539, %v523
      %v550 = vld [vmem:[#allocation2] sm:$0xff]
      %v551 = vld [vmem:[#allocation2 + $0x8] sm:$0xff]
      %v552 = vld [vmem:[#allocation2 + $0x10] sm:$0x3]
      %v553 = vld [vmem:[#allocation2 + $0x18] sm:$0xff]
      %v554 = vld [vmem:[#allocation2 + $0x20] sm:$0xff]
      %v555 = vld [vmem:[#allocation2 + $0x28] sm:$0x3]
      %v556 = vld [vmem:[#allocation2 + $0x30] sm:$0xff]
      %v557 = vld [vmem:[#allocation2 + $0x38] sm:$0xff]
      %v558 = vld [vmem:[#allocation2 + $0x40] sm:$0x3]
      %v559 = vld [vmem:[#allocation2 + $0x48] sm:$0xff]
      %v560 = vld [vmem:[#allocation2 + $0x50] sm:$0xff]
      %v561 = vld [vmem:[#allocation2 + $0x58] sm:$0x3]
      %574 = vrot.lane.b32.xlu0 %v550, 2
      %v575 = vpop.permute.xlu0 %574
      %576 = vrot.lane.b32.xlu0 %v551, 2
      %v577 = vpop.permute.xlu0 %576
      %578 = vrot.lane.b32.xlu0 %v552, 2
      %v579 = vpop.permute.xlu0 %578
      %580 = vrot.lane.b32.xlu0 %v553, 2
      %v581 = vpop.permute.xlu0 %580
      %582 = vrot.lane.b32.xlu0 %v554, 2
      %v583 = vpop.permute.xlu0 %582
      %584 = vrot.lane.b32.xlu0 %v555, 2
      %v585 = vpop.permute.xlu0 %584
      %586 = vrot.lane.b32.xlu0 %v556, 2
      %v587 = vpop.permute.xlu0 %586
      %588 = vrot.lane.b32.xlu0 %v557, 2
      %v589 = vpop.permute.xlu0 %588
      %590 = vrot.lane.b32.xlu0 %v558, 2
      %v591 = vpop.permute.xlu0 %590
      %592 = vrot.lane.b32.xlu0 %v559, 2
      %v593 = vpop.permute.xlu0 %592
      %594 = vrot.lane.b32.xlu0 %v560, 2
      %v595 = vpop.permute.xlu0 %594
      %596 = vrot.lane.b32.xlu0 %v561, 2
      %v597 = vpop.permute.xlu0 %596
      %vm610 = vcmask 146568
      %611 = vst.msk [vmem:[#allocation2] sm:$0xff] %vm610, %v575
      %612 = vst.msk [vmem:[#allocation2 + $0x8] sm:$0xff] %vm610, %v577
      %vm613 = vcmask 140424
      %614 = vst.msk [vmem:[#allocation2 + $0x10] sm:$0x3] %vm613, %v579
      %615 = vst.msk [vmem:[#allocation2 + $0x18] sm:$0xff] %vm610, %v581
      %616 = vst.msk [vmem:[#allocation2 + $0x20] sm:$0xff] %vm610, %v583
      %617 = vst.msk [vmem:[#allocation2 + $0x28] sm:$0x3] %vm613, %v585
      %618 = vst.msk [vmem:[#allocation2 + $0x30] sm:$0xff] %vm610, %v587
      %619 = vst.msk [vmem:[#allocation2 + $0x38] sm:$0xff] %vm610, %v589
      %620 = vst.msk [vmem:[#allocation2 + $0x40] sm:$0x3] %vm613, %v591
      %621 = vst.msk [vmem:[#allocation2 + $0x48] sm:$0xff] %vm610, %v593
      %622 = vst.msk [vmem:[#allocation2 + $0x50] sm:$0xff] %vm610, %v595
      %623 = vst.msk [vmem:[#allocation2 + $0x58] sm:$0x3] %vm613, %v597
      %v624 = vld [vmem:[#allocation2] sm:$0xff]
      %v625 = vld [vmem:[#allocation2 + $0x8] sm:$0xff]
      %v626 = vld [vmem:[#allocation2 + $0x18] sm:$0xff]
      %v627 = vld [vmem:[#allocation2 + $0x20] sm:$0xff]
      %v628 = vld [vmem:[#allocation2 + $0x30] sm:$0xff]
      %v629 = vld [vmem:[#allocation2 + $0x38] sm:$0xff]
      %v630 = vld [vmem:[#allocation2 + $0x48] sm:$0xff]
      %v631 = vld [vmem:[#allocation2 + $0x50] sm:$0xff]
      %v632 = vcombine.low %v624, %v628
      %v633 = vcombine.high %v624, %v628
      %v635 = vunpack.c.l.s4 1983009808
      %v636 = vunpack.c.0.s8 %v635
      %v637 = vlaneseq
      %v638 = vshrl.u32 %v637, 7
      %v639 = vsub.s32 %v636, %v638
      %v640 = vrot.slane %v632, %v639
      %v642 = vunpack.c.l.s4 1983009808
      %v643 = vunpack.c.0.s8 %v642
      %v644 = vlaneseq
      %v645 = vshrl.u32 %v644, 7
      %v646 = vsub.s32 %v643, %v645
      %v647 = vrot.slane %v633, %v646
      %v648 = vcombine.low %v626, %v630
      %v649 = vcombine.high %v626, %v630
      %v651 = vunpack.c.l.s4 1983009808
      %v652 = vunpack.c.0.s8 %v651
      %v653 = vlaneseq
      %v654 = vshrl.u32 %v653, 7
      %v655 = vsub.s32 %v652, %v654
      %v656 = vrot.slane %v648, %v655
      %v658 = vunpack.c.l.s4 1983009808
      %v659 = vunpack.c.0.s8 %v658
      %v660 = vlaneseq
      %v661 = vshrl.u32 %v660, 7
      %v662 = vsub.s32 %v659, %v661
      %v663 = vrot.slane %v649, %v662
      %v664 = vcombine.low %v640, %v656
      %v665 = vcombine.high %v640, %v656
      %v667 = vunpack.c.l.s4 1934713408
      %v668 = vunpack.c.0.s8 %v667
      %v669 = vlaneseq
      %v670 = vshrl.u32 %v669, 7
      %v671 = vsub.s32 %v668, %v670
      %v672 = vrot.slane %v664, %v671
      %v674 = vunpack.c.l.s4 1934713408
      %v675 = vunpack.c.0.s8 %v674
      %v676 = vlaneseq
      %v677 = vshrl.u32 %v676, 7
      %v678 = vsub.s32 %v675, %v677
      %v679 = vrot.slane %v665, %v678
      %v680 = vcombine.low %v647, %v663
      %v681 = vcombine.high %v647, %v663
      %v683 = vunpack.c.l.s4 1934713408
      %v684 = vunpack.c.0.s8 %v683
      %v685 = vlaneseq
      %v686 = vshrl.u32 %v685, 7
      %v687 = vsub.s32 %v684, %v686
      %v688 = vrot.slane %v680, %v687
      %v690 = vunpack.c.l.s4 1934713408
      %v691 = vunpack.c.0.s8 %v690
      %v692 = vlaneseq
      %v693 = vshrl.u32 %v692, 7
      %v694 = vsub.s32 %v691, %v693
      %v695 = vrot.slane %v681, %v694
      %v696 = vcombine.high %v672, 0.0
      %v697 = vcombine.high %v679, 0.0
      %v698 = vcombine.high %v688, 0.0
      %v699 = vcombine.high %v695, 0.0
      %v700 = vcombine.low %v625, %v629
      %v701 = vcombine.high %v625, %v629
      %v703 = vunpack.c.l.s4 1983009808
      %v704 = vunpack.c.0.s8 %v703
      %v705 = vlaneseq
      %v706 = vshrl.u32 %v705, 7
      %v707 = vsub.s32 %v704, %v706
      %v708 = vrot.slane %v700, %v707
      %v710 = vunpack.c.l.s4 1983009808
      %v711 = vunpack.c.0.s8 %v710
      %v712 = vlaneseq
      %v713 = vshrl.u32 %v712, 7
      %v714 = vsub.s32 %v711, %v713
      %v715 = vrot.slane %v701, %v714
      %v716 = vcombine.low %v627, %v631
      %v717 = vcombine.high %v627, %v631
      %v719 = vunpack.c.l.s4 1983009808
      %v720 = vunpack.c.0.s8 %v719
      %v721 = vlaneseq
      %v722 = vshrl.u32 %v721, 7
      %v723 = vsub.s32 %v720, %v722
      %v724 = vrot.slane %v716, %v723
      %v726 = vunpack.c.l.s4 1983009808
      %v727 = vunpack.c.0.s8 %v726
      %v728 = vlaneseq
      %v729 = vshrl.u32 %v728, 7
      %v730 = vsub.s32 %v727, %v729
      %v731 = vrot.slane %v717, %v730
      %v732 = vcombine.low %v708, %v724
      %v733 = vcombine.high %v708, %v724
      %v735 = vunpack.c.l.s4 1934713408
      %v736 = vunpack.c.0.s8 %v735
      %v737 = vlaneseq
      %v738 = vshrl.u32 %v737, 7
      %v739 = vsub.s32 %v736, %v738
      %v740 = vrot.slane %v732, %v739
      %v742 = vunpack.c.l.s4 1934713408
      %v743 = vunpack.c.0.s8 %v742
      %v744 = vlaneseq
      %v745 = vshrl.u32 %v744, 7
      %v746 = vsub.s32 %v743, %v745
      %v747 = vrot.slane %v733, %v746
      %v748 = vcombine.low %v715, %v731
      %v749 = vcombine.high %v715, %v731
      %v751 = vunpack.c.l.s4 1934713408
      %v752 = vunpack.c.0.s8 %v751
      %v753 = vlaneseq
      %v754 = vshrl.u32 %v753, 7
      %v755 = vsub.s32 %v752, %v754
      %v756 = vrot.slane %v748, %v755
      %v758 = vunpack.c.l.s4 1934713408
      %v759 = vunpack.c.0.s8 %v758
      %v760 = vlaneseq
      %v761 = vshrl.u32 %v760, 7
      %v762 = vsub.s32 %v759, %v761
      %v763 = vrot.slane %v749, %v762
      %v764 = vcombine.high %v740, 0.0
      %v765 = vcombine.high %v747, 0.0
      %v766 = vcombine.high %v756, 0.0
      %v767 = vcombine.high %v763, 0.0
      %769 = vrot.lane.b32.xlu0 %v696, 16
      %v770 = vpop.permute.xlu0 %769
      %773 = vrot.lane.b32.xlu0 %v679, 32
      %v774 = vpop.permute.xlu0 %773
      %777 = vrot.lane.b32.xlu0 %v697, 48
      %v778 = vpop.permute.xlu0 %777
      %781 = vrot.lane.b32.xlu0 %v688, 64
      %v782 = vpop.permute.xlu0 %781
      %785 = vrot.lane.b32.xlu0 %v698, 80
      %v786 = vpop.permute.xlu0 %785
      %789 = vrot.lane.b32.xlu0 %v695, 96
      %v790 = vpop.permute.xlu0 %789
      %793 = vrot.lane.b32.xlu0 %v699, 112
      %v794 = vpop.permute.xlu0 %793
      %797 = vrot.lane.b32.xlu0 %v764, 16
      %v798 = vpop.permute.xlu0 %797
      %801 = vrot.lane.b32.xlu0 %v747, 32
      %v802 = vpop.permute.xlu0 %801
      %805 = vrot.lane.b32.xlu0 %v765, 48
      %v806 = vpop.permute.xlu0 %805
      %809 = vrot.lane.b32.xlu0 %v756, 64
      %v810 = vpop.permute.xlu0 %809
      %813 = vrot.lane.b32.xlu0 %v766, 80
      %v814 = vpop.permute.xlu0 %813
      %817 = vrot.lane.b32.xlu0 %v763, 96
      %v818 = vpop.permute.xlu0 %817
      %821 = vrot.lane.b32.xlu0 %v767, 112
      %v822 = vpop.permute.xlu0 %821
      %vm824 = vcmask 130048
      %v825 = vsel %vm824, %v672, %v770
      %vm826 = vcmask 261120
      %v827 = vsel %vm826, %v825, %v774
      %vm828 = vcmask 392192
      %v829 = vsel %vm828, %v827, %v778
      %vm830 = vcmask 523264
      %v831 = vsel %vm830, %v829, %v782
      %vm832 = vcmask 654336
      %v833 = vsel %vm832, %v831, %v786
      %vm834 = vcmask 785408
      %v835 = vsel %vm834, %v833, %v790
      %vm836 = vcmask 916480
      %v837 = vsel %vm836, %v835, %v794
      %v838 = vsel %vm824, %v740, %v798
      %v839 = vsel %vm826, %v838, %v802
      %v840 = vsel %vm828, %v839, %v806
      %v841 = vsel %vm830, %v840, %v810
      %v842 = vsel %vm832, %v841, %v814
      %v843 = vsel %vm834, %v842, %v818
      %v844 = vsel %vm836, %v843, %v822
      %845 = vst [vmem:[#allocation3] sm:$0xf] %v837
      %846 = vst [vmem:[#allocation3 + $0x8] sm:$0xf] %v844
      %v847 = vld [vmem:[#allocation2] sm:$0xff]
      %v848 = vld [vmem:[#allocation2 + $0x8] sm:$0xff]
      %v849 = vld [vmem:[#allocation2 + $0x18] sm:$0xff]
      %v850 = vld [vmem:[#allocation2 + $0x20] sm:$0xff]
      %v851 = vld [vmem:[#allocation2 + $0x30] sm:$0xff]
      %v852 = vld [vmem:[#allocation2 + $0x38] sm:$0xff]
      %v853 = vld [vmem:[#allocation2 + $0x48] sm:$0xff]
      %v854 = vld [vmem:[#allocation2 + $0x50] sm:$0xff]
      %863 = vrot.lane.b32.xlu0 %v847, 127
      %v864 = vpop.permute.xlu0 %863
      %865 = vrot.lane.b32.xlu0 %v848, 127
      %v866 = vpop.permute.xlu0 %865
      %867 = vrot.lane.b32.xlu0 %v849, 127
      %v868 = vpop.permute.xlu0 %867
      %869 = vrot.lane.b32.xlu0 %v850, 127
      %v870 = vpop.permute.xlu0 %869
      %871 = vrot.lane.b32.xlu0 %v851, 127
      %v872 = vpop.permute.xlu0 %871
      %873 = vrot.lane.b32.xlu0 %v852, 127
      %v874 = vpop.permute.xlu0 %873
      %875 = vrot.lane.b32.xlu0 %v853, 127
      %v876 = vpop.permute.xlu0 %875
      %877 = vrot.lane.b32.xlu0 %v854, 127
      %v878 = vpop.permute.xlu0 %877
      %v887 = vcombine.low %v864, %v872
      %v888 = vcombine.high %v864, %v872
      %v890 = vunpack.c.l.s4 1983009808
      %v891 = vunpack.c.0.s8 %v890
      %v892 = vlaneseq
      %v893 = vshrl.u32 %v892, 7
      %v894 = vsub.s32 %v891, %v893
      %v895 = vrot.slane %v887, %v894
      %v897 = vunpack.c.l.s4 1983009808
      %v898 = vunpack.c.0.s8 %v897
      %v899 = vlaneseq
      %v900 = vshrl.u32 %v899, 7
      %v901 = vsub.s32 %v898, %v900
      %v902 = vrot.slane %v888, %v901
      %v903 = vcombine.low %v868, %v876
      %v904 = vcombine.high %v868, %v876
      %v906 = vunpack.c.l.s4 1983009808
      %v907 = vunpack.c.0.s8 %v906
      %v908 = vlaneseq
      %v909 = vshrl.u32 %v908, 7
      %v910 = vsub.s32 %v907, %v909
      %v911 = vrot.slane %v903, %v910
      %v913 = vunpack.c.l.s4 1983009808
      %v914 = vunpack.c.0.s8 %v913
      %v915 = vlaneseq
      %v916 = vshrl.u32 %v915, 7
      %v917 = vsub.s32 %v914, %v916
      %v918 = vrot.slane %v904, %v917
      %v919 = vcombine.low %v895, %v911
      %v920 = vcombine.high %v895, %v911
      %v922 = vunpack.c.l.s4 1934713408
      %v923 = vunpack.c.0.s8 %v922
      %v924 = vlaneseq
      %v925 = vshrl.u32 %v924, 7
      %v926 = vsub.s32 %v923, %v925
      %v927 = vrot.slane %v919, %v926
      %v929 = vunpack.c.l.s4 1934713408
      %v930 = vunpack.c.0.s8 %v929
      %v931 = vlaneseq
      %v932 = vshrl.u32 %v931, 7
      %v933 = vsub.s32 %v930, %v932
      %v934 = vrot.slane %v920, %v933
      %v935 = vcombine.low %v902, %v918
      %v936 = vcombine.high %v902, %v918
      %v938 = vunpack.c.l.s4 1934713408
      %v939 = vunpack.c.0.s8 %v938
      %v940 = vlaneseq
      %v941 = vshrl.u32 %v940, 7
      %v942 = vsub.s32 %v939, %v941
      %v943 = vrot.slane %v935, %v942
      %v945 = vunpack.c.l.s4 1934713408
      %v946 = vunpack.c.0.s8 %v945
      %v947 = vlaneseq
      %v948 = vshrl.u32 %v947, 7
      %v949 = vsub.s32 %v946, %v948
      %v950 = vrot.slane %v936, %v949
      %v951 = vcombine.high %v927, 0.0
      %v952 = vcombine.high %v934, 0.0
      %v953 = vcombine.high %v943, 0.0
      %v954 = vcombine.high %v950, 0.0
      %v955 = vcombine.low %v866, %v874
      %v956 = vcombine.high %v866, %v874
      %v958 = vunpack.c.l.s4 1983009808
      %v959 = vunpack.c.0.s8 %v958
      %v960 = vlaneseq
      %v961 = vshrl.u32 %v960, 7
      %v962 = vsub.s32 %v959, %v961
      %v963 = vrot.slane %v955, %v962
      %v965 = vunpack.c.l.s4 1983009808
      %v966 = vunpack.c.0.s8 %v965
      %v967 = vlaneseq
      %v968 = vshrl.u32 %v967, 7
      %v969 = vsub.s32 %v966, %v968
      %v970 = vrot.slane %v956, %v969
      %v971 = vcombine.low %v870, %v878
      %v972 = vcombine.high %v870, %v878
      %v974 = vunpack.c.l.s4 1983009808
      %v975 = vunpack.c.0.s8 %v974
      %v976 = vlaneseq
      %v977 = vshrl.u32 %v976, 7
      %v978 = vsub.s32 %v975, %v977
      %v979 = vrot.slane %v971, %v978
      %v981 = vunpack.c.l.s4 1983009808
      %v982 = vunpack.c.0.s8 %v981
      %v983 = vlaneseq
      %v984 = vshrl.u32 %v983, 7
      %v985 = vsub.s32 %v982, %v984
      %v986 = vrot.slane %v972, %v985
      %v987 = vcombine.low %v963, %v979
      %v988 = vcombine.high %v963, %v979
      %v990 = vunpack.c.l.s4 1934713408
      %v991 = vunpack.c.0.s8 %v990
      %v992 = vlaneseq
      %v993 = vshrl.u32 %v992, 7
      %v994 = vsub.s32 %v991, %v993
      %v995 = vrot.slane %v987, %v994
      %v997 = vunpack.c.l.s4 1934713408
      %v998 = vunpack.c.0.s8 %v997
      %v999 = vlaneseq
      %v1000 = vshrl.u32 %v999, 7
      %v1001 = vsub.s32 %v998, %v1000
      %v1002 = vrot.slane %v988, %v1001
      %v1003 = vcombine.low %v970, %v986
      %v1004 = vcombine.high %v970, %v986
      %v1006 = vunpack.c.l.s4 1934713408
      %v1007 = vunpack.c.0.s8 %v1006
      %v1008 = vlaneseq
      %v1009 = vshrl.u32 %v1008, 7
      %v1010 = vsub.s32 %v1007, %v1009
      %v1011 = vrot.slane %v1003, %v1010
      %v1013 = vunpack.c.l.s4 1934713408
      %v1014 = vunpack.c.0.s8 %v1013
      %v1015 = vlaneseq
      %v1016 = vshrl.u32 %v1015, 7
      %v1017 = vsub.s32 %v1014, %v1016
      %v1018 = vrot.slane %v1004, %v1017
      %v1019 = vcombine.high %v995, 0.0
      %v1020 = vcombine.high %v1002, 0.0
      %v1021 = vcombine.high %v1011, 0.0
      %v1022 = vcombine.high %v1018, 0.0
      %1024 = vrot.lane.b32.xlu0 %v951, 16
      %v1025 = vpop.permute.xlu0 %1024
      %1028 = vrot.lane.b32.xlu0 %v934, 32
      %v1029 = vpop.permute.xlu0 %1028
      %1032 = vrot.lane.b32.xlu0 %v952, 48
      %v1033 = vpop.permute.xlu0 %1032
      %1036 = vrot.lane.b32.xlu0 %v943, 64
      %v1037 = vpop.permute.xlu0 %1036
      %1040 = vrot.lane.b32.xlu0 %v953, 80
      %v1041 = vpop.permute.xlu0 %1040
      %1044 = vrot.lane.b32.xlu0 %v950, 96
      %v1045 = vpop.permute.xlu0 %1044
      %1048 = vrot.lane.b32.xlu0 %v954, 112
      %v1049 = vpop.permute.xlu0 %1048
      %1052 = vrot.lane.b32.xlu0 %v1019, 16
      %v1053 = vpop.permute.xlu0 %1052
      %1056 = vrot.lane.b32.xlu0 %v1002, 32
      %v1057 = vpop.permute.xlu0 %1056
      %1060 = vrot.lane.b32.xlu0 %v1020, 48
      %v1061 = vpop.permute.xlu0 %1060
      %1064 = vrot.lane.b32.xlu0 %v1011, 64
      %v1065 = vpop.permute.xlu0 %1064
      %1068 = vrot.lane.b32.xlu0 %v1021, 80
      %v1069 = vpop.permute.xlu0 %1068
      %1072 = vrot.lane.b32.xlu0 %v1018, 96
      %v1073 = vpop.permute.xlu0 %1072
      %1076 = vrot.lane.b32.xlu0 %v1022, 112
      %v1077 = vpop.permute.xlu0 %1076
      %v1079 = vsel %vm824, %v927, %v1025
      %v1080 = vsel %vm826, %v1079, %v1029
      %v1081 = vsel %vm828, %v1080, %v1033
      %v1082 = vsel %vm830, %v1081, %v1037
      %v1083 = vsel %vm832, %v1082, %v1041
      %v1084 = vsel %vm834, %v1083, %v1045
      %v1085 = vsel %vm836, %v1084, %v1049
      %v1086 = vsel %vm824, %v995, %v1053
      %v1087 = vsel %vm826, %v1086, %v1057
      %v1088 = vsel %vm828, %v1087, %v1061
      %v1089 = vsel %vm830, %v1088, %v1065
      %v1090 = vsel %vm832, %v1089, %v1069
      %v1091 = vsel %vm834, %v1090, %v1073
      %v1092 = vsel %vm836, %v1091, %v1077
      %v1095 = vrot.slane %v1085, 4
      %v1096 = vrot.slane %v1092, 4
      %1099 = vst [vmem:[#allocation3] sm:$0xf0] %v1095
      %1100 = vst [vmem:[#allocation3 + $0x8] sm:$0xf0] %v1096
      %v1101 = vld [vmem:[#allocation2] sm:$0xff]
      %v1102 = vld [vmem:[#allocation2 + $0x8] sm:$0xff]
      %v1103 = vld [vmem:[#allocation2 + $0x18] sm:$0xff]
      %v1104 = vld [vmem:[#allocation2 + $0x20] sm:$0xff]
      %v1105 = vld [vmem:[#allocation2 + $0x30] sm:$0xff]
      %v1106 = vld [vmem:[#allocation2 + $0x38] sm:$0xff]
      %v1107 = vld [vmem:[#allocation2 + $0x48] sm:$0xff]
      %v1108 = vld [vmem:[#allocation2 + $0x50] sm:$0xff]
      %1117 = vrot.lane.b32.xlu0 %v1101, 126
      %v1118 = vpop.permute.xlu0 %1117
      %1119 = vrot.lane.b32.xlu0 %v1102, 126
      %v1120 = vpop.permute.xlu0 %1119
      %1121 = vrot.lane.b32.xlu0 %v1103, 126
      %v1122 = vpop.permute.xlu0 %1121
      %1123 = vrot.lane.b32.xlu0 %v1104, 126
      %v1124 = vpop.permute.xlu0 %1123
      %1125 = vrot.lane.b32.xlu0 %v1105, 126
      %v1126 = vpop.permute.xlu0 %1125
      %1127 = vrot.lane.b32.xlu0 %v1106, 126
      %v1128 = vpop.permute.xlu0 %1127
      %1129 = vrot.lane.b32.xlu0 %v1107, 126
      %v1130 = vpop.permute.xlu0 %1129
      %1131 = vrot.lane.b32.xlu0 %v1108, 126
      %v1132 = vpop.permute.xlu0 %1131
      %v1141 = vcombine.low %v1118, %v1126
      %v1142 = vcombine.high %v1118, %v1126
      %v1144 = vunpack.c.l.s4 1983009808
      %v1145 = vunpack.c.0.s8 %v1144
      %v1146 = vlaneseq
      %v1147 = vshrl.u32 %v1146, 7
      %v1148 = vsub.s32 %v1145, %v1147
      %v1149 = vrot.slane %v1141, %v1148
      %v1151 = vunpack.c.l.s4 1983009808
      %v1152 = vunpack.c.0.s8 %v1151
      %v1153 = vlaneseq
      %v1154 = vshrl.u32 %v1153, 7
      %v1155 = vsub.s32 %v1152, %v1154
      %v1156 = vrot.slane %v1142, %v1155
      %v1157 = vcombine.low %v1122, %v1130
      %v1158 = vcombine.high %v1122, %v1130
      %v1160 = vunpack.c.l.s4 1983009808
      %v1161 = vunpack.c.0.s8 %v1160
      %v1162 = vlaneseq
      %v1163 = vshrl.u32 %v1162, 7
      %v1164 = vsub.s32 %v1161, %v1163
      %v1165 = vrot.slane %v1157, %v1164
      %v1167 = vunpack.c.l.s4 1983009808
      %v1168 = vunpack.c.0.s8 %v1167
      %v1169 = vlaneseq
      %v1170 = vshrl.u32 %v1169, 7
      %v1171 = vsub.s32 %v1168, %v1170
      %v1172 = vrot.slane %v1158, %v1171
      %v1173 = vcombine.low %v1149, %v1165
      %v1174 = vcombine.high %v1149, %v1165
      %v1176 = vunpack.c.l.s4 1934713408
      %v1177 = vunpack.c.0.s8 %v1176
      %v1178 = vlaneseq
      %v1179 = vshrl.u32 %v1178, 7
      %v1180 = vsub.s32 %v1177, %v1179
      %v1181 = vrot.slane %v1173, %v1180
      %v1183 = vunpack.c.l.s4 1934713408
      %v1184 = vunpack.c.0.s8 %v1183
      %v1185 = vlaneseq
      %v1186 = vshrl.u32 %v1185, 7
      %v1187 = vsub.s32 %v1184, %v1186
      %v1188 = vrot.slane %v1174, %v1187
      %v1189 = vcombine.low %v1156, %v1172
      %v1190 = vcombine.high %v1156, %v1172
      %v1192 = vunpack.c.l.s4 1934713408
      %v1193 = vunpack.c.0.s8 %v1192
      %v1194 = vlaneseq
      %v1195 = vshrl.u32 %v1194, 7
      %v1196 = vsub.s32 %v1193, %v1195
      %v1197 = vrot.slane %v1189, %v1196
      %v1199 = vunpack.c.l.s4 1934713408
      %v1200 = vunpack.c.0.s8 %v1199
      %v1201 = vlaneseq
      %v1202 = vshrl.u32 %v1201, 7
      %v1203 = vsub.s32 %v1200, %v1202
      %v1204 = vrot.slane %v1190, %v1203
      %v1205 = vcombine.high %v1181, 0.0
      %v1206 = vcombine.high %v1188, 0.0
      %v1207 = vcombine.high %v1197, 0.0
      %v1208 = vcombine.high %v1204, 0.0
      %v1209 = vcombine.low %v1120, %v1128
      %v1210 = vcombine.high %v1120, %v1128
      %v1212 = vunpack.c.l.s4 1983009808
      %v1213 = vunpack.c.0.s8 %v1212
      %v1214 = vlaneseq
      %v1215 = vshrl.u32 %v1214, 7
      %v1216 = vsub.s32 %v1213, %v1215
      %v1217 = vrot.slane %v1209, %v1216
      %v1219 = vunpack.c.l.s4 1983009808
      %v1220 = vunpack.c.0.s8 %v1219
      %v1221 = vlaneseq
      %v1222 = vshrl.u32 %v1221, 7
      %v1223 = vsub.s32 %v1220, %v1222
      %v1224 = vrot.slane %v1210, %v1223
      %v1225 = vcombine.low %v1124, %v1132
      %v1226 = vcombine.high %v1124, %v1132
      %v1228 = vunpack.c.l.s4 1983009808
      %v1229 = vunpack.c.0.s8 %v1228
      %v1230 = vlaneseq
      %v1231 = vshrl.u32 %v1230, 7
      %v1232 = vsub.s32 %v1229, %v1231
      %v1233 = vrot.slane %v1225, %v1232
      %v1235 = vunpack.c.l.s4 1983009808
      %v1236 = vunpack.c.0.s8 %v1235
      %v1237 = vlaneseq
      %v1238 = vshrl.u32 %v1237, 7
      %v1239 = vsub.s32 %v1236, %v1238
      %v1240 = vrot.slane %v1226, %v1239
      %v1241 = vcombine.low %v1217, %v1233
      %v1242 = vcombine.high %v1217, %v1233
      %v1244 = vunpack.c.l.s4 1934713408
      %v1245 = vunpack.c.0.s8 %v1244
      %v1246 = vlaneseq
      %v1247 = vshrl.u32 %v1246, 7
      %v1248 = vsub.s32 %v1245, %v1247
      %v1249 = vrot.slane %v1241, %v1248
      %v1251 = vunpack.c.l.s4 1934713408
      %v1252 = vunpack.c.0.s8 %v1251
      %v1253 = vlaneseq
      %v1254 = vshrl.u32 %v1253, 7
      %v1255 = vsub.s32 %v1252, %v1254
      %v1256 = vrot.slane %v1242, %v1255
      %v1257 = vcombine.low %v1224, %v1240
      %v1258 = vcombine.high %v1224, %v1240
      %v1260 = vunpack.c.l.s4 1934713408
      %v1261 = vunpack.c.0.s8 %v1260
      %v1262 = vlaneseq
      %v1263 = vshrl.u32 %v1262, 7
      %v1264 = vsub.s32 %v1261, %v1263
      %v1265 = vrot.slane %v1257, %v1264
      %v1267 = vunpack.c.l.s4 1934713408
      %v1268 = vunpack.c.0.s8 %v1267
      %v1269 = vlaneseq
      %v1270 = vshrl.u32 %v1269, 7
      %v1271 = vsub.s32 %v1268, %v1270
      %v1272 = vrot.slane %v1258, %v1271
      %v1273 = vcombine.high %v1249, 0.0
      %v1274 = vcombine.high %v1256, 0.0
      %v1275 = vcombine.high %v1265, 0.0
      %v1276 = vcombine.high %v1272, 0.0
      %1278 = vrot.lane.b32.xlu0 %v1205, 16
      %v1279 = vpop.permute.xlu0 %1278
      %1282 = vrot.lane.b32.xlu0 %v1188, 32
      %v1283 = vpop.permute.xlu0 %1282
      %1286 = vrot.lane.b32.xlu0 %v1206, 48
      %v1287 = vpop.permute.xlu0 %1286
      %1290 = vrot.lane.b32.xlu0 %v1197, 64
      %v1291 = vpop.permute.xlu0 %1290
      %1294 = vrot.lane.b32.xlu0 %v1207, 80
      %v1295 = vpop.permute.xlu0 %1294
      %1298 = vrot.lane.b32.xlu0 %v1204, 96
      %v1299 = vpop.permute.xlu0 %1298
      %1302 = vrot.lane.b32.xlu0 %v1208, 112
      %v1303 = vpop.permute.xlu0 %1302
      %1306 = vrot.lane.b32.xlu0 %v1273, 16
      %v1307 = vpop.permute.xlu0 %1306
      %1310 = vrot.lane.b32.xlu0 %v1256, 32
      %v1311 = vpop.permute.xlu0 %1310
      %1314 = vrot.lane.b32.xlu0 %v1274, 48
      %v1315 = vpop.permute.xlu0 %1314
      %1318 = vrot.lane.b32.xlu0 %v1265, 64
      %v1319 = vpop.permute.xlu0 %1318
      %1322 = vrot.lane.b32.xlu0 %v1275, 80
      %v1323 = vpop.permute.xlu0 %1322
      %1326 = vrot.lane.b32.xlu0 %v1272, 96
      %v1327 = vpop.permute.xlu0 %1326
      %1330 = vrot.lane.b32.xlu0 %v1276, 112
      %v1331 = vpop.permute.xlu0 %1330
      %v1333 = vsel %vm824, %v1181, %v1279
      %v1334 = vsel %vm826, %v1333, %v1283
      %v1335 = vsel %vm828, %v1334, %v1287
      %v1336 = vsel %vm830, %v1335, %v1291
      %v1337 = vsel %vm832, %v1336, %v1295
      %v1338 = vsel %vm834, %v1337, %v1299
      %v1339 = vsel %vm836, %v1338, %v1303
      %v1340 = vsel %vm824, %v1249, %v1307
      %v1341 = vsel %vm826, %v1340, %v1311
      %v1342 = vsel %vm828, %v1341, %v1315
      %v1343 = vsel %vm830, %v1342, %v1319
      %v1344 = vsel %vm832, %v1343, %v1323
      %v1345 = vsel %vm834, %v1344, %v1327
      %v1346 = vsel %vm836, %v1345, %v1331
      %1347 = vst [vmem:[#allocation3 + $0x10] sm:$0xf] %v1339
      %1348 = vst [vmem:[#allocation3 + $0x18] sm:$0xf] %v1346
      %v1349 = vld [vmem:[#allocation2 + $0x1] sm:$0xff]
      %v1350 = vld [vmem:[#allocation2 + $0x9] sm:$0xff]
      %v1351 = vld [vmem:[#allocation2 + $0x19] sm:$0xff]
      %v1352 = vld [vmem:[#allocation2 + $0x21] sm:$0xff]
      %v1353 = vld [vmem:[#allocation2 + $0x31] sm:$0xff]
      %v1354 = vld [vmem:[#allocation2 + $0x39] sm:$0xff]
      %v1355 = vld [vmem:[#allocation2 + $0x49] sm:$0xff]
      %v1356 = vld [vmem:[#allocation2 + $0x51] sm:$0xff]
      %v1357 = vcombine.low %v1349, %v1353
      %v1358 = vcombine.high %v1349, %v1353
      %v1360 = vunpack.c.l.s4 1983009808
      %v1361 = vunpack.c.0.s8 %v1360
      %v1362 = vlaneseq
      %v1363 = vshrl.u32 %v1362, 7
      %v1364 = vsub.s32 %v1361, %v1363
      %v1365 = vrot.slane %v1357, %v1364
      %v1367 = vunpack.c.l.s4 1983009808
      %v1368 = vunpack.c.0.s8 %v1367
      %v1369 = vlaneseq
      %v1370 = vshrl.u32 %v1369, 7
      %v1371 = vsub.s32 %v1368, %v1370
      %v1372 = vrot.slane %v1358, %v1371
      %v1373 = vcombine.low %v1351, %v1355
      %v1374 = vcombine.high %v1351, %v1355
      %v1376 = vunpack.c.l.s4 1983009808
      %v1377 = vunpack.c.0.s8 %v1376
      %v1378 = vlaneseq
      %v1379 = vshrl.u32 %v1378, 7
      %v1380 = vsub.s32 %v1377, %v1379
      %v1381 = vrot.slane %v1373, %v1380
      %v1383 = vunpack.c.l.s4 1983009808
      %v1384 = vunpack.c.0.s8 %v1383
      %v1385 = vlaneseq
      %v1386 = vshrl.u32 %v1385, 7
      %v1387 = vsub.s32 %v1384, %v1386
      %v1388 = vrot.slane %v1374, %v1387
      %v1389 = vcombine.low %v1365, %v1381
      %v1390 = vcombine.high %v1365, %v1381
      %v1392 = vunpack.c.l.s4 1934713408
      %v1393 = vunpack.c.0.s8 %v1392
      %v1394 = vlaneseq
      %v1395 = vshrl.u32 %v1394, 7
      %v1396 = vsub.s32 %v1393, %v1395
      %v1397 = vrot.slane %v1389, %v1396
      %v1399 = vunpack.c.l.s4 1934713408
      %v1400 = vunpack.c.0.s8 %v1399
      %v1401 = vlaneseq
      %v1402 = vshrl.u32 %v1401, 7
      %v1403 = vsub.s32 %v1400, %v1402
      %v1404 = vrot.slane %v1390, %v1403
      %v1405 = vcombine.low %v1372, %v1388
      %v1406 = vcombine.high %v1372, %v1388
      %v1408 = vunpack.c.l.s4 1934713408
      %v1409 = vunpack.c.0.s8 %v1408
      %v1410 = vlaneseq
      %v1411 = vshrl.u32 %v1410, 7
      %v1412 = vsub.s32 %v1409, %v1411
      %v1413 = vrot.slane %v1405, %v1412
      %v1415 = vunpack.c.l.s4 1934713408
      %v1416 = vunpack.c.0.s8 %v1415
      %v1417 = vlaneseq
      %v1418 = vshrl.u32 %v1417, 7
      %v1419 = vsub.s32 %v1416, %v1418
      %v1420 = vrot.slane %v1406, %v1419
      %v1421 = vcombine.high %v1397, 0.0
      %v1422 = vcombine.high %v1404, 0.0
      %v1423 = vcombine.high %v1413, 0.0
      %v1424 = vcombine.high %v1420, 0.0
      %v1425 = vcombine.low %v1350, %v1354
      %v1426 = vcombine.high %v1350, %v1354
      %v1428 = vunpack.c.l.s4 1983009808
      %v1429 = vunpack.c.0.s8 %v1428
      %v1430 = vlaneseq
      %v1431 = vshrl.u32 %v1430, 7
      %v1432 = vsub.s32 %v1429, %v1431
      %v1433 = vrot.slane %v1425, %v1432
      %v1435 = vunpack.c.l.s4 1983009808
      %v1436 = vunpack.c.0.s8 %v1435
      %v1437 = vlaneseq
      %v1438 = vshrl.u32 %v1437, 7
      %v1439 = vsub.s32 %v1436, %v1438
      %v1440 = vrot.slane %v1426, %v1439
      %v1441 = vcombine.low %v1352, %v1356
      %v1442 = vcombine.high %v1352, %v1356
      %v1444 = vunpack.c.l.s4 1983009808
      %v1445 = vunpack.c.0.s8 %v1444
      %v1446 = vlaneseq
      %v1447 = vshrl.u32 %v1446, 7
      %v1448 = vsub.s32 %v1445, %v1447
      %v1449 = vrot.slane %v1441, %v1448
      %v1451 = vunpack.c.l.s4 1983009808
      %v1452 = vunpack.c.0.s8 %v1451
      %v1453 = vlaneseq
      %v1454 = vshrl.u32 %v1453, 7
      %v1455 = vsub.s32 %v1452, %v1454
      %v1456 = vrot.slane %v1442, %v1455
      %v1457 = vcombine.low %v1433, %v1449
      %v1458 = vcombine.high %v1433, %v1449
      %v1460 = vunpack.c.l.s4 1934713408
      %v1461 = vunpack.c.0.s8 %v1460
      %v1462 = vlaneseq
      %v1463 = vshrl.u32 %v1462, 7
      %v1464 = vsub.s32 %v1461, %v1463
      %v1465 = vrot.slane %v1457, %v1464
      %v1467 = vunpack.c.l.s4 1934713408
      %v1468 = vunpack.c.0.s8 %v1467
      %v1469 = vlaneseq
      %v1470 = vshrl.u32 %v1469, 7
      %v1471 = vsub.s32 %v1468, %v1470
      %v1472 = vrot.slane %v1458, %v1471
      %v1473 = vcombine.low %v1440, %v1456
      %v1474 = vcombine.high %v1440, %v1456
      %v1476 = vunpack.c.l.s4 1934713408
      %v1477 = vunpack.c.0.s8 %v1476
      %v1478 = vlaneseq
      %v1479 = vshrl.u32 %v1478, 7
      %v1480 = vsub.s32 %v1477, %v1479
      %v1481 = vrot.slane %v1473, %v1480
      %v1483 = vunpack.c.l.s4 1934713408
      %v1484 = vunpack.c.0.s8 %v1483
      %v1485 = vlaneseq
      %v1486 = vshrl.u32 %v1485, 7
      %v1487 = vsub.s32 %v1484, %v1486
      %v1488 = vrot.slane %v1474, %v1487
      %v1489 = vcombine.high %v1465, 0.0
      %v1490 = vcombine.high %v1472, 0.0
      %v1491 = vcombine.high %v1481, 0.0
      %v1492 = vcombine.high %v1488, 0.0
      %1494 = vrot.lane.b32.xlu0 %v1421, 16
      %v1495 = vpop.permute.xlu0 %1494
      %1498 = vrot.lane.b32.xlu0 %v1404, 32
      %v1499 = vpop.permute.xlu0 %1498
      %1502 = vrot.lane.b32.xlu0 %v1422, 48
      %v1503 = vpop.permute.xlu0 %1502
      %1506 = vrot.lane.b32.xlu0 %v1413, 64
      %v1507 = vpop.permute.xlu0 %1506
      %1510 = vrot.lane.b32.xlu0 %v1423, 80
      %v1511 = vpop.permute.xlu0 %1510
      %1514 = vrot.lane.b32.xlu0 %v1420, 96
      %v1515 = vpop.permute.xlu0 %1514
      %1518 = vrot.lane.b32.xlu0 %v1424, 112
      %v1519 = vpop.permute.xlu0 %1518
      %1522 = vrot.lane.b32.xlu0 %v1489, 16
      %v1523 = vpop.permute.xlu0 %1522
      %1526 = vrot.lane.b32.xlu0 %v1472, 32
      %v1527 = vpop.permute.xlu0 %1526
      %1530 = vrot.lane.b32.xlu0 %v1490, 48
      %v1531 = vpop.permute.xlu0 %1530
      %1534 = vrot.lane.b32.xlu0 %v1481, 64
      %v1535 = vpop.permute.xlu0 %1534
      %1538 = vrot.lane.b32.xlu0 %v1491, 80
      %v1539 = vpop.permute.xlu0 %1538
      %1542 = vrot.lane.b32.xlu0 %v1488, 96
      %v1543 = vpop.permute.xlu0 %1542
      %1546 = vrot.lane.b32.xlu0 %v1492, 112
      %v1547 = vpop.permute.xlu0 %1546
      %v1549 = vsel %vm824, %v1397, %v1495
      %v1550 = vsel %vm826, %v1549, %v1499
      %v1551 = vsel %vm828, %v1550, %v1503
      %v1552 = vsel %vm830, %v1551, %v1507
      %v1553 = vsel %vm832, %v1552, %v1511
      %v1554 = vsel %vm834, %v1553, %v1515
      %v1555 = vsel %vm836, %v1554, %v1519
      %v1556 = vsel %vm824, %v1465, %v1523
      %v1557 = vsel %vm826, %v1556, %v1527
      %v1558 = vsel %vm828, %v1557, %v1531
      %v1559 = vsel %vm830, %v1558, %v1535
      %v1560 = vsel %vm832, %v1559, %v1539
      %v1561 = vsel %vm834, %v1560, %v1543
      %v1562 = vsel %vm836, %v1561, %v1547
      %v1565 = vrot.slane %v1555, 4
      %v1566 = vrot.slane %v1562, 4
      %1569 = vst [vmem:[#allocation3 + $0x10] sm:$0xf0] %v1565
      %1570 = vst [vmem:[#allocation3 + $0x18] sm:$0xf0] %v1566
      %v1571 = vld [vmem:[#allocation2 + $0x1] sm:$0xff]
      %v1572 = vld [vmem:[#allocation2 + $0x9] sm:$0xff]
      %v1573 = vld [vmem:[#allocation2 + $0x19] sm:$0xff]
      %v1574 = vld [vmem:[#allocation2 + $0x21] sm:$0xff]
      %v1575 = vld [vmem:[#allocation2 + $0x31] sm:$0xff]
      %v1576 = vld [vmem:[#allocation2 + $0x39] sm:$0xff]
      %v1577 = vld [vmem:[#allocation2 + $0x49] sm:$0xff]
      %v1578 = vld [vmem:[#allocation2 + $0x51] sm:$0xff]
      %1587 = vrot.lane.b32.xlu0 %v1571, 127
      %v1588 = vpop.permute.xlu0 %1587
      %1589 = vrot.lane.b32.xlu0 %v1572, 127
      %v1590 = vpop.permute.xlu0 %1589
      %1591 = vrot.lane.b32.xlu0 %v1573, 127
      %v1592 = vpop.permute.xlu0 %1591
      %1593 = vrot.lane.b32.xlu0 %v1574, 127
      %v1594 = vpop.permute.xlu0 %1593
      %1595 = vrot.lane.b32.xlu0 %v1575, 127
      %v1596 = vpop.permute.xlu0 %1595
      %1597 = vrot.lane.b32.xlu0 %v1576, 127
      %v1598 = vpop.permute.xlu0 %1597
      %1599 = vrot.lane.b32.xlu0 %v1577, 127
      %v1600 = vpop.permute.xlu0 %1599
      %1601 = vrot.lane.b32.xlu0 %v1578, 127
      %v1602 = vpop.permute.xlu0 %1601
      %v1611 = vcombine.low %v1588, %v1596
      %v1612 = vcombine.high %v1588, %v1596
      %v1614 = vunpack.c.l.s4 1983009808
      %v1615 = vunpack.c.0.s8 %v1614
      %v1616 = vlaneseq
      %v1617 = vshrl.u32 %v1616, 7
      %v1618 = vsub.s32 %v1615, %v1617
      %v1619 = vrot.slane %v1611, %v1618
      %v1621 = vunpack.c.l.s4 1983009808
      %v1622 = vunpack.c.0.s8 %v1621
      %v1623 = vlaneseq
      %v1624 = vshrl.u32 %v1623, 7
      %v1625 = vsub.s32 %v1622, %v1624
      %v1626 = vrot.slane %v1612, %v1625
      %v1627 = vcombine.low %v1592, %v1600
      %v1628 = vcombine.high %v1592, %v1600
      %v1630 = vunpack.c.l.s4 1983009808
      %v1631 = vunpack.c.0.s8 %v1630
      %v1632 = vlaneseq
      %v1633 = vshrl.u32 %v1632, 7
      %v1634 = vsub.s32 %v1631, %v1633
      %v1635 = vrot.slane %v1627, %v1634
      %v1637 = vunpack.c.l.s4 1983009808
      %v1638 = vunpack.c.0.s8 %v1637
      %v1639 = vlaneseq
      %v1640 = vshrl.u32 %v1639, 7
      %v1641 = vsub.s32 %v1638, %v1640
      %v1642 = vrot.slane %v1628, %v1641
      %v1643 = vcombine.low %v1619, %v1635
      %v1644 = vcombine.high %v1619, %v1635
      %v1646 = vunpack.c.l.s4 1934713408
      %v1647 = vunpack.c.0.s8 %v1646
      %v1648 = vlaneseq
      %v1649 = vshrl.u32 %v1648, 7
      %v1650 = vsub.s32 %v1647, %v1649
      %v1651 = vrot.slane %v1643, %v1650
      %v1653 = vunpack.c.l.s4 1934713408
      %v1654 = vunpack.c.0.s8 %v1653
      %v1655 = vlaneseq
      %v1656 = vshrl.u32 %v1655, 7
      %v1657 = vsub.s32 %v1654, %v1656
      %v1658 = vrot.slane %v1644, %v1657
      %v1659 = vcombine.low %v1626, %v1642
      %v1660 = vcombine.high %v1626, %v1642
      %v1662 = vunpack.c.l.s4 1934713408
      %v1663 = vunpack.c.0.s8 %v1662
      %v1664 = vlaneseq
      %v1665 = vshrl.u32 %v1664, 7
      %v1666 = vsub.s32 %v1663, %v1665
      %v1667 = vrot.slane %v1659, %v1666
      %v1669 = vunpack.c.l.s4 1934713408
      %v1670 = vunpack.c.0.s8 %v1669
      %v1671 = vlaneseq
      %v1672 = vshrl.u32 %v1671, 7
      %v1673 = vsub.s32 %v1670, %v1672
      %v1674 = vrot.slane %v1660, %v1673
      %v1675 = vcombine.high %v1651, 0.0
      %v1676 = vcombine.high %v1658, 0.0
      %v1677 = vcombine.high %v1667, 0.0
      %v1678 = vcombine.high %v1674, 0.0
      %v1679 = vcombine.low %v1590, %v1598
      %v1680 = vcombine.high %v1590, %v1598
      %v1682 = vunpack.c.l.s4 1983009808
      %v1683 = vunpack.c.0.s8 %v1682
      %v1684 = vlaneseq
      %v1685 = vshrl.u32 %v1684, 7
      %v1686 = vsub.s32 %v1683, %v1685
      %v1687 = vrot.slane %v1679, %v1686
      %v1689 = vunpack.c.l.s4 1983009808
      %v1690 = vunpack.c.0.s8 %v1689
      %v1691 = vlaneseq
      %v1692 = vshrl.u32 %v1691, 7
      %v1693 = vsub.s32 %v1690, %v1692
      %v1694 = vrot.slane %v1680, %v1693
      %v1695 = vcombine.low %v1594, %v1602
      %v1696 = vcombine.high %v1594, %v1602
      %v1698 = vunpack.c.l.s4 1983009808
      %v1699 = vunpack.c.0.s8 %v1698
      %v1700 = vlaneseq
      %v1701 = vshrl.u32 %v1700, 7
      %v1702 = vsub.s32 %v1699, %v1701
      %v1703 = vrot.slane %v1695, %v1702
      %v1705 = vunpack.c.l.s4 1983009808
      %v1706 = vunpack.c.0.s8 %v1705
      %v1707 = vlaneseq
      %v1708 = vshrl.u32 %v1707, 7
      %v1709 = vsub.s32 %v1706, %v1708
      %v1710 = vrot.slane %v1696, %v1709
      %v1711 = vcombine.low %v1687, %v1703
      %v1712 = vcombine.high %v1687, %v1703
      %v1714 = vunpack.c.l.s4 1934713408
      %v1715 = vunpack.c.0.s8 %v1714
      %v1716 = vlaneseq
      %v1717 = vshrl.u32 %v1716, 7
      %v1718 = vsub.s32 %v1715, %v1717
      %v1719 = vrot.slane %v1711, %v1718
      %v1721 = vunpack.c.l.s4 1934713408
      %v1722 = vunpack.c.0.s8 %v1721
      %v1723 = vlaneseq
      %v1724 = vshrl.u32 %v1723, 7
      %v1725 = vsub.s32 %v1722, %v1724
      %v1726 = vrot.slane %v1712, %v1725
      %v1727 = vcombine.low %v1694, %v1710
      %v1728 = vcombine.high %v1694, %v1710
      %v1730 = vunpack.c.l.s4 1934713408
      %v1731 = vunpack.c.0.s8 %v1730
      %v1732 = vlaneseq
      %v1733 = vshrl.u32 %v1732, 7
      %v1734 = vsub.s32 %v1731, %v1733
      %v1735 = vrot.slane %v1727, %v1734
      %v1737 = vunpack.c.l.s4 1934713408
      %v1738 = vunpack.c.0.s8 %v1737
      %v1739 = vlaneseq
      %v1740 = vshrl.u32 %v1739, 7
      %v1741 = vsub.s32 %v1738, %v1740
      %v1742 = vrot.slane %v1728, %v1741
      %v1743 = vcombine.high %v1719, 0.0
      %v1744 = vcombine.high %v1726, 0.0
      %v1745 = vcombine.high %v1735, 0.0
      %v1746 = vcombine.high %v1742, 0.0
      %1748 = vrot.lane.b32.xlu0 %v1675, 16
      %v1749 = vpop.permute.xlu0 %1748
      %1752 = vrot.lane.b32.xlu0 %v1658, 32
      %v1753 = vpop.permute.xlu0 %1752
      %1756 = vrot.lane.b32.xlu0 %v1676, 48
      %v1757 = vpop.permute.xlu0 %1756
      %1760 = vrot.lane.b32.xlu0 %v1667, 64
      %v1761 = vpop.permute.xlu0 %1760
      %1764 = vrot.lane.b32.xlu0 %v1677, 80
      %v1765 = vpop.permute.xlu0 %1764
      %1768 = vrot.lane.b32.xlu0 %v1674, 96
      %v1769 = vpop.permute.xlu0 %1768
      %1772 = vrot.lane.b32.xlu0 %v1678, 112
      %v1773 = vpop.permute.xlu0 %1772
      %1776 = vrot.lane.b32.xlu0 %v1743, 16
      %v1777 = vpop.permute.xlu0 %1776
      %1780 = vrot.lane.b32.xlu0 %v1726, 32
      %v1781 = vpop.permute.xlu0 %1780
      %1784 = vrot.lane.b32.xlu0 %v1744, 48
      %v1785 = vpop.permute.xlu0 %1784
      %1788 = vrot.lane.b32.xlu0 %v1735, 64
      %v1789 = vpop.permute.xlu0 %1788
      %1792 = vrot.lane.b32.xlu0 %v1745, 80
      %v1793 = vpop.permute.xlu0 %1792
      %1796 = vrot.lane.b32.xlu0 %v1742, 96
      %v1797 = vpop.permute.xlu0 %1796
      %1800 = vrot.lane.b32.xlu0 %v1746, 112
      %v1801 = vpop.permute.xlu0 %1800
      %v1803 = vsel %vm824, %v1651, %v1749
      %v1804 = vsel %vm826, %v1803, %v1753
      %v1805 = vsel %vm828, %v1804, %v1757
      %v1806 = vsel %vm830, %v1805, %v1761
      %v1807 = vsel %vm832, %v1806, %v1765
      %v1808 = vsel %vm834, %v1807, %v1769
      %v1809 = vsel %vm836, %v1808, %v1773
      %v1810 = vsel %vm824, %v1719, %v1777
      %v1811 = vsel %vm826, %v1810, %v1781
      %v1812 = vsel %vm828, %v1811, %v1785
      %v1813 = vsel %vm830, %v1812, %v1789
      %v1814 = vsel %vm832, %v1813, %v1793
      %v1815 = vsel %vm834, %v1814, %v1797
      %v1816 = vsel %vm836, %v1815, %v1801
      %1817 = vst [vmem:[#allocation3 + $0x20] sm:$0xf] %v1809
      %1818 = vst [vmem:[#allocation3 + $0x28] sm:$0xf] %v1816
      %v1819 = vld [vmem:[#allocation2 + $0x1] sm:$0xff]
      %v1820 = vld [vmem:[#allocation2 + $0x9] sm:$0xff]
      %v1821 = vld [vmem:[#allocation2 + $0x19] sm:$0xff]
      %v1822 = vld [vmem:[#allocation2 + $0x21] sm:$0xff]
      %v1823 = vld [vmem:[#allocation2 + $0x31] sm:$0xff]
      %v1824 = vld [vmem:[#allocation2 + $0x39] sm:$0xff]
      %v1825 = vld [vmem:[#allocation2 + $0x49] sm:$0xff]
      %v1826 = vld [vmem:[#allocation2 + $0x51] sm:$0xff]
      %1835 = vrot.lane.b32.xlu0 %v1819, 126
      %v1836 = vpop.permute.xlu0 %1835
      %1837 = vrot.lane.b32.xlu0 %v1820, 126
      %v1838 = vpop.permute.xlu0 %1837
      %1839 = vrot.lane.b32.xlu0 %v1821, 126
      %v1840 = vpop.permute.xlu0 %1839
      %1841 = vrot.lane.b32.xlu0 %v1822, 126
      %v1842 = vpop.permute.xlu0 %1841
      %1843 = vrot.lane.b32.xlu0 %v1823, 126
      %v1844 = vpop.permute.xlu0 %1843
      %1845 = vrot.lane.b32.xlu0 %v1824, 126
      %v1846 = vpop.permute.xlu0 %1845
      %1847 = vrot.lane.b32.xlu0 %v1825, 126
      %v1848 = vpop.permute.xlu0 %1847
      %1849 = vrot.lane.b32.xlu0 %v1826, 126
      %v1850 = vpop.permute.xlu0 %1849
      %v1859 = vcombine.low %v1836, %v1844
      %v1860 = vcombine.high %v1836, %v1844
      %v1862 = vunpack.c.l.s4 1983009808
      %v1863 = vunpack.c.0.s8 %v1862
      %v1864 = vlaneseq
      %v1865 = vshrl.u32 %v1864, 7
      %v1866 = vsub.s32 %v1863, %v1865
      %v1867 = vrot.slane %v1859, %v1866
      %v1869 = vunpack.c.l.s4 1983009808
      %v1870 = vunpack.c.0.s8 %v1869
      %v1871 = vlaneseq
      %v1872 = vshrl.u32 %v1871, 7
      %v1873 = vsub.s32 %v1870, %v1872
      %v1874 = vrot.slane %v1860, %v1873
      %v1875 = vcombine.low %v1840, %v1848
      %v1876 = vcombine.high %v1840, %v1848
      %v1878 = vunpack.c.l.s4 1983009808
      %v1879 = vunpack.c.0.s8 %v1878
      %v1880 = vlaneseq
      %v1881 = vshrl.u32 %v1880, 7
      %v1882 = vsub.s32 %v1879, %v1881
      %v1883 = vrot.slane %v1875, %v1882
      %v1885 = vunpack.c.l.s4 1983009808
      %v1886 = vunpack.c.0.s8 %v1885
      %v1887 = vlaneseq
      %v1888 = vshrl.u32 %v1887, 7
      %v1889 = vsub.s32 %v1886, %v1888
      %v1890 = vrot.slane %v1876, %v1889
      %v1891 = vcombine.low %v1867, %v1883
      %v1892 = vcombine.high %v1867, %v1883
      %v1894 = vunpack.c.l.s4 1934713408
      %v1895 = vunpack.c.0.s8 %v1894
      %v1896 = vlaneseq
      %v1897 = vshrl.u32 %v1896, 7
      %v1898 = vsub.s32 %v1895, %v1897
      %v1899 = vrot.slane %v1891, %v1898
      %v1901 = vunpack.c.l.s4 1934713408
      %v1902 = vunpack.c.0.s8 %v1901
      %v1903 = vlaneseq
      %v1904 = vshrl.u32 %v1903, 7
      %v1905 = vsub.s32 %v1902, %v1904
      %v1906 = vrot.slane %v1892, %v1905
      %v1907 = vcombine.low %v1874, %v1890
      %v1908 = vcombine.high %v1874, %v1890
      %v1910 = vunpack.c.l.s4 1934713408
      %v1911 = vunpack.c.0.s8 %v1910
      %v1912 = vlaneseq
      %v1913 = vshrl.u32 %v1912, 7
      %v1914 = vsub.s32 %v1911, %v1913
      %v1915 = vrot.slane %v1907, %v1914
      %v1917 = vunpack.c.l.s4 1934713408
      %v1918 = vunpack.c.0.s8 %v1917
      %v1919 = vlaneseq
      %v1920 = vshrl.u32 %v1919, 7
      %v1921 = vsub.s32 %v1918, %v1920
      %v1922 = vrot.slane %v1908, %v1921
      %v1923 = vcombine.high %v1899, 0.0
      %v1924 = vcombine.high %v1906, 0.0
      %v1925 = vcombine.high %v1915, 0.0
      %v1926 = vcombine.high %v1922, 0.0
      %v1927 = vcombine.low %v1838, %v1846
      %v1928 = vcombine.high %v1838, %v1846
      %v1930 = vunpack.c.l.s4 1983009808
      %v1931 = vunpack.c.0.s8 %v1930
      %v1932 = vlaneseq
      %v1933 = vshrl.u32 %v1932, 7
      %v1934 = vsub.s32 %v1931, %v1933
      %v1935 = vrot.slane %v1927, %v1934
      %v1937 = vunpack.c.l.s4 1983009808
      %v1938 = vunpack.c.0.s8 %v1937
      %v1939 = vlaneseq
      %v1940 = vshrl.u32 %v1939, 7
      %v1941 = vsub.s32 %v1938, %v1940
      %v1942 = vrot.slane %v1928, %v1941
      %v1943 = vcombine.low %v1842, %v1850
      %v1944 = vcombine.high %v1842, %v1850
      %v1946 = vunpack.c.l.s4 1983009808
      %v1947 = vunpack.c.0.s8 %v1946
      %v1948 = vlaneseq
      %v1949 = vshrl.u32 %v1948, 7
      %v1950 = vsub.s32 %v1947, %v1949
      %v1951 = vrot.slane %v1943, %v1950
      %v1953 = vunpack.c.l.s4 1983009808
      %v1954 = vunpack.c.0.s8 %v1953
      %v1955 = vlaneseq
      %v1956 = vshrl.u32 %v1955, 7
      %v1957 = vsub.s32 %v1954, %v1956
      %v1958 = vrot.slane %v1944, %v1957
      %v1959 = vcombine.low %v1935, %v1951
      %v1960 = vcombine.high %v1935, %v1951
      %v1962 = vunpack.c.l.s4 1934713408
      %v1963 = vunpack.c.0.s8 %v1962
      %v1964 = vlaneseq
      %v1965 = vshrl.u32 %v1964, 7
      %v1966 = vsub.s32 %v1963, %v1965
      %v1967 = vrot.slane %v1959, %v1966
      %v1969 = vunpack.c.l.s4 1934713408
      %v1970 = vunpack.c.0.s8 %v1969
      %v1971 = vlaneseq
      %v1972 = vshrl.u32 %v1971, 7
      %v1973 = vsub.s32 %v1970, %v1972
      %v1974 = vrot.slane %v1960, %v1973
      %v1975 = vcombine.low %v1942, %v1958
      %v1976 = vcombine.high %v1942, %v1958
      %v1978 = vunpack.c.l.s4 1934713408
      %v1979 = vunpack.c.0.s8 %v1978
      %v1980 = vlaneseq
      %v1981 = vshrl.u32 %v1980, 7
      %v1982 = vsub.s32 %v1979, %v1981
      %v1983 = vrot.slane %v1975, %v1982
      %v1985 = vunpack.c.l.s4 1934713408
      %v1986 = vunpack.c.0.s8 %v1985
      %v1987 = vlaneseq
      %v1988 = vshrl.u32 %v1987, 7
      %v1989 = vsub.s32 %v1986, %v1988
      %v1990 = vrot.slane %v1976, %v1989
      %v1991 = vcombine.high %v1967, 0.0
      %v1992 = vcombine.high %v1974, 0.0
      %v1993 = vcombine.high %v1983, 0.0
      %v1994 = vcombine.high %v1990, 0.0
      %1996 = vrot.lane.b32.xlu0 %v1923, 16
      %v1997 = vpop.permute.xlu0 %1996
      %2000 = vrot.lane.b32.xlu0 %v1906, 32
      %v2001 = vpop.permute.xlu0 %2000
      %2004 = vrot.lane.b32.xlu0 %v1924, 48
      %v2005 = vpop.permute.xlu0 %2004
      %2008 = vrot.lane.b32.xlu0 %v1915, 64
      %v2009 = vpop.permute.xlu0 %2008
      %2012 = vrot.lane.b32.xlu0 %v1925, 80
      %v2013 = vpop.permute.xlu0 %2012
      %2016 = vrot.lane.b32.xlu0 %v1922, 96
      %v2017 = vpop.permute.xlu0 %2016
      %2020 = vrot.lane.b32.xlu0 %v1926, 112
      %v2021 = vpop.permute.xlu0 %2020
      %2024 = vrot.lane.b32.xlu0 %v1991, 16
      %v2025 = vpop.permute.xlu0 %2024
      %2028 = vrot.lane.b32.xlu0 %v1974, 32
      %v2029 = vpop.permute.xlu0 %2028
      %2032 = vrot.lane.b32.xlu0 %v1992, 48
      %v2033 = vpop.permute.xlu0 %2032
      %2036 = vrot.lane.b32.xlu0 %v1983, 64
      %v2037 = vpop.permute.xlu0 %2036
      %2040 = vrot.lane.b32.xlu0 %v1993, 80
      %v2041 = vpop.permute.xlu0 %2040
      %2044 = vrot.lane.b32.xlu0 %v1990, 96
      %v2045 = vpop.permute.xlu0 %2044
      %2048 = vrot.lane.b32.xlu0 %v1994, 112
      %v2049 = vpop.permute.xlu0 %2048
      %v2051 = vsel %vm824, %v1899, %v1997
      %v2052 = vsel %vm826, %v2051, %v2001
      %v2053 = vsel %vm828, %v2052, %v2005
      %v2054 = vsel %vm830, %v2053, %v2009
      %v2055 = vsel %vm832, %v2054, %v2013
      %v2056 = vsel %vm834, %v2055, %v2017
      %v2057 = vsel %vm836, %v2056, %v2021
      %v2058 = vsel %vm824, %v1967, %v2025
      %v2059 = vsel %vm826, %v2058, %v2029
      %v2060 = vsel %vm828, %v2059, %v2033
      %v2061 = vsel %vm830, %v2060, %v2037
      %v2062 = vsel %vm832, %v2061, %v2041
      %v2063 = vsel %vm834, %v2062, %v2045
      %v2064 = vsel %vm836, %v2063, %v2049
      %v2067 = vrot.slane %v2057, 4
      %v2068 = vrot.slane %v2064, 4
      %2071 = vst [vmem:[#allocation3 + $0x20] sm:$0xf0] %v2067
      %2072 = vst [vmem:[#allocation3 + $0x28] sm:$0xf0] %v2068
      %v2073 = vld [vmem:[#allocation2 + $0x2] sm:$0xff]
      %v2074 = vld [vmem:[#allocation2 + $0xa] sm:$0xff]
      %v2075 = vld [vmem:[#allocation2 + $0x1a] sm:$0xff]
      %v2076 = vld [vmem:[#allocation2 + $0x22] sm:$0xff]
      %v2077 = vld [vmem:[#allocation2 + $0x32] sm:$0xff]
      %v2078 = vld [vmem:[#allocation2 + $0x3a] sm:$0xff]
      %v2079 = vld [vmem:[#allocation2 + $0x4a] sm:$0xff]
      %v2080 = vld [vmem:[#allocation2 + $0x52] sm:$0xff]
      %v2081 = vcombine.low %v2073, %v2077
      %v2082 = vcombine.high %v2073, %v2077
      %v2084 = vunpack.c.l.s4 1983009808
      %v2085 = vunpack.c.0.s8 %v2084
      %v2086 = vlaneseq
      %v2087 = vshrl.u32 %v2086, 7
      %v2088 = vsub.s32 %v2085, %v2087
      %v2089 = vrot.slane %v2081, %v2088
      %v2091 = vunpack.c.l.s4 1983009808
      %v2092 = vunpack.c.0.s8 %v2091
      %v2093 = vlaneseq
      %v2094 = vshrl.u32 %v2093, 7
      %v2095 = vsub.s32 %v2092, %v2094
      %v2096 = vrot.slane %v2082, %v2095
      %v2097 = vcombine.low %v2075, %v2079
      %v2098 = vcombine.high %v2075, %v2079
      %v2100 = vunpack.c.l.s4 1983009808
      %v2101 = vunpack.c.0.s8 %v2100
      %v2102 = vlaneseq
      %v2103 = vshrl.u32 %v2102, 7
      %v2104 = vsub.s32 %v2101, %v2103
      %v2105 = vrot.slane %v2097, %v2104
      %v2107 = vunpack.c.l.s4 1983009808
      %v2108 = vunpack.c.0.s8 %v2107
      %v2109 = vlaneseq
      %v2110 = vshrl.u32 %v2109, 7
      %v2111 = vsub.s32 %v2108, %v2110
      %v2112 = vrot.slane %v2098, %v2111
      %v2113 = vcombine.low %v2089, %v2105
      %v2114 = vcombine.high %v2089, %v2105
      %v2116 = vunpack.c.l.s4 1934713408
      %v2117 = vunpack.c.0.s8 %v2116
      %v2118 = vlaneseq
      %v2119 = vshrl.u32 %v2118, 7
      %v2120 = vsub.s32 %v2117, %v2119
      %v2121 = vrot.slane %v2113, %v2120
      %v2123 = vunpack.c.l.s4 1934713408
      %v2124 = vunpack.c.0.s8 %v2123
      %v2125 = vlaneseq
      %v2126 = vshrl.u32 %v2125, 7
      %v2127 = vsub.s32 %v2124, %v2126
      %v2128 = vrot.slane %v2114, %v2127
      %v2129 = vcombine.low %v2096, %v2112
      %v2130 = vcombine.high %v2096, %v2112
      %v2132 = vunpack.c.l.s4 1934713408
      %v2133 = vunpack.c.0.s8 %v2132
      %v2134 = vlaneseq
      %v2135 = vshrl.u32 %v2134, 7
      %v2136 = vsub.s32 %v2133, %v2135
      %v2137 = vrot.slane %v2129, %v2136
      %v2139 = vunpack.c.l.s4 1934713408
      %v2140 = vunpack.c.0.s8 %v2139
      %v2141 = vlaneseq
      %v2142 = vshrl.u32 %v2141, 7
      %v2143 = vsub.s32 %v2140, %v2142
      %v2144 = vrot.slane %v2130, %v2143
      %v2145 = vcombine.high %v2121, 0.0
      %v2146 = vcombine.high %v2128, 0.0
      %v2147 = vcombine.high %v2137, 0.0
      %v2148 = vcombine.high %v2144, 0.0
      %v2149 = vcombine.low %v2074, %v2078
      %v2150 = vcombine.high %v2074, %v2078
      %v2152 = vunpack.c.l.s4 1983009808
      %v2153 = vunpack.c.0.s8 %v2152
      %v2154 = vlaneseq
      %v2155 = vshrl.u32 %v2154, 7
      %v2156 = vsub.s32 %v2153, %v2155
      %v2157 = vrot.slane %v2149, %v2156
      %v2159 = vunpack.c.l.s4 1983009808
      %v2160 = vunpack.c.0.s8 %v2159
      %v2161 = vlaneseq
      %v2162 = vshrl.u32 %v2161, 7
      %v2163 = vsub.s32 %v2160, %v2162
      %v2164 = vrot.slane %v2150, %v2163
      %v2165 = vcombine.low %v2076, %v2080
      %v2166 = vcombine.high %v2076, %v2080
      %v2168 = vunpack.c.l.s4 1983009808
      %v2169 = vunpack.c.0.s8 %v2168
      %v2170 = vlaneseq
      %v2171 = vshrl.u32 %v2170, 7
      %v2172 = vsub.s32 %v2169, %v2171
      %v2173 = vrot.slane %v2165, %v2172
      %v2175 = vunpack.c.l.s4 1983009808
      %v2176 = vunpack.c.0.s8 %v2175
      %v2177 = vlaneseq
      %v2178 = vshrl.u32 %v2177, 7
      %v2179 = vsub.s32 %v2176, %v2178
      %v2180 = vrot.slane %v2166, %v2179
      %v2181 = vcombine.low %v2157, %v2173
      %v2182 = vcombine.high %v2157, %v2173
      %v2184 = vunpack.c.l.s4 1934713408
      %v2185 = vunpack.c.0.s8 %v2184
      %v2186 = vlaneseq
      %v2187 = vshrl.u32 %v2186, 7
      %v2188 = vsub.s32 %v2185, %v2187
      %v2189 = vrot.slane %v2181, %v2188
      %v2191 = vunpack.c.l.s4 1934713408
      %v2192 = vunpack.c.0.s8 %v2191
      %v2193 = vlaneseq
      %v2194 = vshrl.u32 %v2193, 7
      %v2195 = vsub.s32 %v2192, %v2194
      %v2196 = vrot.slane %v2182, %v2195
      %v2197 = vcombine.low %v2164, %v2180
      %v2198 = vcombine.high %v2164, %v2180
      %v2200 = vunpack.c.l.s4 1934713408
      %v2201 = vunpack.c.0.s8 %v2200
      %v2202 = vlaneseq
      %v2203 = vshrl.u32 %v2202, 7
      %v2204 = vsub.s32 %v2201, %v2203
      %v2205 = vrot.slane %v2197, %v2204
      %v2207 = vunpack.c.l.s4 1934713408
      %v2208 = vunpack.c.0.s8 %v2207
      %v2209 = vlaneseq
      %v2210 = vshrl.u32 %v2209, 7
      %v2211 = vsub.s32 %v2208, %v2210
      %v2212 = vrot.slane %v2198, %v2211
      %v2213 = vcombine.high %v2189, 0.0
      %v2214 = vcombine.high %v2196, 0.0
      %v2215 = vcombine.high %v2205, 0.0
      %v2216 = vcombine.high %v2212, 0.0
      %2218 = vrot.lane.b32.xlu0 %v2145, 16
      %v2219 = vpop.permute.xlu0 %2218
      %2222 = vrot.lane.b32.xlu0 %v2128, 32
      %v2223 = vpop.permute.xlu0 %2222
      %2226 = vrot.lane.b32.xlu0 %v2146, 48
      %v2227 = vpop.permute.xlu0 %2226
      %2230 = vrot.lane.b32.xlu0 %v2137, 64
      %v2231 = vpop.permute.xlu0 %2230
      %2234 = vrot.lane.b32.xlu0 %v2147, 80
      %v2235 = vpop.permute.xlu0 %2234
      %2238 = vrot.lane.b32.xlu0 %v2144, 96
      %v2239 = vpop.permute.xlu0 %2238
      %2242 = vrot.lane.b32.xlu0 %v2148, 112
      %v2243 = vpop.permute.xlu0 %2242
      %2246 = vrot.lane.b32.xlu0 %v2213, 16
      %v2247 = vpop.permute.xlu0 %2246
      %2250 = vrot.lane.b32.xlu0 %v2196, 32
      %v2251 = vpop.permute.xlu0 %2250
      %2254 = vrot.lane.b32.xlu0 %v2214, 48
      %v2255 = vpop.permute.xlu0 %2254
      %2258 = vrot.lane.b32.xlu0 %v2205, 64
      %v2259 = vpop.permute.xlu0 %2258
      %2262 = vrot.lane.b32.xlu0 %v2215, 80
      %v2263 = vpop.permute.xlu0 %2262
      %2266 = vrot.lane.b32.xlu0 %v2212, 96
      %v2267 = vpop.permute.xlu0 %2266
      %2270 = vrot.lane.b32.xlu0 %v2216, 112
      %v2271 = vpop.permute.xlu0 %2270
      %v2273 = vsel %vm824, %v2121, %v2219
      %v2274 = vsel %vm826, %v2273, %v2223
      %v2275 = vsel %vm828, %v2274, %v2227
      %v2276 = vsel %vm830, %v2275, %v2231
      %v2277 = vsel %vm832, %v2276, %v2235
      %v2278 = vsel %vm834, %v2277, %v2239
      %v2279 = vsel %vm836, %v2278, %v2243
      %v2280 = vsel %vm824, %v2189, %v2247
      %v2281 = vsel %vm826, %v2280, %v2251
      %v2282 = vsel %vm828, %v2281, %v2255
      %v2283 = vsel %vm830, %v2282, %v2259
      %v2284 = vsel %vm832, %v2283, %v2263
      %v2285 = vsel %vm834, %v2284, %v2267
      %v2286 = vsel %vm836, %v2285, %v2271
      %2287 = vst [vmem:[#allocation3 + $0x30] sm:$0xf] %v2279
      %2288 = vst [vmem:[#allocation3 + $0x38] sm:$0xf] %v2286
      %v2289 = vld [vmem:[#allocation2 + $0x2] sm:$0xff]
      %v2290 = vld [vmem:[#allocation2 + $0xa] sm:$0xff]
      %v2291 = vld [vmem:[#allocation2 + $0x1a] sm:$0xff]
      %v2292 = vld [vmem:[#allocation2 + $0x22] sm:$0xff]
      %v2293 = vld [vmem:[#allocation2 + $0x32] sm:$0xff]
      %v2294 = vld [vmem:[#allocation2 + $0x3a] sm:$0xff]
      %v2295 = vld [vmem:[#allocation2 + $0x4a] sm:$0xff]
      %v2296 = vld [vmem:[#allocation2 + $0x52] sm:$0xff]
      %2305 = vrot.lane.b32.xlu0 %v2289, 127
      %v2306 = vpop.permute.xlu0 %2305
      %2307 = vrot.lane.b32.xlu0 %v2290, 127
      %v2308 = vpop.permute.xlu0 %2307
      %2309 = vrot.lane.b32.xlu0 %v2291, 127
      %v2310 = vpop.permute.xlu0 %2309
      %2311 = vrot.lane.b32.xlu0 %v2292, 127
      %v2312 = vpop.permute.xlu0 %2311
      %2313 = vrot.lane.b32.xlu0 %v2293, 127
      %v2314 = vpop.permute.xlu0 %2313
      %2315 = vrot.lane.b32.xlu0 %v2294, 127
      %v2316 = vpop.permute.xlu0 %2315
      %2317 = vrot.lane.b32.xlu0 %v2295, 127
      %v2318 = vpop.permute.xlu0 %2317
      %2319 = vrot.lane.b32.xlu0 %v2296, 127
      %v2320 = vpop.permute.xlu0 %2319
      %v2329 = vcombine.low %v2306, %v2314
      %v2330 = vcombine.high %v2306, %v2314
      %v2332 = vunpack.c.l.s4 1983009808
      %v2333 = vunpack.c.0.s8 %v2332
      %v2334 = vlaneseq
      %v2335 = vshrl.u32 %v2334, 7
      %v2336 = vsub.s32 %v2333, %v2335
      %v2337 = vrot.slane %v2329, %v2336
      %v2339 = vunpack.c.l.s4 1983009808
      %v2340 = vunpack.c.0.s8 %v2339
      %v2341 = vlaneseq
      %v2342 = vshrl.u32 %v2341, 7
      %v2343 = vsub.s32 %v2340, %v2342
      %v2344 = vrot.slane %v2330, %v2343
      %v2345 = vcombine.low %v2310, %v2318
      %v2346 = vcombine.high %v2310, %v2318
      %v2348 = vunpack.c.l.s4 1983009808
      %v2349 = vunpack.c.0.s8 %v2348
      %v2350 = vlaneseq
      %v2351 = vshrl.u32 %v2350, 7
      %v2352 = vsub.s32 %v2349, %v2351
      %v2353 = vrot.slane %v2345, %v2352
      %v2355 = vunpack.c.l.s4 1983009808
      %v2356 = vunpack.c.0.s8 %v2355
      %v2357 = vlaneseq
      %v2358 = vshrl.u32 %v2357, 7
      %v2359 = vsub.s32 %v2356, %v2358
      %v2360 = vrot.slane %v2346, %v2359
      %v2361 = vcombine.low %v2337, %v2353
      %v2362 = vcombine.high %v2337, %v2353
      %v2364 = vunpack.c.l.s4 1934713408
      %v2365 = vunpack.c.0.s8 %v2364
      %v2366 = vlaneseq
      %v2367 = vshrl.u32 %v2366, 7
      %v2368 = vsub.s32 %v2365, %v2367
      %v2369 = vrot.slane %v2361, %v2368
      %v2371 = vunpack.c.l.s4 1934713408
      %v2372 = vunpack.c.0.s8 %v2371
      %v2373 = vlaneseq
      %v2374 = vshrl.u32 %v2373, 7
      %v2375 = vsub.s32 %v2372, %v2374
      %v2376 = vrot.slane %v2362, %v2375
      %v2377 = vcombine.low %v2344, %v2360
      %v2378 = vcombine.high %v2344, %v2360
      %v2380 = vunpack.c.l.s4 1934713408
      %v2381 = vunpack.c.0.s8 %v2380
      %v2382 = vlaneseq
      %v2383 = vshrl.u32 %v2382, 7
      %v2384 = vsub.s32 %v2381, %v2383
      %v2385 = vrot.slane %v2377, %v2384
      %v2387 = vunpack.c.l.s4 1934713408
      %v2388 = vunpack.c.0.s8 %v2387
      %v2389 = vlaneseq
      %v2390 = vshrl.u32 %v2389, 7
      %v2391 = vsub.s32 %v2388, %v2390
      %v2392 = vrot.slane %v2378, %v2391
      %v2393 = vcombine.high %v2369, 0.0
      %v2394 = vcombine.high %v2376, 0.0
      %v2395 = vcombine.high %v2385, 0.0
      %v2396 = vcombine.high %v2392, 0.0
      %v2397 = vcombine.low %v2308, %v2316
      %v2398 = vcombine.high %v2308, %v2316
      %v2400 = vunpack.c.l.s4 1983009808
      %v2401 = vunpack.c.0.s8 %v2400
      %v2402 = vlaneseq
      %v2403 = vshrl.u32 %v2402, 7
      %v2404 = vsub.s32 %v2401, %v2403
      %v2405 = vrot.slane %v2397, %v2404
      %v2407 = vunpack.c.l.s4 1983009808
      %v2408 = vunpack.c.0.s8 %v2407
      %v2409 = vlaneseq
      %v2410 = vshrl.u32 %v2409, 7
      %v2411 = vsub.s32 %v2408, %v2410
      %v2412 = vrot.slane %v2398, %v2411
      %v2413 = vcombine.low %v2312, %v2320
      %v2414 = vcombine.high %v2312, %v2320
      %v2416 = vunpack.c.l.s4 1983009808
      %v2417 = vunpack.c.0.s8 %v2416
      %v2418 = vlaneseq
      %v2419 = vshrl.u32 %v2418, 7
      %v2420 = vsub.s32 %v2417, %v2419
      %v2421 = vrot.slane %v2413, %v2420
      %v2423 = vunpack.c.l.s4 1983009808
      %v2424 = vunpack.c.0.s8 %v2423
      %v2425 = vlaneseq
      %v2426 = vshrl.u32 %v2425, 7
      %v2427 = vsub.s32 %v2424, %v2426
      %v2428 = vrot.slane %v2414, %v2427
      %v2429 = vcombine.low %v2405, %v2421
      %v2430 = vcombine.high %v2405, %v2421
      %v2432 = vunpack.c.l.s4 1934713408
      %v2433 = vunpack.c.0.s8 %v2432
      %v2434 = vlaneseq
      %v2435 = vshrl.u32 %v2434, 7
      %v2436 = vsub.s32 %v2433, %v2435
      %v2437 = vrot.slane %v2429, %v2436
      %v2439 = vunpack.c.l.s4 1934713408
      %v2440 = vunpack.c.0.s8 %v2439
      %v2441 = vlaneseq
      %v2442 = vshrl.u32 %v2441, 7
      %v2443 = vsub.s32 %v2440, %v2442
      %v2444 = vrot.slane %v2430, %v2443
      %v2445 = vcombine.low %v2412, %v2428
      %v2446 = vcombine.high %v2412, %v2428
      %v2448 = vunpack.c.l.s4 1934713408
      %v2449 = vunpack.c.0.s8 %v2448
      %v2450 = vlaneseq
      %v2451 = vshrl.u32 %v2450, 7
      %v2452 = vsub.s32 %v2449, %v2451
      %v2453 = vrot.slane %v2445, %v2452
      %v2455 = vunpack.c.l.s4 1934713408
      %v2456 = vunpack.c.0.s8 %v2455
      %v2457 = vlaneseq
      %v2458 = vshrl.u32 %v2457, 7
      %v2459 = vsub.s32 %v2456, %v2458
      %v2460 = vrot.slane %v2446, %v2459
      %v2461 = vcombine.high %v2437, 0.0
      %v2462 = vcombine.high %v2444, 0.0
      %v2463 = vcombine.high %v2453, 0.0
      %v2464 = vcombine.high %v2460, 0.0
      %2466 = vrot.lane.b32.xlu0 %v2393, 16
      %v2467 = vpop.permute.xlu0 %2466
      %2470 = vrot.lane.b32.xlu0 %v2376, 32
      %v2471 = vpop.permute.xlu0 %2470
      %2474 = vrot.lane.b32.xlu0 %v2394, 48
      %v2475 = vpop.permute.xlu0 %2474
      %2478 = vrot.lane.b32.xlu0 %v2385, 64
      %v2479 = vpop.permute.xlu0 %2478
      %2482 = vrot.lane.b32.xlu0 %v2395, 80
      %v2483 = vpop.permute.xlu0 %2482
      %2486 = vrot.lane.b32.xlu0 %v2392, 96
      %v2487 = vpop.permute.xlu0 %2486
      %2490 = vrot.lane.b32.xlu0 %v2396, 112
      %v2491 = vpop.permute.xlu0 %2490
      %2494 = vrot.lane.b32.xlu0 %v2461, 16
      %v2495 = vpop.permute.xlu0 %2494
      %2498 = vrot.lane.b32.xlu0 %v2444, 32
      %v2499 = vpop.permute.xlu0 %2498
      %2502 = vrot.lane.b32.xlu0 %v2462, 48
      %v2503 = vpop.permute.xlu0 %2502
      %2506 = vrot.lane.b32.xlu0 %v2453, 64
      %v2507 = vpop.permute.xlu0 %2506
      %2510 = vrot.lane.b32.xlu0 %v2463, 80
      %v2511 = vpop.permute.xlu0 %2510
      %2514 = vrot.lane.b32.xlu0 %v2460, 96
      %v2515 = vpop.permute.xlu0 %2514
      %2518 = vrot.lane.b32.xlu0 %v2464, 112
      %v2519 = vpop.permute.xlu0 %2518
      %v2521 = vsel %vm824, %v2369, %v2467
      %v2522 = vsel %vm826, %v2521, %v2471
      %v2523 = vsel %vm828, %v2522, %v2475
      %v2524 = vsel %vm830, %v2523, %v2479
      %v2525 = vsel %vm832, %v2524, %v2483
      %v2526 = vsel %vm834, %v2525, %v2487
      %v2527 = vsel %vm836, %v2526, %v2491
      %v2528 = vsel %vm824, %v2437, %v2495
      %v2529 = vsel %vm826, %v2528, %v2499
      %v2530 = vsel %vm828, %v2529, %v2503
      %v2531 = vsel %vm830, %v2530, %v2507
      %v2532 = vsel %vm832, %v2531, %v2511
      %v2533 = vsel %vm834, %v2532, %v2515
      %v2534 = vsel %vm836, %v2533, %v2519
      %v2537 = vrot.slane %v2527, 4
      %v2538 = vrot.slane %v2534, 4
      %2541 = vst [vmem:[#allocation3 + $0x30] sm:$0xf0] %v2537
      %2542 = vst [vmem:[#allocation3 + $0x38] sm:$0xf0] %v2538
      %v2543 = vld [vmem:[#allocation2 + $0x2] sm:$0xff]
      %v2544 = vld [vmem:[#allocation2 + $0xa] sm:$0xff]
      %v2545 = vld [vmem:[#allocation2 + $0x1a] sm:$0xff]
      %v2546 = vld [vmem:[#allocation2 + $0x22] sm:$0xff]
      %v2547 = vld [vmem:[#allocation2 + $0x32] sm:$0xff]
      %v2548 = vld [vmem:[#allocation2 + $0x3a] sm:$0xff]
      %v2549 = vld [vmem:[#allocation2 + $0x4a] sm:$0xff]
      %v2550 = vld [vmem:[#allocation2 + $0x52] sm:$0xff]
      %2559 = vrot.lane.b32.xlu0 %v2543, 126
      %v2560 = vpop.permute.xlu0 %2559
      %2561 = vrot.lane.b32.xlu0 %v2544, 126
      %v2562 = vpop.permute.xlu0 %2561
      %2563 = vrot.lane.b32.xlu0 %v2545, 126
      %v2564 = vpop.permute.xlu0 %2563
      %2565 = vrot.lane.b32.xlu0 %v2546, 126
      %v2566 = vpop.permute.xlu0 %2565
      %2567 = vrot.lane.b32.xlu0 %v2547, 126
      %v2568 = vpop.permute.xlu0 %2567
      %2569 = vrot.lane.b32.xlu0 %v2548, 126
      %v2570 = vpop.permute.xlu0 %2569
      %2571 = vrot.lane.b32.xlu0 %v2549, 126
      %v2572 = vpop.permute.xlu0 %2571
      %2573 = vrot.lane.b32.xlu0 %v2550, 126
      %v2574 = vpop.permute.xlu0 %2573
      %v2583 = vcombine.low %v2560, %v2568
      %v2584 = vcombine.high %v2560, %v2568
      %v2586 = vunpack.c.l.s4 1983009808
      %v2587 = vunpack.c.0.s8 %v2586
      %v2588 = vlaneseq
      %v2589 = vshrl.u32 %v2588, 7
      %v2590 = vsub.s32 %v2587, %v2589
      %v2591 = vrot.slane %v2583, %v2590
      %v2593 = vunpack.c.l.s4 1983009808
      %v2594 = vunpack.c.0.s8 %v2593
      %v2595 = vlaneseq
      %v2596 = vshrl.u32 %v2595, 7
      %v2597 = vsub.s32 %v2594, %v2596
      %v2598 = vrot.slane %v2584, %v2597
      %v2599 = vcombine.low %v2564, %v2572
      %v2600 = vcombine.high %v2564, %v2572
      %v2602 = vunpack.c.l.s4 1983009808
      %v2603 = vunpack.c.0.s8 %v2602
      %v2604 = vlaneseq
      %v2605 = vshrl.u32 %v2604, 7
      %v2606 = vsub.s32 %v2603, %v2605
      %v2607 = vrot.slane %v2599, %v2606
      %v2609 = vunpack.c.l.s4 1983009808
      %v2610 = vunpack.c.0.s8 %v2609
      %v2611 = vlaneseq
      %v2612 = vshrl.u32 %v2611, 7
      %v2613 = vsub.s32 %v2610, %v2612
      %v2614 = vrot.slane %v2600, %v2613
      %v2615 = vcombine.low %v2591, %v2607
      %v2616 = vcombine.high %v2591, %v2607
      %v2618 = vunpack.c.l.s4 1934713408
      %v2619 = vunpack.c.0.s8 %v2618
      %v2620 = vlaneseq
      %v2621 = vshrl.u32 %v2620, 7
      %v2622 = vsub.s32 %v2619, %v2621
      %v2623 = vrot.slane %v2615, %v2622
      %v2625 = vunpack.c.l.s4 1934713408
      %v2626 = vunpack.c.0.s8 %v2625
      %v2627 = vlaneseq
      %v2628 = vshrl.u32 %v2627, 7
      %v2629 = vsub.s32 %v2626, %v2628
      %v2630 = vrot.slane %v2616, %v2629
      %v2631 = vcombine.low %v2598, %v2614
      %v2632 = vcombine.high %v2598, %v2614
      %v2634 = vunpack.c.l.s4 1934713408
      %v2635 = vunpack.c.0.s8 %v2634
      %v2636 = vlaneseq
      %v2637 = vshrl.u32 %v2636, 7
      %v2638 = vsub.s32 %v2635, %v2637
      %v2639 = vrot.slane %v2631, %v2638
      %v2641 = vunpack.c.l.s4 1934713408
      %v2642 = vunpack.c.0.s8 %v2641
      %v2643 = vlaneseq
      %v2644 = vshrl.u32 %v2643, 7
      %v2645 = vsub.s32 %v2642, %v2644
      %v2646 = vrot.slane %v2632, %v2645
      %v2647 = vcombine.high %v2623, 0.0
      %v2648 = vcombine.high %v2630, 0.0
      %v2649 = vcombine.high %v2639, 0.0
      %v2650 = vcombine.high %v2646, 0.0
      %v2651 = vcombine.low %v2562, %v2570
      %v2652 = vcombine.high %v2562, %v2570
      %v2654 = vunpack.c.l.s4 1983009808
      %v2655 = vunpack.c.0.s8 %v2654
      %v2656 = vlaneseq
      %v2657 = vshrl.u32 %v2656, 7
      %v2658 = vsub.s32 %v2655, %v2657
      %v2659 = vrot.slane %v2651, %v2658
      %v2661 = vunpack.c.l.s4 1983009808
      %v2662 = vunpack.c.0.s8 %v2661
      %v2663 = vlaneseq
      %v2664 = vshrl.u32 %v2663, 7
      %v2665 = vsub.s32 %v2662, %v2664
      %v2666 = vrot.slane %v2652, %v2665
      %v2667 = vcombine.low %v2566, %v2574
      %v2668 = vcombine.high %v2566, %v2574
      %v2670 = vunpack.c.l.s4 1983009808
      %v2671 = vunpack.c.0.s8 %v2670
      %v2672 = vlaneseq
      %v2673 = vshrl.u32 %v2672, 7
      %v2674 = vsub.s32 %v2671, %v2673
      %v2675 = vrot.slane %v2667, %v2674
      %v2677 = vunpack.c.l.s4 1983009808
      %v2678 = vunpack.c.0.s8 %v2677
      %v2679 = vlaneseq
      %v2680 = vshrl.u32 %v2679, 7
      %v2681 = vsub.s32 %v2678, %v2680
      %v2682 = vrot.slane %v2668, %v2681
      %v2683 = vcombine.low %v2659, %v2675
      %v2684 = vcombine.high %v2659, %v2675
      %v2686 = vunpack.c.l.s4 1934713408
      %v2687 = vunpack.c.0.s8 %v2686
      %v2688 = vlaneseq
      %v2689 = vshrl.u32 %v2688, 7
      %v2690 = vsub.s32 %v2687, %v2689
      %v2691 = vrot.slane %v2683, %v2690
      %v2693 = vunpack.c.l.s4 1934713408
      %v2694 = vunpack.c.0.s8 %v2693
      %v2695 = vlaneseq
      %v2696 = vshrl.u32 %v2695, 7
      %v2697 = vsub.s32 %v2694, %v2696
      %v2698 = vrot.slane %v2684, %v2697
      %v2699 = vcombine.low %v2666, %v2682
      %v2700 = vcombine.high %v2666, %v2682
      %v2702 = vunpack.c.l.s4 1934713408
      %v2703 = vunpack.c.0.s8 %v2702
      %v2704 = vlaneseq
      %v2705 = vshrl.u32 %v2704, 7
      %v2706 = vsub.s32 %v2703, %v2705
      %v2707 = vrot.slane %v2699, %v2706
      %v2709 = vunpack.c.l.s4 1934713408
      %v2710 = vunpack.c.0.s8 %v2709
      %v2711 = vlaneseq
      %v2712 = vshrl.u32 %v2711, 7
      %v2713 = vsub.s32 %v2710, %v2712
      %v2714 = vrot.slane %v2700, %v2713
      %v2715 = vcombine.high %v2691, 0.0
      %v2716 = vcombine.high %v2698, 0.0
      %v2717 = vcombine.high %v2707, 0.0
      %v2718 = vcombine.high %v2714, 0.0
      %2720 = vrot.lane.b32.xlu0 %v2647, 16
      %v2721 = vpop.permute.xlu0 %2720
      %2724 = vrot.lane.b32.xlu0 %v2630, 32
      %v2725 = vpop.permute.xlu0 %2724
      %2728 = vrot.lane.b32.xlu0 %v2648, 48
      %v2729 = vpop.permute.xlu0 %2728
      %2732 = vrot.lane.b32.xlu0 %v2639, 64
      %v2733 = vpop.permute.xlu0 %2732
      %2736 = vrot.lane.b32.xlu0 %v2649, 80
      %v2737 = vpop.permute.xlu0 %2736
      %2740 = vrot.lane.b32.xlu0 %v2646, 96
      %v2741 = vpop.permute.xlu0 %2740
      %2744 = vrot.lane.b32.xlu0 %v2650, 112
      %v2745 = vpop.permute.xlu0 %2744
      %2748 = vrot.lane.b32.xlu0 %v2715, 16
      %v2749 = vpop.permute.xlu0 %2748
      %2752 = vrot.lane.b32.xlu0 %v2698, 32
      %v2753 = vpop.permute.xlu0 %2752
      %2756 = vrot.lane.b32.xlu0 %v2716, 48
      %v2757 = vpop.permute.xlu0 %2756
      %2760 = vrot.lane.b32.xlu0 %v2707, 64
      %v2761 = vpop.permute.xlu0 %2760
      %2764 = vrot.lane.b32.xlu0 %v2717, 80
      %v2765 = vpop.permute.xlu0 %2764
      %2768 = vrot.lane.b32.xlu0 %v2714, 96
      %v2769 = vpop.permute.xlu0 %2768
      %2772 = vrot.lane.b32.xlu0 %v2718, 112
      %v2773 = vpop.permute.xlu0 %2772
      %v2775 = vsel %vm824, %v2623, %v2721
      %v2776 = vsel %vm826, %v2775, %v2725
      %v2777 = vsel %vm828, %v2776, %v2729
      %v2778 = vsel %vm830, %v2777, %v2733
      %v2779 = vsel %vm832, %v2778, %v2737
      %v2780 = vsel %vm834, %v2779, %v2741
      %v2781 = vsel %vm836, %v2780, %v2745
      %v2782 = vsel %vm824, %v2691, %v2749
      %v2783 = vsel %vm826, %v2782, %v2753
      %v2784 = vsel %vm828, %v2783, %v2757
      %v2785 = vsel %vm830, %v2784, %v2761
      %v2786 = vsel %vm832, %v2785, %v2765
      %v2787 = vsel %vm834, %v2786, %v2769
      %v2788 = vsel %vm836, %v2787, %v2773
      %2789 = vst [vmem:[#allocation3 + $0x40] sm:$0xf] %v2781
      %2790 = vst [vmem:[#allocation3 + $0x48] sm:$0xf] %v2788
      %v2791 = vld [vmem:[%s1] sm:$0xf]
      %v2792 = vld [vmem:[#allocation3] sm:$0xff]
      %v2793 = vld [vmem:[#allocation3 + $0x8] sm:$0xff]
      %v2794 = vld [vmem:[#allocation3 + $0x10] sm:$0xff]
      %v2795 = vld [vmem:[#allocation3 + $0x18] sm:$0xff]
      %v2796 = vld [vmem:[#allocation3 + $0x20] sm:$0xff]
      %v2797 = vld [vmem:[#allocation3 + $0x28] sm:$0xff]
      %v2798 = vld [vmem:[#allocation3 + $0x30] sm:$0xff]
      %v2799 = vld [vmem:[#allocation3 + $0x38] sm:$0xff]
      %v2800 = vld [vmem:[#allocation3 + $0x40] sm:$0x1f]
      %v2801 = vld [vmem:[#allocation3 + $0x48] sm:$0x1f]
      %vm2802 = vcmask 302080
      %v2804 = vsel %vm2802, %v2791, 0
      %vm2806 = vcmask 1044480
      %v2808 = vsel %vm2806, %v2800, 0
      %v2811 = vsel %vm2806, %v2801, 0
      %2813 = vmatprep.subr.mxu0 0.0
      %2814 = vmatpush1.msra.mxu0 0.0
      %2815 = vmatprep.subr.mxu0 0.0
      %2816 = vmatpush1.msra.mxu0 0.0
      %2817 = vmatprep.subr.mxu0 0.0
      %2818 = vmatpush1.msra.mxu0 0.0
      %2819 = vmatprep.subr.mxu0 0.0
      %2820 = vmatpush1.msra.mxu0 0.0
      %2821 = vmatprep.subr.mxu0 0.0
      %2822 = vmatpush1.msra.mxu0 0.0
      %2823 = vmatprep.subr.mxu0 0.0
      %2824 = vmatpush1.msra.mxu0 0.0
      %2825 = vmatprep.subr.mxu0 0.0
      %2826 = vmatpush1.msra.mxu0 0.0
      %2827 = vmatprep.subr.mxu0 0.0
      %2828 = vmatpush1.msra.mxu0 0.0
      %2829 = vmatprep.subr.mxu0 0.0
      %2830 = vmatpush1.msra.mxu0 0.0
      %2831 = vmatprep.subr.mxu0 0.0
      %2832 = vmatpush1.msra.mxu0 0.0
      %2833 = vmatprep.subr.mxu0 0.0
      %2834 = vmatpush1.msra.mxu0 0.0
      %2835 = vmatprep.subr.mxu0 %v2811
      %2836 = vmatpush1.msra.mxu0 %v2808
      %2837 = vmatprep.subr.mxu0 %v2799
      %2838 = vmatpush1.msra.mxu0 %v2798
      %2839 = vmatprep.subr.mxu0 %v2797
      %2840 = vmatpush1.msra.mxu0 %v2796
      %2841 = vmatprep.subr.mxu0 %v2795
      %2842 = vmatpush1.msra.mxu0 %v2794
      %2843 = vmatprep.subr.mxu0 %v2793
      %2844 = vmatpush1.msra.mxu0 %v2792
      %2845 = vmatprep.subr.mxu0 0.0
      %2846 = vmatpush2.msra.mxu0 0.0
      %2847 = vmatprep.subr.mxu0 0.0
      %2848 = vmatpush2.msra.mxu0 0.0
      %2849 = vmatprep.subr.mxu0 0.0
      %2850 = vmatpush2.msra.mxu0 0.0
      %2851 = vmatprep.subr.mxu0 0.0
      %2852 = vmatpush2.msra.mxu0 0.0
      %2853 = vmatprep.subr.mxu0 0.0
      %2854 = vmatpush2.msra.mxu0 0.0
      %2855 = vmatprep.subr.mxu0 0.0
      %2856 = vmatpush2.msra.mxu0 0.0
      %2857 = vmatprep.subr.mxu0 0.0
      %2858 = vmatpush2.msra.mxu0 0.0
      %2859 = vmatprep.subr.mxu0 0.0
      %2860 = vmatpush2.msra.mxu0 0.0
      %2861 = vmatprep.subr.mxu0 0.0
      %2862 = vmatpush2.msra.mxu0 0.0
      %2863 = vmatprep.subr.mxu0 0.0
      %2864 = vmatpush2.msra.mxu0 0.0
      %2865 = vmatprep.subr.mxu0 0.0
      %2866 = vmatpush2.msra.mxu0 0.0
      %2867 = vmatprep.subr.mxu0 0.0
      %2868 = vmatpush2.msra.mxu0 0.0
      %2869 = vmatprep.subr.mxu0 0.0
      %2870 = vmatpush2.msra.mxu0 0.0
      %2871 = vmatprep.subr.mxu0 0.0
      %2872 = vmatpush2.msra.mxu0 0.0
      %2873 = vmatprep.subr.mxu0 0.0
      %2874 = vmatpush2.msra.mxu0 0.0
      %2875 = vmatprep.subr.mxu0 0.0
      %2876 = vmatpush2.msra.mxu0 0.0
      %2877 = vmatprep.mubr.f32.mxu0 0.0
      %2878 = vmatmul.mubr.f32.gmra.mxu0 %v2804
      %v2879 = vpop.f32.mrf.mxu0
      %v2880 = vadd.f32 0.0, %v2879
      %v2881 = vpop.f32.mrf.mxu0
      %v2882 = vadd.f32 0.0, %v2881
      %2883 = vdwg.mxu0
      %vm2884 = vcmask 1043456
      %v2885 = vsel %vm2884, %v2880, 0.0
      %v2886 = vsel %vm2884, %v2882, 0.0
      %v2887 = vadd.f32 %v2885, %v2886
      %2888 = vadd.xlane.f32.xlu0 %v2887
      %v2889 = vpop.xlane.xlu0 %2888
      %v2890 = vrcp.pop 256.0
      %v2891 = vmul.f32 %v2889, %v2890
      %v2892 = vsub.f32 %v2880, %v2891
      %v2893 = vsub.f32 %v2882, %v2891
      %v2894 = vmul.f32 %v2892, %v2892
      %v2895 = vmul.f32 %v2893, %v2893
      %v2896 = vsel %vm2884, %v2894, 0.0
      %v2897 = vsel %vm2884, %v2895, 0.0
      %v2898 = vadd.f32 %v2896, %v2897
      %2899 = vadd.xlane.f32.xlu0 %v2898
      %v2900 = vpop.xlane.xlu0 %2899
      %v2901 = vmul.f32 %v2900, %v2890
      %v2902 = vadd.f32 %v2901, 1e-05
      %v2903 = vrsqrt.pop %v2902
      %v2904 = vmul.f32 %v2892, %v2903
      %v2905 = vmul.f32 %v2893, %v2903
      %v2906 = vmax.f32 %v2904, 0.0
      %v2907 = vmax.f32 %v2905, 0.0
      %2909 = vrot.lane.b32.xlu0 %v2906, 112
      %v2910 = vpop.permute.xlu0 %2909
      %2912 = vrot.lane.b32.xlu0 %v2906, 96
      %v2913 = vpop.permute.xlu0 %2912
      %2915 = vrot.lane.b32.xlu0 %v2906, 80
      %v2916 = vpop.permute.xlu0 %2915
      %2918 = vrot.lane.b32.xlu0 %v2906, 64
      %v2919 = vpop.permute.xlu0 %2918
      %2921 = vrot.lane.b32.xlu0 %v2906, 48
      %v2922 = vpop.permute.xlu0 %2921
      %2924 = vrot.lane.b32.xlu0 %v2906, 32
      %v2925 = vpop.permute.xlu0 %2924
      %2927 = vrot.lane.b32.xlu0 %v2906, 16
      %v2928 = vpop.permute.xlu0 %2927
      %2931 = vrot.lane.b32.xlu0 %v2907, 112
      %v2932 = vpop.permute.xlu0 %2931
      %2934 = vrot.lane.b32.xlu0 %v2907, 96
      %v2935 = vpop.permute.xlu0 %2934
      %2937 = vrot.lane.b32.xlu0 %v2907, 80
      %v2938 = vpop.permute.xlu0 %2937
      %2940 = vrot.lane.b32.xlu0 %v2907, 64
      %v2941 = vpop.permute.xlu0 %2940
      %2943 = vrot.lane.b32.xlu0 %v2907, 48
      %v2944 = vpop.permute.xlu0 %2943
      %2946 = vrot.lane.b32.xlu0 %v2907, 32
      %v2947 = vpop.permute.xlu0 %2946
      %2949 = vrot.lane.b32.xlu0 %v2907, 16
      %v2950 = vpop.permute.xlu0 %2949
      %v2952 = vcombine.low %v2906, %v2913
      %v2954 = vunpack.c.l.s4 1983009808
      %v2955 = vunpack.c.0.s8 %v2954
      %v2956 = vlaneseq
      %v2957 = vshrl.u32 %v2956, 7
      %v2958 = vsub.s32 %v2955, %v2957
      %v2959 = vrot.slane %v2952, %v2958
      %v2960 = vcombine.low %v2910, %v2916
      %v2962 = vunpack.c.l.s4 1983009808
      %v2963 = vunpack.c.0.s8 %v2962
      %v2964 = vlaneseq
      %v2965 = vshrl.u32 %v2964, 7
      %v2966 = vsub.s32 %v2963, %v2965
      %v2967 = vrot.slane %v2960, %v2966
      %v2968 = vcombine.low %v2919, %v2925
      %v2970 = vunpack.c.l.s4 1983009808
      %v2971 = vunpack.c.0.s8 %v2970
      %v2972 = vlaneseq
      %v2973 = vshrl.u32 %v2972, 7
      %v2974 = vsub.s32 %v2971, %v2973
      %v2975 = vrot.slane %v2968, %v2974
      %v2976 = vcombine.low %v2922, %v2928
      %v2978 = vunpack.c.l.s4 1983009808
      %v2979 = vunpack.c.0.s8 %v2978
      %v2980 = vlaneseq
      %v2981 = vshrl.u32 %v2980, 7
      %v2982 = vsub.s32 %v2979, %v2981
      %v2983 = vrot.slane %v2976, %v2982
      %v2984 = vcombine.low %v2959, %v2967
      %v2985 = vcombine.high %v2959, %v2967
      %v2987 = vunpack.c.l.s4 1934713408
      %v2988 = vunpack.c.0.s8 %v2987
      %v2989 = vlaneseq
      %v2990 = vshrl.u32 %v2989, 7
      %v2991 = vsub.s32 %v2988, %v2990
      %v2992 = vrot.slane %v2984, %v2991
      %v2994 = vunpack.c.l.s4 1934713408
      %v2995 = vunpack.c.0.s8 %v2994
      %v2996 = vlaneseq
      %v2997 = vshrl.u32 %v2996, 7
      %v2998 = vsub.s32 %v2995, %v2997
      %v2999 = vrot.slane %v2985, %v2998
      %v3000 = vcombine.low %v2975, %v2983
      %v3001 = vcombine.high %v2975, %v2983
      %v3003 = vunpack.c.l.s4 1934713408
      %v3004 = vunpack.c.0.s8 %v3003
      %v3005 = vlaneseq
      %v3006 = vshrl.u32 %v3005, 7
      %v3007 = vsub.s32 %v3004, %v3006
      %v3008 = vrot.slane %v3000, %v3007
      %v3010 = vunpack.c.l.s4 1934713408
      %v3011 = vunpack.c.0.s8 %v3010
      %v3012 = vlaneseq
      %v3013 = vshrl.u32 %v3012, 7
      %v3014 = vsub.s32 %v3011, %v3013
      %v3015 = vrot.slane %v3001, %v3014
      %v3016 = vcombine.low %v2992, %v3008
      %v3017 = vcombine.high %v2992, %v3008
      %v3018 = vcombine.low %v2999, %v3015
      %v3019 = vcombine.high %v2999, %v3015
      %v3020 = vcombine.low %v2907, %v2935
      %v3022 = vunpack.c.l.s4 1983009808
      %v3023 = vunpack.c.0.s8 %v3022
      %v3024 = vlaneseq
      %v3025 = vshrl.u32 %v3024, 7
      %v3026 = vsub.s32 %v3023, %v3025
      %v3027 = vrot.slane %v3020, %v3026
      %v3028 = vcombine.low %v2932, %v2938
      %v3030 = vunpack.c.l.s4 1983009808
      %v3031 = vunpack.c.0.s8 %v3030
      %v3032 = vlaneseq
      %v3033 = vshrl.u32 %v3032, 7
      %v3034 = vsub.s32 %v3031, %v3033
      %v3035 = vrot.slane %v3028, %v3034
      %v3036 = vcombine.low %v2941, %v2947
      %v3038 = vunpack.c.l.s4 1983009808
      %v3039 = vunpack.c.0.s8 %v3038
      %v3040 = vlaneseq
      %v3041 = vshrl.u32 %v3040, 7
      %v3042 = vsub.s32 %v3039, %v3041
      %v3043 = vrot.slane %v3036, %v3042
      %v3044 = vcombine.low %v2944, %v2950
      %v3046 = vunpack.c.l.s4 1983009808
      %v3047 = vunpack.c.0.s8 %v3046
      %v3048 = vlaneseq
      %v3049 = vshrl.u32 %v3048, 7
      %v3050 = vsub.s32 %v3047, %v3049
      %v3051 = vrot.slane %v3044, %v3050
      %v3052 = vcombine.low %v3027, %v3035
      %v3053 = vcombine.high %v3027, %v3035
      %v3055 = vunpack.c.l.s4 1934713408
      %v3056 = vunpack.c.0.s8 %v3055
      %v3057 = vlaneseq
      %v3058 = vshrl.u32 %v3057, 7
      %v3059 = vsub.s32 %v3056, %v3058
      %v3060 = vrot.slane %v3052, %v3059
      %v3062 = vunpack.c.l.s4 1934713408
      %v3063 = vunpack.c.0.s8 %v3062
      %v3064 = vlaneseq
      %v3065 = vshrl.u32 %v3064, 7
      %v3066 = vsub.s32 %v3063, %v3065
      %v3067 = vrot.slane %v3053, %v3066
      %v3068 = vcombine.low %v3043, %v3051
      %v3069 = vcombine.high %v3043, %v3051
      %v3071 = vunpack.c.l.s4 1934713408
      %v3072 = vunpack.c.0.s8 %v3071
      %v3073 = vlaneseq
      %v3074 = vshrl.u32 %v3073, 7
      %v3075 = vsub.s32 %v3072, %v3074
      %v3076 = vrot.slane %v3068, %v3075
      %v3078 = vunpack.c.l.s4 1934713408
      %v3079 = vunpack.c.0.s8 %v3078
      %v3080 = vlaneseq
      %v3081 = vshrl.u32 %v3080, 7
      %v3082 = vsub.s32 %v3079, %v3081
      %v3083 = vrot.slane %v3069, %v3082
      %v3084 = vcombine.low %v3060, %v3076
      %v3085 = vcombine.high %v3060, %v3076
      %v3086 = vcombine.low %v3067, %v3083
      %v3087 = vcombine.high %v3067, %v3083
      %3096 = vrot.lane.b32.xlu0 %v3016, 1
      %v3097 = vpop.permute.xlu0 %3096
      %3098 = vrot.lane.b32.xlu0 %v3084, 1
      %v3099 = vpop.permute.xlu0 %3098
      %3100 = vrot.lane.b32.xlu0 %v3017, 1
      %v3101 = vpop.permute.xlu0 %3100
      %3102 = vrot.lane.b32.xlu0 %v3085, 1
      %v3103 = vpop.permute.xlu0 %3102
      %3104 = vrot.lane.b32.xlu0 %v3018, 1
      %v3105 = vpop.permute.xlu0 %3104
      %3106 = vrot.lane.b32.xlu0 %v3086, 1
      %v3107 = vpop.permute.xlu0 %3106
      %3108 = vrot.lane.b32.xlu0 %v3019, 1
      %v3109 = vpop.permute.xlu0 %3108
      %3110 = vrot.lane.b32.xlu0 %v3087, 1
      %v3111 = vpop.permute.xlu0 %3110
      %3120 = vst.msk [vmem:[#allocation2 + $0x1] sm:$0xff] %vm401, %v3097
      %3121 = vst.msk [vmem:[#allocation2 + $0x9] sm:$0xff] %vm401, %v3099
      %3122 = vst.msk [vmem:[#allocation2 + $0x19] sm:$0xff] %vm401, %v3101
      %3123 = vst.msk [vmem:[#allocation2 + $0x21] sm:$0xff] %vm401, %v3103
      %3124 = vst.msk [vmem:[#allocation2 + $0x31] sm:$0xff] %vm401, %v3105
      %3125 = vst.msk [vmem:[#allocation2 + $0x39] sm:$0xff] %vm401, %v3107
      %3126 = vst.msk [vmem:[#allocation2 + $0x49] sm:$0xff] %vm401, %v3109
      %3127 = vst.msk [vmem:[#allocation2 + $0x51] sm:$0xff] %vm401, %v3111
      %3128 = vst.msk [vmem:[#allocation2 - $0x1] sm:$0x2] %vm438, %v3097
      %3129 = vst.msk [vmem:[#allocation2 + $0x17] sm:$0x2] %vm438, %v3101
      %3130 = vst.msk [vmem:[#allocation2 + $0x2f] sm:$0x2] %vm438, %v3105
      %3131 = vst.msk [vmem:[#allocation2 + $0x47] sm:$0x2] %vm438, %v3109
      %vm3132 = vcmask 137230
      %3133 = vst.msk [vmem:[#allocation2 + $0xb] sm:$0x40] %vm3132, %v3099
      %3134 = vst.msk [vmem:[#allocation2 + $0x23] sm:$0x40] %vm3132, %v3103
      %3135 = vst.msk [vmem:[#allocation2 + $0x3b] sm:$0x40] %vm3132, %v3107
      %3136 = vst.msk [vmem:[#allocation2 + $0x53] sm:$0x40] %vm3132, %v3111
      %v3137 = vld [vmem:[#allocation2] sm:$0xff]
      %v3138 = vld [vmem:[#allocation2 + $0x8] sm:$0xff]
      %v3139 = vld [vmem:[#allocation2 + $0x10] sm:$0x3]
      %v3140 = vld [vmem:[#allocation2 + $0x18] sm:$0xff]
      %v3141 = vld [vmem:[#allocation2 + $0x20] sm:$0xff]
      %v3142 = vld [vmem:[#allocation2 + $0x28] sm:$0x3]
      %v3143 = vld [vmem:[#allocation2 + $0x30] sm:$0xff]
      %v3144 = vld [vmem:[#allocation2 + $0x38] sm:$0xff]
      %v3145 = vld [vmem:[#allocation2 + $0x40] sm:$0x3]
      %v3146 = vld [vmem:[#allocation2 + $0x48] sm:$0xff]
      %v3147 = vld [vmem:[#allocation2 + $0x50] sm:$0xff]
      %v3148 = vld [vmem:[#allocation2 + $0x58] sm:$0x3]
      %3161 = vrot.lane.b32.xlu0 %v3137, 126
      %v3162 = vpop.permute.xlu0 %3161
      %3163 = vrot.lane.b32.xlu0 %v3138, 126
      %v3164 = vpop.permute.xlu0 %3163
      %3165 = vrot.lane.b32.xlu0 %v3139, 126
      %v3166 = vpop.permute.xlu0 %3165
      %3167 = vrot.lane.b32.xlu0 %v3140, 126
      %v3168 = vpop.permute.xlu0 %3167
      %3169 = vrot.lane.b32.xlu0 %v3141, 126
      %v3170 = vpop.permute.xlu0 %3169
      %3171 = vrot.lane.b32.xlu0 %v3142, 126
      %v3172 = vpop.permute.xlu0 %3171
      %3173 = vrot.lane.b32.xlu0 %v3143, 126
      %v3174 = vpop.permute.xlu0 %3173
      %3175 = vrot.lane.b32.xlu0 %v3144, 126
      %v3176 = vpop.permute.xlu0 %3175
      %3177 = vrot.lane.b32.xlu0 %v3145, 126
      %v3178 = vpop.permute.xlu0 %3177
      %3179 = vrot.lane.b32.xlu0 %v3146, 126
      %v3180 = vpop.permute.xlu0 %3179
      %3181 = vrot.lane.b32.xlu0 %v3147, 126
      %v3182 = vpop.permute.xlu0 %3181
      %3183 = vrot.lane.b32.xlu0 %v3148, 126
      %v3184 = vpop.permute.xlu0 %3183
      %3197 = vst.msk [vmem:[#allocation2] sm:$0xff] %vm536, %v3162
      %3198 = vst.msk [vmem:[#allocation2 + $0x8] sm:$0xff] %vm536, %v3164
      %3199 = vst.msk [vmem:[#allocation2 + $0x10] sm:$0x3] %vm539, %v3166
      %3200 = vst.msk [vmem:[#allocation2 + $0x18] sm:$0xff] %vm536, %v3168
      %3201 = vst.msk [vmem:[#allocation2 + $0x20] sm:$0xff] %vm536, %v3170
      %3202 = vst.msk [vmem:[#allocation2 + $0x28] sm:$0x3] %vm539, %v3172
      %3203 = vst.msk [vmem:[#allocation2 + $0x30] sm:$0xff] %vm536, %v3174
      %3204 = vst.msk [vmem:[#allocation2 + $0x38] sm:$0xff] %vm536, %v3176
      %3205 = vst.msk [vmem:[#allocation2 + $0x40] sm:$0x3] %vm539, %v3178
      %3206 = vst.msk [vmem:[#allocation2 + $0x48] sm:$0xff] %vm536, %v3180
      %3207 = vst.msk [vmem:[#allocation2 + $0x50] sm:$0xff] %vm536, %v3182
      %3208 = vst.msk [vmem:[#allocation2 + $0x58] sm:$0x3] %vm539, %v3184
      %v3209 = vld [vmem:[#allocation2] sm:$0xff]
      %v3210 = vld [vmem:[#allocation2 + $0x8] sm:$0xff]
      %v3211 = vld [vmem:[#allocation2 + $0x10] sm:$0x3]
      %v3212 = vld [vmem:[#allocation2 + $0x18] sm:$0xff]
      %v3213 = vld [vmem:[#allocation2 + $0x20] sm:$0xff]
      %v3214 = vld [vmem:[#allocation2 + $0x28] sm:$0x3]
      %v3215 = vld [vmem:[#allocation2 + $0x30] sm:$0xff]
      %v3216 = vld [vmem:[#allocation2 + $0x38] sm:$0xff]
      %v3217 = vld [vmem:[#allocation2 + $0x40] sm:$0x3]
      %v3218 = vld [vmem:[#allocation2 + $0x48] sm:$0xff]
      %v3219 = vld [vmem:[#allocation2 + $0x50] sm:$0xff]
      %v3220 = vld [vmem:[#allocation2 + $0x58] sm:$0x3]
      %3233 = vrot.lane.b32.xlu0 %v3209, 2
      %v3234 = vpop.permute.xlu0 %3233
      %3235 = vrot.lane.b32.xlu0 %v3210, 2
      %v3236 = vpop.permute.xlu0 %3235
      %3237 = vrot.lane.b32.xlu0 %v3211, 2
      %v3238 = vpop.permute.xlu0 %3237
      %3239 = vrot.lane.b32.xlu0 %v3212, 2
      %v3240 = vpop.permute.xlu0 %3239
      %3241 = vrot.lane.b32.xlu0 %v3213, 2
      %v3242 = vpop.permute.xlu0 %3241
      %3243 = vrot.lane.b32.xlu0 %v3214, 2
      %v3244 = vpop.permute.xlu0 %3243
      %3245 = vrot.lane.b32.xlu0 %v3215, 2
      %v3246 = vpop.permute.xlu0 %3245
      %3247 = vrot.lane.b32.xlu0 %v3216, 2
      %v3248 = vpop.permute.xlu0 %3247
      %3249 = vrot.lane.b32.xlu0 %v3217, 2
      %v3250 = vpop.permute.xlu0 %3249
      %3251 = vrot.lane.b32.xlu0 %v3218, 2
      %v3252 = vpop.permute.xlu0 %3251
      %3253 = vrot.lane.b32.xlu0 %v3219, 2
      %v3254 = vpop.permute.xlu0 %3253
      %3255 = vrot.lane.b32.xlu0 %v3220, 2
      %v3256 = vpop.permute.xlu0 %3255
      %3269 = vst.msk [vmem:[#allocation2] sm:$0xff] %vm610, %v3234
      %3270 = vst.msk [vmem:[#allocation2 + $0x8] sm:$0xff] %vm610, %v3236
      %3271 = vst.msk [vmem:[#allocation2 + $0x10] sm:$0x3] %vm613, %v3238
      %3272 = vst.msk [vmem:[#allocation2 + $0x18] sm:$0xff] %vm610, %v3240
      %3273 = vst.msk [vmem:[#allocation2 + $0x20] sm:$0xff] %vm610, %v3242
      %3274 = vst.msk [vmem:[#allocation2 + $0x28] sm:$0x3] %vm613, %v3244
      %3275 = vst.msk [vmem:[#allocation2 + $0x30] sm:$0xff] %vm610, %v3246
      %3276 = vst.msk [vmem:[#allocation2 + $0x38] sm:$0xff] %vm610, %v3248
      %3277 = vst.msk [vmem:[#allocation2 + $0x40] sm:$0x3] %vm613, %v3250
      %3278 = vst.msk [vmem:[#allocation2 + $0x48] sm:$0xff] %vm610, %v3252
      %3279 = vst.msk [vmem:[#allocation2 + $0x50] sm:$0xff] %vm610, %v3254
      %3280 = vst.msk [vmem:[#allocation2 + $0x58] sm:$0x3] %vm613, %v3256
      %v3281 = vld [vmem:[#allocation2] sm:$0xff]
      %v3282 = vld [vmem:[#allocation2 + $0x8] sm:$0xff]
      %v3283 = vld [vmem:[#allocation2 + $0x18] sm:$0xff]
      %v3284 = vld [vmem:[#allocation2 + $0x20] sm:$0xff]
      %v3285 = vld [vmem:[#allocation2 + $0x30] sm:$0xff]
      %v3286 = vld [vmem:[#allocation2 + $0x38] sm:$0xff]
      %v3287 = vld [vmem:[#allocation2 + $0x48] sm:$0xff]
      %v3288 = vld [vmem:[#allocation2 + $0x50] sm:$0xff]
      %v3289 = vcombine.low %v3281, %v3285
      %v3290 = vcombine.high %v3281, %v3285
      %v3292 = vunpack.c.l.s4 1983009808
      %v3293 = vunpack.c.0.s8 %v3292
      %v3294 = vlaneseq
      %v3295 = vshrl.u32 %v3294, 7
      %v3296 = vsub.s32 %v3293, %v3295
      %v3297 = vrot.slane %v3289, %v3296
      %v3299 = vunpack.c.l.s4 1983009808
      %v3300 = vunpack.c.0.s8 %v3299
      %v3301 = vlaneseq
      %v3302 = vshrl.u32 %v3301, 7
      %v3303 = vsub.s32 %v3300, %v3302
      %v3304 = vrot.slane %v3290, %v3303
      %v3305 = vcombine.low %v3283, %v3287
      %v3306 = vcombine.high %v3283, %v3287
      %v3308 = vunpack.c.l.s4 1983009808
      %v3309 = vunpack.c.0.s8 %v3308
      %v3310 = vlaneseq
      %v3311 = vshrl.u32 %v3310, 7
      %v3312 = vsub.s32 %v3309, %v3311
      %v3313 = vrot.slane %v3305, %v3312
      %v3315 = vunpack.c.l.s4 1983009808
      %v3316 = vunpack.c.0.s8 %v3315
      %v3317 = vlaneseq
      %v3318 = vshrl.u32 %v3317, 7
      %v3319 = vsub.s32 %v3316, %v3318
      %v3320 = vrot.slane %v3306, %v3319
      %v3321 = vcombine.low %v3297, %v3313
      %v3322 = vcombine.high %v3297, %v3313
      %v3324 = vunpack.c.l.s4 1934713408
      %v3325 = vunpack.c.0.s8 %v3324
      %v3326 = vlaneseq
      %v3327 = vshrl.u32 %v3326, 7
      %v3328 = vsub.s32 %v3325, %v3327
      %v3329 = vrot.slane %v3321, %v3328
      %v3331 = vunpack.c.l.s4 1934713408
      %v3332 = vunpack.c.0.s8 %v3331
      %v3333 = vlaneseq
      %v3334 = vshrl.u32 %v3333, 7
      %v3335 = vsub.s32 %v3332, %v3334
      %v3336 = vrot.slane %v3322, %v3335
      %v3337 = vcombine.low %v3304, %v3320
      %v3338 = vcombine.high %v3304, %v3320
      %v3340 = vunpack.c.l.s4 1934713408
      %v3341 = vunpack.c.0.s8 %v3340
      %v3342 = vlaneseq
      %v3343 = vshrl.u32 %v3342, 7
      %v3344 = vsub.s32 %v3341, %v3343
      %v3345 = vrot.slane %v3337, %v3344
      %v3347 = vunpack.c.l.s4 1934713408
      %v3348 = vunpack.c.0.s8 %v3347
      %v3349 = vlaneseq
      %v3350 = vshrl.u32 %v3349, 7
      %v3351 = vsub.s32 %v3348, %v3350
      %v3352 = vrot.slane %v3338, %v3351
      %v3353 = vcombine.high %v3329, 0.0
      %v3354 = vcombine.high %v3336, 0.0
      %v3355 = vcombine.high %v3345, 0.0
      %v3356 = vcombine.high %v3352, 0.0
      %v3357 = vcombine.low %v3282, %v3286
      %v3358 = vcombine.high %v3282, %v3286
      %v3360 = vunpack.c.l.s4 1983009808
      %v3361 = vunpack.c.0.s8 %v3360
      %v3362 = vlaneseq
      %v3363 = vshrl.u32 %v3362, 7
      %v3364 = vsub.s32 %v3361, %v3363
      %v3365 = vrot.slane %v3357, %v3364
      %v3367 = vunpack.c.l.s4 1983009808
      %v3368 = vunpack.c.0.s8 %v3367
      %v3369 = vlaneseq
      %v3370 = vshrl.u32 %v3369, 7
      %v3371 = vsub.s32 %v3368, %v3370
      %v3372 = vrot.slane %v3358, %v3371
      %v3373 = vcombine.low %v3284, %v3288
      %v3374 = vcombine.high %v3284, %v3288
      %v3376 = vunpack.c.l.s4 1983009808
      %v3377 = vunpack.c.0.s8 %v3376
      %v3378 = vlaneseq
      %v3379 = vshrl.u32 %v3378, 7
      %v3380 = vsub.s32 %v3377, %v3379
      %v3381 = vrot.slane %v3373, %v3380
      %v3383 = vunpack.c.l.s4 1983009808
      %v3384 = vunpack.c.0.s8 %v3383
      %v3385 = vlaneseq
      %v3386 = vshrl.u32 %v3385, 7
      %v3387 = vsub.s32 %v3384, %v3386
      %v3388 = vrot.slane %v3374, %v3387
      %v3389 = vcombine.low %v3365, %v3381
      %v3390 = vcombine.high %v3365, %v3381
      %v3392 = vunpack.c.l.s4 1934713408
      %v3393 = vunpack.c.0.s8 %v3392
      %v3394 = vlaneseq
      %v3395 = vshrl.u32 %v3394, 7
      %v3396 = vsub.s32 %v3393, %v3395
      %v3397 = vrot.slane %v3389, %v3396
      %v3399 = vunpack.c.l.s4 1934713408
      %v3400 = vunpack.c.0.s8 %v3399
      %v3401 = vlaneseq
      %v3402 = vshrl.u32 %v3401, 7
      %v3403 = vsub.s32 %v3400, %v3402
      %v3404 = vrot.slane %v3390, %v3403
      %v3405 = vcombine.low %v3372, %v3388
      %v3406 = vcombine.high %v3372, %v3388
      %v3408 = vunpack.c.l.s4 1934713408
      %v3409 = vunpack.c.0.s8 %v3408
      %v3410 = vlaneseq
      %v3411 = vshrl.u32 %v3410, 7
      %v3412 = vsub.s32 %v3409, %v3411
      %v3413 = vrot.slane %v3405, %v3412
      %v3415 = vunpack.c.l.s4 1934713408
      %v3416 = vunpack.c.0.s8 %v3415
      %v3417 = vlaneseq
      %v3418 = vshrl.u32 %v3417, 7
      %v3419 = vsub.s32 %v3416, %v3418
      %v3420 = vrot.slane %v3406, %v3419
      %v3421 = vcombine.high %v3397, 0.0
      %v3422 = vcombine.high %v3404, 0.0
      %v3423 = vcombine.high %v3413, 0.0
      %v3424 = vcombine.high %v3420, 0.0
      %3426 = vrot.lane.b32.xlu0 %v3353, 16
      %v3427 = vpop.permute.xlu0 %3426
      %3430 = vrot.lane.b32.xlu0 %v3336, 32
      %v3431 = vpop.permute.xlu0 %3430
      %3434 = vrot.lane.b32.xlu0 %v3354, 48
      %v3435 = vpop.permute.xlu0 %3434
      %3438 = vrot.lane.b32.xlu0 %v3345, 64
      %v3439 = vpop.permute.xlu0 %3438
      %3442 = vrot.lane.b32.xlu0 %v3355, 80
      %v3443 = vpop.permute.xlu0 %3442
      %3446 = vrot.lane.b32.xlu0 %v3352, 96
      %v3447 = vpop.permute.xlu0 %3446
      %3450 = vrot.lane.b32.xlu0 %v3356, 112
      %v3451 = vpop.permute.xlu0 %3450
      %3454 = vrot.lane.b32.xlu0 %v3421, 16
      %v3455 = vpop.permute.xlu0 %3454
      %3458 = vrot.lane.b32.xlu0 %v3404, 32
      %v3459 = vpop.permute.xlu0 %3458
      %3462 = vrot.lane.b32.xlu0 %v3422, 48
      %v3463 = vpop.permute.xlu0 %3462
      %3466 = vrot.lane.b32.xlu0 %v3413, 64
      %v3467 = vpop.permute.xlu0 %3466
      %3470 = vrot.lane.b32.xlu0 %v3423, 80
      %v3471 = vpop.permute.xlu0 %3470
      %3474 = vrot.lane.b32.xlu0 %v3420, 96
      %v3475 = vpop.permute.xlu0 %3474
      %3478 = vrot.lane.b32.xlu0 %v3424, 112
      %v3479 = vpop.permute.xlu0 %3478
      %v3481 = vsel %vm824, %v3329, %v3427
      %v3482 = vsel %vm826, %v3481, %v3431
      %v3483 = vsel %vm828, %v3482, %v3435
      %v3484 = vsel %vm830, %v3483, %v3439
      %v3485 = vsel %vm832, %v3484, %v3443
      %v3486 = vsel %vm834, %v3485, %v3447
      %v3487 = vsel %vm836, %v3486, %v3451
      %v3488 = vsel %vm824, %v3397, %v3455
      %v3489 = vsel %vm826, %v3488, %v3459
      %v3490 = vsel %vm828, %v3489, %v3463
      %v3491 = vsel %vm830, %v3490, %v3467
      %v3492 = vsel %vm832, %v3491, %v3471
      %v3493 = vsel %vm834, %v3492, %v3475
      %v3494 = vsel %vm836, %v3493, %v3479
      %3495 = vst [vmem:[#allocation3] sm:$0xf] %v3487
      %3496 = vst [vmem:[#allocation3 + $0x8] sm:$0xf] %v3494
      %v3497 = vld [vmem:[#allocation2] sm:$0xff]
      %v3498 = vld [vmem:[#allocation2 + $0x8] sm:$0xff]
      %v3499 = vld [vmem:[#allocation2 + $0x18] sm:$0xff]
      %v3500 = vld [vmem:[#allocation2 + $0x20] sm:$0xff]
      %v3501 = vld [vmem:[#allocation2 + $0x30] sm:$0xff]
      %v3502 = vld [vmem:[#allocation2 + $0x38] sm:$0xff]
      %v3503 = vld [vmem:[#allocation2 + $0x48] sm:$0xff]
      %v3504 = vld [vmem:[#allocation2 + $0x50] sm:$0xff]
      %3513 = vrot.lane.b32.xlu0 %v3497, 127
      %v3514 = vpop.permute.xlu0 %3513
      %3515 = vrot.lane.b32.xlu0 %v3498, 127
      %v3516 = vpop.permute.xlu0 %3515
      %3517 = vrot.lane.b32.xlu0 %v3499, 127
      %v3518 = vpop.permute.xlu0 %3517
      %3519 = vrot.lane.b32.xlu0 %v3500, 127
      %v3520 = vpop.permute.xlu0 %3519
      %3521 = vrot.lane.b32.xlu0 %v3501, 127
      %v3522 = vpop.permute.xlu0 %3521
      %3523 = vrot.lane.b32.xlu0 %v3502, 127
      %v3524 = vpop.permute.xlu0 %3523
      %3525 = vrot.lane.b32.xlu0 %v3503, 127
      %v3526 = vpop.permute.xlu0 %3525
      %3527 = vrot.lane.b32.xlu0 %v3504, 127
      %v3528 = vpop.permute.xlu0 %3527
      %v3537 = vcombine.low %v3514, %v3522
      %v3538 = vcombine.high %v3514, %v3522
      %v3540 = vunpack.c.l.s4 1983009808
      %v3541 = vunpack.c.0.s8 %v3540
      %v3542 = vlaneseq
      %v3543 = vshrl.u32 %v3542, 7
      %v3544 = vsub.s32 %v3541, %v3543
      %v3545 = vrot.slane %v3537, %v3544
      %v3547 = vunpack.c.l.s4 1983009808
      %v3548 = vunpack.c.0.s8 %v3547
      %v3549 = vlaneseq
      %v3550 = vshrl.u32 %v3549, 7
      %v3551 = vsub.s32 %v3548, %v3550
      %v3552 = vrot.slane %v3538, %v3551
      %v3553 = vcombine.low %v3518, %v3526
      %v3554 = vcombine.high %v3518, %v3526
      %v3556 = vunpack.c.l.s4 1983009808
      %v3557 = vunpack.c.0.s8 %v3556
      %v3558 = vlaneseq
      %v3559 = vshrl.u32 %v3558, 7
      %v3560 = vsub.s32 %v3557, %v3559
      %v3561 = vrot.slane %v3553, %v3560
      %v3563 = vunpack.c.l.s4 1983009808
      %v3564 = vunpack.c.0.s8 %v3563
      %v3565 = vlaneseq
      %v3566 = vshrl.u32 %v3565, 7
      %v3567 = vsub.s32 %v3564, %v3566
      %v3568 = vrot.slane %v3554, %v3567
      %v3569 = vcombine.low %v3545, %v3561
      %v3570 = vcombine.high %v3545, %v3561
      %v3572 = vunpack.c.l.s4 1934713408
      %v3573 = vunpack.c.0.s8 %v3572
      %v3574 = vlaneseq
      %v3575 = vshrl.u32 %v3574, 7
      %v3576 = vsub.s32 %v3573, %v3575
      %v3577 = vrot.slane %v3569, %v3576
      %v3579 = vunpack.c.l.s4 1934713408
      %v3580 = vunpack.c.0.s8 %v3579
      %v3581 = vlaneseq
      %v3582 = vshrl.u32 %v3581, 7
      %v3583 = vsub.s32 %v3580, %v3582
      %v3584 = vrot.slane %v3570, %v3583
      %v3585 = vcombine.low %v3552, %v3568
      %v3586 = vcombine.high %v3552, %v3568
      %v3588 = vunpack.c.l.s4 1934713408
      %v3589 = vunpack.c.0.s8 %v3588
      %v3590 = vlaneseq
      %v3591 = vshrl.u32 %v3590, 7
      %v3592 = vsub.s32 %v3589, %v3591
      %v3593 = vrot.slane %v3585, %v3592
      %v3595 = vunpack.c.l.s4 1934713408
      %v3596 = vunpack.c.0.s8 %v3595
      %v3597 = vlaneseq
      %v3598 = vshrl.u32 %v3597, 7
      %v3599 = vsub.s32 %v3596, %v3598
      %v3600 = vrot.slane %v3586, %v3599
      %v3601 = vcombine.high %v3577, 0.0
      %v3602 = vcombine.high %v3584, 0.0
      %v3603 = vcombine.high %v3593, 0.0
      %v3604 = vcombine.high %v3600, 0.0
      %v3605 = vcombine.low %v3516, %v3524
      %v3606 = vcombine.high %v3516, %v3524
      %v3608 = vunpack.c.l.s4 1983009808
      %v3609 = vunpack.c.0.s8 %v3608
      %v3610 = vlaneseq
      %v3611 = vshrl.u32 %v3610, 7
      %v3612 = vsub.s32 %v3609, %v3611
      %v3613 = vrot.slane %v3605, %v3612
      %v3615 = vunpack.c.l.s4 1983009808
      %v3616 = vunpack.c.0.s8 %v3615
      %v3617 = vlaneseq
      %v3618 = vshrl.u32 %v3617, 7
      %v3619 = vsub.s32 %v3616, %v3618
      %v3620 = vrot.slane %v3606, %v3619
      %v3621 = vcombine.low %v3520, %v3528
      %v3622 = vcombine.high %v3520, %v3528
      %v3624 = vunpack.c.l.s4 1983009808
      %v3625 = vunpack.c.0.s8 %v3624
      %v3626 = vlaneseq
      %v3627 = vshrl.u32 %v3626, 7
      %v3628 = vsub.s32 %v3625, %v3627
      %v3629 = vrot.slane %v3621, %v3628
      %v3631 = vunpack.c.l.s4 1983009808
      %v3632 = vunpack.c.0.s8 %v3631
      %v3633 = vlaneseq
      %v3634 = vshrl.u32 %v3633, 7
      %v3635 = vsub.s32 %v3632, %v3634
      %v3636 = vrot.slane %v3622, %v3635
      %v3637 = vcombine.low %v3613, %v3629
      %v3638 = vcombine.high %v3613, %v3629
      %v3640 = vunpack.c.l.s4 1934713408
      %v3641 = vunpack.c.0.s8 %v3640
      %v3642 = vlaneseq
      %v3643 = vshrl.u32 %v3642, 7
      %v3644 = vsub.s32 %v3641, %v3643
      %v3645 = vrot.slane %v3637, %v3644
      %v3647 = vunpack.c.l.s4 1934713408
      %v3648 = vunpack.c.0.s8 %v3647
      %v3649 = vlaneseq
      %v3650 = vshrl.u32 %v3649, 7
      %v3651 = vsub.s32 %v3648, %v3650
      %v3652 = vrot.slane %v3638, %v3651
      %v3653 = vcombine.low %v3620, %v3636
      %v3654 = vcombine.high %v3620, %v3636
      %v3656 = vunpack.c.l.s4 1934713408
      %v3657 = vunpack.c.0.s8 %v3656
      %v3658 = vlaneseq
      %v3659 = vshrl.u32 %v3658, 7
      %v3660 = vsub.s32 %v3657, %v3659
      %v3661 = vrot.slane %v3653, %v3660
      %v3663 = vunpack.c.l.s4 1934713408
      %v3664 = vunpack.c.0.s8 %v3663
      %v3665 = vlaneseq
      %v3666 = vshrl.u32 %v3665, 7
      %v3667 = vsub.s32 %v3664, %v3666
      %v3668 = vrot.slane %v3654, %v3667
      %v3669 = vcombine.high %v3645, 0.0
      %v3670 = vcombine.high %v3652, 0.0
      %v3671 = vcombine.high %v3661, 0.0
      %v3672 = vcombine.high %v3668, 0.0
      %3674 = vrot.lane.b32.xlu0 %v3601, 16
      %v3675 = vpop.permute.xlu0 %3674
      %3678 = vrot.lane.b32.xlu0 %v3584, 32
      %v3679 = vpop.permute.xlu0 %3678
      %3682 = vrot.lane.b32.xlu0 %v3602, 48
      %v3683 = vpop.permute.xlu0 %3682
      %3686 = vrot.lane.b32.xlu0 %v3593, 64
      %v3687 = vpop.permute.xlu0 %3686
      %3690 = vrot.lane.b32.xlu0 %v3603, 80
      %v3691 = vpop.permute.xlu0 %3690
      %3694 = vrot.lane.b32.xlu0 %v3600, 96
      %v3695 = vpop.permute.xlu0 %3694
      %3698 = vrot.lane.b32.xlu0 %v3604, 112
      %v3699 = vpop.permute.xlu0 %3698
      %3702 = vrot.lane.b32.xlu0 %v3669, 16
      %v3703 = vpop.permute.xlu0 %3702
      %3706 = vrot.lane.b32.xlu0 %v3652, 32
      %v3707 = vpop.permute.xlu0 %3706
      %3710 = vrot.lane.b32.xlu0 %v3670, 48
      %v3711 = vpop.permute.xlu0 %3710
      %3714 = vrot.lane.b32.xlu0 %v3661, 64
      %v3715 = vpop.permute.xlu0 %3714
      %3718 = vrot.lane.b32.xlu0 %v3671, 80
      %v3719 = vpop.permute.xlu0 %3718
      %3722 = vrot.lane.b32.xlu0 %v3668, 96
      %v3723 = vpop.permute.xlu0 %3722
      %3726 = vrot.lane.b32.xlu0 %v3672, 112
      %v3727 = vpop.permute.xlu0 %3726
      %v3729 = vsel %vm824, %v3577, %v3675
      %v3730 = vsel %vm826, %v3729, %v3679
      %v3731 = vsel %vm828, %v3730, %v3683
      %v3732 = vsel %vm830, %v3731, %v3687
      %v3733 = vsel %vm832, %v3732, %v3691
      %v3734 = vsel %vm834, %v3733, %v3695
      %v3735 = vsel %vm836, %v3734, %v3699
      %v3736 = vsel %vm824, %v3645, %v3703
      %v3737 = vsel %vm826, %v3736, %v3707
      %v3738 = vsel %vm828, %v3737, %v3711
      %v3739 = vsel %vm830, %v3738, %v3715
      %v3740 = vsel %vm832, %v3739, %v3719
      %v3741 = vsel %vm834, %v3740, %v3723
      %v3742 = vsel %vm836, %v3741, %v3727
      %v3745 = vrot.slane %v3735, 4
      %v3746 = vrot.slane %v3742, 4
      %3749 = vst [vmem:[#allocation3] sm:$0xf0] %v3745
      %3750 = vst [vmem:[#allocation3 + $0x8] sm:$0xf0] %v3746
      %v3751 = vld [vmem:[#allocation2] sm:$0xff]
      %v3752 = vld [vmem:[#allocation2 + $0x8] sm:$0xff]
      %v3753 = vld [vmem:[#allocation2 + $0x18] sm:$0xff]
      %v3754 = vld [vmem:[#allocation2 + $0x20] sm:$0xff]
      %v3755 = vld [vmem:[#allocation2 + $0x30] sm:$0xff]
      %v3756 = vld [vmem:[#allocation2 + $0x38] sm:$0xff]
      %v3757 = vld [vmem:[#allocation2 + $0x48] sm:$0xff]
      %v3758 = vld [vmem:[#allocation2 + $0x50] sm:$0xff]
      %3767 = vrot.lane.b32.xlu0 %v3751, 126
      %v3768 = vpop.permute.xlu0 %3767
      %3769 = vrot.lane.b32.xlu0 %v3752, 126
      %v3770 = vpop.permute.xlu0 %3769
      %3771 = vrot.lane.b32.xlu0 %v3753, 126
      %v3772 = vpop.permute.xlu0 %3771
      %3773 = vrot.lane.b32.xlu0 %v3754, 126
      %v3774 = vpop.permute.xlu0 %3773
      %3775 = vrot.lane.b32.xlu0 %v3755, 126
      %v3776 = vpop.permute.xlu0 %3775
      %3777 = vrot.lane.b32.xlu0 %v3756, 126
      %v3778 = vpop.permute.xlu0 %3777
      %3779 = vrot.lane.b32.xlu0 %v3757, 126
      %v3780 = vpop.permute.xlu0 %3779
      %3781 = vrot.lane.b32.xlu0 %v3758, 126
      %v3782 = vpop.permute.xlu0 %3781
      %v3791 = vcombine.low %v3768, %v3776
      %v3792 = vcombine.high %v3768, %v3776
      %v3794 = vunpack.c.l.s4 1983009808
      %v3795 = vunpack.c.0.s8 %v3794
      %v3796 = vlaneseq
      %v3797 = vshrl.u32 %v3796, 7
      %v3798 = vsub.s32 %v3795, %v3797
      %v3799 = vrot.slane %v3791, %v3798
      %v3801 = vunpack.c.l.s4 1983009808
      %v3802 = vunpack.c.0.s8 %v3801
      %v3803 = vlaneseq
      %v3804 = vshrl.u32 %v3803, 7
      %v3805 = vsub.s32 %v3802, %v3804
      %v3806 = vrot.slane %v3792, %v3805
      %v3807 = vcombine.low %v3772, %v3780
      %v3808 = vcombine.high %v3772, %v3780
      %v3810 = vunpack.c.l.s4 1983009808
      %v3811 = vunpack.c.0.s8 %v3810
      %v3812 = vlaneseq
      %v3813 = vshrl.u32 %v3812, 7
      %v3814 = vsub.s32 %v3811, %v3813
      %v3815 = vrot.slane %v3807, %v3814
      %v3817 = vunpack.c.l.s4 1983009808
      %v3818 = vunpack.c.0.s8 %v3817
      %v3819 = vlaneseq
      %v3820 = vshrl.u32 %v3819, 7
      %v3821 = vsub.s32 %v3818, %v3820
      %v3822 = vrot.slane %v3808, %v3821
      %v3823 = vcombine.low %v3799, %v3815
      %v3824 = vcombine.high %v3799, %v3815
      %v3826 = vunpack.c.l.s4 1934713408
      %v3827 = vunpack.c.0.s8 %v3826
      %v3828 = vlaneseq
      %v3829 = vshrl.u32 %v3828, 7
      %v3830 = vsub.s32 %v3827, %v3829
      %v3831 = vrot.slane %v3823, %v3830
      %v3833 = vunpack.c.l.s4 1934713408
      %v3834 = vunpack.c.0.s8 %v3833
      %v3835 = vlaneseq
      %v3836 = vshrl.u32 %v3835, 7
      %v3837 = vsub.s32 %v3834, %v3836
      %v3838 = vrot.slane %v3824, %v3837
      %v3839 = vcombine.low %v3806, %v3822
      %v3840 = vcombine.high %v3806, %v3822
      %v3842 = vunpack.c.l.s4 1934713408
      %v3843 = vunpack.c.0.s8 %v3842
      %v3844 = vlaneseq
      %v3845 = vshrl.u32 %v3844, 7
      %v3846 = vsub.s32 %v3843, %v3845
      %v3847 = vrot.slane %v3839, %v3846
      %v3849 = vunpack.c.l.s4 1934713408
      %v3850 = vunpack.c.0.s8 %v3849
      %v3851 = vlaneseq
      %v3852 = vshrl.u32 %v3851, 7
      %v3853 = vsub.s32 %v3850, %v3852
      %v3854 = vrot.slane %v3840, %v3853
      %v3855 = vcombine.high %v3831, 0.0
      %v3856 = vcombine.high %v3838, 0.0
      %v3857 = vcombine.high %v3847, 0.0
      %v3858 = vcombine.high %v3854, 0.0
      %v3859 = vcombine.low %v3770, %v3778
      %v3860 = vcombine.high %v3770, %v3778
      %v3862 = vunpack.c.l.s4 1983009808
      %v3863 = vunpack.c.0.s8 %v3862
      %v3864 = vlaneseq
      %v3865 = vshrl.u32 %v3864, 7
      %v3866 = vsub.s32 %v3863, %v3865
      %v3867 = vrot.slane %v3859, %v3866
      %v3869 = vunpack.c.l.s4 1983009808
      %v3870 = vunpack.c.0.s8 %v3869
      %v3871 = vlaneseq
      %v3872 = vshrl.u32 %v3871, 7
      %v3873 = vsub.s32 %v3870, %v3872
      %v3874 = vrot.slane %v3860, %v3873
      %v3875 = vcombine.low %v3774, %v3782
      %v3876 = vcombine.high %v3774, %v3782
      %v3878 = vunpack.c.l.s4 1983009808
      %v3879 = vunpack.c.0.s8 %v3878
      %v3880 = vlaneseq
      %v3881 = vshrl.u32 %v3880, 7
      %v3882 = vsub.s32 %v3879, %v3881
      %v3883 = vrot.slane %v3875, %v3882
      %v3885 = vunpack.c.l.s4 1983009808
      %v3886 = vunpack.c.0.s8 %v3885
      %v3887 = vlaneseq
      %v3888 = vshrl.u32 %v3887, 7
      %v3889 = vsub.s32 %v3886, %v3888
      %v3890 = vrot.slane %v3876, %v3889
      %v3891 = vcombine.low %v3867, %v3883
      %v3892 = vcombine.high %v3867, %v3883
      %v3894 = vunpack.c.l.s4 1934713408
      %v3895 = vunpack.c.0.s8 %v3894
      %v3896 = vlaneseq
      %v3897 = vshrl.u32 %v3896, 7
      %v3898 = vsub.s32 %v3895, %v3897
      %v3899 = vrot.slane %v3891, %v3898
      %v3901 = vunpack.c.l.s4 1934713408
      %v3902 = vunpack.c.0.s8 %v3901
      %v3903 = vlaneseq
      %v3904 = vshrl.u32 %v3903, 7
      %v3905 = vsub.s32 %v3902, %v3904
      %v3906 = vrot.slane %v3892, %v3905
      %v3907 = vcombine.low %v3874, %v3890
      %v3908 = vcombine.high %v3874, %v3890
      %v3910 = vunpack.c.l.s4 1934713408
      %v3911 = vunpack.c.0.s8 %v3910
      %v3912 = vlaneseq
      %v3913 = vshrl.u32 %v3912, 7
      %v3914 = vsub.s32 %v3911, %v3913
      %v3915 = vrot.slane %v3907, %v3914
      %v3917 = vunpack.c.l.s4 1934713408
      %v3918 = vunpack.c.0.s8 %v3917
      %v3919 = vlaneseq
      %v3920 = vshrl.u32 %v3919, 7
      %v3921 = vsub.s32 %v3918, %v3920
      %v3922 = vrot.slane %v3908, %v3921
      %v3923 = vcombine.high %v3899, 0.0
      %v3924 = vcombine.high %v3906, 0.0
      %v3925 = vcombine.high %v3915, 0.0
      %v3926 = vcombine.high %v3922, 0.0
      %3928 = vrot.lane.b32.xlu0 %v3855, 16
      %v3929 = vpop.permute.xlu0 %3928
      %3932 = vrot.lane.b32.xlu0 %v3838, 32
      %v3933 = vpop.permute.xlu0 %3932
      %3936 = vrot.lane.b32.xlu0 %v3856, 48
      %v3937 = vpop.permute.xlu0 %3936
      %3940 = vrot.lane.b32.xlu0 %v3847, 64
      %v3941 = vpop.permute.xlu0 %3940
      %3944 = vrot.lane.b32.xlu0 %v3857, 80
      %v3945 = vpop.permute.xlu0 %3944
      %3948 = vrot.lane.b32.xlu0 %v3854, 96
      %v3949 = vpop.permute.xlu0 %3948
      %3952 = vrot.lane.b32.xlu0 %v3858, 112
      %v3953 = vpop.permute.xlu0 %3952
      %3956 = vrot.lane.b32.xlu0 %v3923, 16
      %v3957 = vpop.permute.xlu0 %3956
      %3960 = vrot.lane.b32.xlu0 %v3906, 32
      %v3961 = vpop.permute.xlu0 %3960
      %3964 = vrot.lane.b32.xlu0 %v3924, 48
      %v3965 = vpop.permute.xlu0 %3964
      %3968 = vrot.lane.b32.xlu0 %v3915, 64
      %v3969 = vpop.permute.xlu0 %3968
      %3972 = vrot.lane.b32.xlu0 %v3925, 80
      %v3973 = vpop.permute.xlu0 %3972
      %3976 = vrot.lane.b32.xlu0 %v3922, 96
      %v3977 = vpop.permute.xlu0 %3976
      %3980 = vrot.lane.b32.xlu0 %v3926, 112
      %v3981 = vpop.permute.xlu0 %3980
      %v3983 = vsel %vm824, %v3831, %v3929
      %v3984 = vsel %vm826, %v3983, %v3933
      %v3985 = vsel %vm828, %v3984, %v3937
      %v3986 = vsel %vm830, %v3985, %v3941
      %v3987 = vsel %vm832, %v3986, %v3945
      %v3988 = vsel %vm834, %v3987, %v3949
      %v3989 = vsel %vm836, %v3988, %v3953
      %v3990 = vsel %vm824, %v3899, %v3957
      %v3991 = vsel %vm826, %v3990, %v3961
      %v3992 = vsel %vm828, %v3991, %v3965
      %v3993 = vsel %vm830, %v3992, %v3969
      %v3994 = vsel %vm832, %v3993, %v3973
      %v3995 = vsel %vm834, %v3994, %v3977
      %v3996 = vsel %vm836, %v3995, %v3981
      %3997 = vst [vmem:[#allocation3 + $0x10] sm:$0xf] %v3989
      %3998 = vst [vmem:[#allocation3 + $0x18] sm:$0xf] %v3996
      %v3999 = vld [vmem:[#allocation2 + $0x1] sm:$0xff]
      %v4000 = vld [vmem:[#allocation2 + $0x9] sm:$0xff]
      %v4001 = vld [vmem:[#allocation2 + $0x19] sm:$0xff]
      %v4002 = vld [vmem:[#allocation2 + $0x21] sm:$0xff]
      %v4003 = vld [vmem:[#allocation2 + $0x31] sm:$0xff]
      %v4004 = vld [vmem:[#allocation2 + $0x39] sm:$0xff]
      %v4005 = vld [vmem:[#allocation2 + $0x49] sm:$0xff]
      %v4006 = vld [vmem:[#allocation2 + $0x51] sm:$0xff]
      %v4007 = vcombine.low %v3999, %v4003
      %v4008 = vcombine.high %v3999, %v4003
      %v4010 = vunpack.c.l.s4 1983009808
      %v4011 = vunpack.c.0.s8 %v4010
      %v4012 = vlaneseq
      %v4013 = vshrl.u32 %v4012, 7
      %v4014 = vsub.s32 %v4011, %v4013
      %v4015 = vrot.slane %v4007, %v4014
      %v4017 = vunpack.c.l.s4 1983009808
      %v4018 = vunpack.c.0.s8 %v4017
      %v4019 = vlaneseq
      %v4020 = vshrl.u32 %v4019, 7
      %v4021 = vsub.s32 %v4018, %v4020
      %v4022 = vrot.slane %v4008, %v4021
      %v4023 = vcombine.low %v4001, %v4005
      %v4024 = vcombine.high %v4001, %v4005
      %v4026 = vunpack.c.l.s4 1983009808
      %v4027 = vunpack.c.0.s8 %v4026
      %v4028 = vlaneseq
      %v4029 = vshrl.u32 %v4028, 7
      %v4030 = vsub.s32 %v4027, %v4029
      %v4031 = vrot.slane %v4023, %v4030
      %v4033 = vunpack.c.l.s4 1983009808
      %v4034 = vunpack.c.0.s8 %v4033
      %v4035 = vlaneseq
      %v4036 = vshrl.u32 %v4035, 7
      %v4037 = vsub.s32 %v4034, %v4036
      %v4038 = vrot.slane %v4024, %v4037
      %v4039 = vcombine.low %v4015, %v4031
      %v4040 = vcombine.high %v4015, %v4031
      %v4042 = vunpack.c.l.s4 1934713408
      %v4043 = vunpack.c.0.s8 %v4042
      %v4044 = vlaneseq
      %v4045 = vshrl.u32 %v4044, 7
      %v4046 = vsub.s32 %v4043, %v4045
      %v4047 = vrot.slane %v4039, %v4046
      %v4049 = vunpack.c.l.s4 1934713408
      %v4050 = vunpack.c.0.s8 %v4049
      %v4051 = vlaneseq
      %v4052 = vshrl.u32 %v4051, 7
      %v4053 = vsub.s32 %v4050, %v4052
      %v4054 = vrot.slane %v4040, %v4053
      %v4055 = vcombine.low %v4022, %v4038
      %v4056 = vcombine.high %v4022, %v4038
      %v4058 = vunpack.c.l.s4 1934713408
      %v4059 = vunpack.c.0.s8 %v4058
      %v4060 = vlaneseq
      %v4061 = vshrl.u32 %v4060, 7
      %v4062 = vsub.s32 %v4059, %v4061
      %v4063 = vrot.slane %v4055, %v4062
      %v4065 = vunpack.c.l.s4 1934713408
      %v4066 = vunpack.c.0.s8 %v4065
      %v4067 = vlaneseq
      %v4068 = vshrl.u32 %v4067, 7
      %v4069 = vsub.s32 %v4066, %v4068
      %v4070 = vrot.slane %v4056, %v4069
      %v4071 = vcombine.high %v4047, 0.0
      %v4072 = vcombine.high %v4054, 0.0
      %v4073 = vcombine.high %v4063, 0.0
      %v4074 = vcombine.high %v4070, 0.0
      %v4075 = vcombine.low %v4000, %v4004
      %v4076 = vcombine.high %v4000, %v4004
      %v4078 = vunpack.c.l.s4 1983009808
      %v4079 = vunpack.c.0.s8 %v4078
      %v4080 = vlaneseq
      %v4081 = vshrl.u32 %v4080, 7
      %v4082 = vsub.s32 %v4079, %v4081
      %v4083 = vrot.slane %v4075, %v4082
      %v4085 = vunpack.c.l.s4 1983009808
      %v4086 = vunpack.c.0.s8 %v4085
      %v4087 = vlaneseq
      %v4088 = vshrl.u32 %v4087, 7
      %v4089 = vsub.s32 %v4086, %v4088
      %v4090 = vrot.slane %v4076, %v4089
      %v4091 = vcombine.low %v4002, %v4006
      %v4092 = vcombine.high %v4002, %v4006
      %v4094 = vunpack.c.l.s4 1983009808
      %v4095 = vunpack.c.0.s8 %v4094
      %v4096 = vlaneseq
      %v4097 = vshrl.u32 %v4096, 7
      %v4098 = vsub.s32 %v4095, %v4097
      %v4099 = vrot.slane %v4091, %v4098
      %v4101 = vunpack.c.l.s4 1983009808
      %v4102 = vunpack.c.0.s8 %v4101
      %v4103 = vlaneseq
      %v4104 = vshrl.u32 %v4103, 7
      %v4105 = vsub.s32 %v4102, %v4104
      %v4106 = vrot.slane %v4092, %v4105
      %v4107 = vcombine.low %v4083, %v4099
      %v4108 = vcombine.high %v4083, %v4099
      %v4110 = vunpack.c.l.s4 1934713408
      %v4111 = vunpack.c.0.s8 %v4110
      %v4112 = vlaneseq
      %v4113 = vshrl.u32 %v4112, 7
      %v4114 = vsub.s32 %v4111, %v4113
      %v4115 = vrot.slane %v4107, %v4114
      %v4117 = vunpack.c.l.s4 1934713408
      %v4118 = vunpack.c.0.s8 %v4117
      %v4119 = vlaneseq
      %v4120 = vshrl.u32 %v4119, 7
      %v4121 = vsub.s32 %v4118, %v4120
      %v4122 = vrot.slane %v4108, %v4121
      %v4123 = vcombine.low %v4090, %v4106
      %v4124 = vcombine.high %v4090, %v4106
      %v4126 = vunpack.c.l.s4 1934713408
      %v4127 = vunpack.c.0.s8 %v4126
      %v4128 = vlaneseq
      %v4129 = vshrl.u32 %v4128, 7
      %v4130 = vsub.s32 %v4127, %v4129
      %v4131 = vrot.slane %v4123, %v4130
      %v4133 = vunpack.c.l.s4 1934713408
      %v4134 = vunpack.c.0.s8 %v4133
      %v4135 = vlaneseq
      %v4136 = vshrl.u32 %v4135, 7
      %v4137 = vsub.s32 %v4134, %v4136
      %v4138 = vrot.slane %v4124, %v4137
      %v4139 = vcombine.high %v4115, 0.0
      %v4140 = vcombine.high %v4122, 0.0
      %v4141 = vcombine.high %v4131, 0.0
      %v4142 = vcombine.high %v4138, 0.0
      %4144 = vrot.lane.b32.xlu0 %v4071, 16
      %v4145 = vpop.permute.xlu0 %4144
      %4148 = vrot.lane.b32.xlu0 %v4054, 32
      %v4149 = vpop.permute.xlu0 %4148
      %4152 = vrot.lane.b32.xlu0 %v4072, 48
      %v4153 = vpop.permute.xlu0 %4152
      %4156 = vrot.lane.b32.xlu0 %v4063, 64
      %v4157 = vpop.permute.xlu0 %4156
      %4160 = vrot.lane.b32.xlu0 %v4073, 80
      %v4161 = vpop.permute.xlu0 %4160
      %4164 = vrot.lane.b32.xlu0 %v4070, 96
      %v4165 = vpop.permute.xlu0 %4164
      %4168 = vrot.lane.b32.xlu0 %v4074, 112
      %v4169 = vpop.permute.xlu0 %4168
      %4172 = vrot.lane.b32.xlu0 %v4139, 16
      %v4173 = vpop.permute.xlu0 %4172
      %4176 = vrot.lane.b32.xlu0 %v4122, 32
      %v4177 = vpop.permute.xlu0 %4176
      %4180 = vrot.lane.b32.xlu0 %v4140, 48
      %v4181 = vpop.permute.xlu0 %4180
      %4184 = vrot.lane.b32.xlu0 %v4131, 64
      %v4185 = vpop.permute.xlu0 %4184
      %4188 = vrot.lane.b32.xlu0 %v4141, 80
      %v4189 = vpop.permute.xlu0 %4188
      %4192 = vrot.lane.b32.xlu0 %v4138, 96
      %v4193 = vpop.permute.xlu0 %4192
      %4196 = vrot.lane.b32.xlu0 %v4142, 112
      %v4197 = vpop.permute.xlu0 %4196
      %v4199 = vsel %vm824, %v4047, %v4145
      %v4200 = vsel %vm826, %v4199, %v4149
      %v4201 = vsel %vm828, %v4200, %v4153
      %v4202 = vsel %vm830, %v4201, %v4157
      %v4203 = vsel %vm832, %v4202, %v4161
      %v4204 = vsel %vm834, %v4203, %v4165
      %v4205 = vsel %vm836, %v4204, %v4169
      %v4206 = vsel %vm824, %v4115, %v4173
      %v4207 = vsel %vm826, %v4206, %v4177
      %v4208 = vsel %vm828, %v4207, %v4181
      %v4209 = vsel %vm830, %v4208, %v4185
      %v4210 = vsel %vm832, %v4209, %v4189
      %v4211 = vsel %vm834, %v4210, %v4193
      %v4212 = vsel %vm836, %v4211, %v4197
      %v4215 = vrot.slane %v4205, 4
      %v4216 = vrot.slane %v4212, 4
      %4219 = vst [vmem:[#allocation3 + $0x10] sm:$0xf0] %v4215
      %4220 = vst [vmem:[#allocation3 + $0x18] sm:$0xf0] %v4216
      %v4221 = vld [vmem:[#allocation2 + $0x1] sm:$0xff]
      %v4222 = vld [vmem:[#allocation2 + $0x9] sm:$0xff]
      %v4223 = vld [vmem:[#allocation2 + $0x19] sm:$0xff]
      %v4224 = vld [vmem:[#allocation2 + $0x21] sm:$0xff]
      %v4225 = vld [vmem:[#allocation2 + $0x31] sm:$0xff]
      %v4226 = vld [vmem:[#allocation2 + $0x39] sm:$0xff]
      %v4227 = vld [vmem:[#allocation2 + $0x49] sm:$0xff]
      %v4228 = vld [vmem:[#allocation2 + $0x51] sm:$0xff]
      %4237 = vrot.lane.b32.xlu0 %v4221, 127
      %v4238 = vpop.permute.xlu0 %4237
      %4239 = vrot.lane.b32.xlu0 %v4222, 127
      %v4240 = vpop.permute.xlu0 %4239
      %4241 = vrot.lane.b32.xlu0 %v4223, 127
      %v4242 = vpop.permute.xlu0 %4241
      %4243 = vrot.lane.b32.xlu0 %v4224, 127
      %v4244 = vpop.permute.xlu0 %4243
      %4245 = vrot.lane.b32.xlu0 %v4225, 127
      %v4246 = vpop.permute.xlu0 %4245
      %4247 = vrot.lane.b32.xlu0 %v4226, 127
      %v4248 = vpop.permute.xlu0 %4247
      %4249 = vrot.lane.b32.xlu0 %v4227, 127
      %v4250 = vpop.permute.xlu0 %4249
      %4251 = vrot.lane.b32.xlu0 %v4228, 127
      %v4252 = vpop.permute.xlu0 %4251
      %v4261 = vcombine.low %v4238, %v4246
      %v4262 = vcombine.high %v4238, %v4246
      %v4264 = vunpack.c.l.s4 1983009808
      %v4265 = vunpack.c.0.s8 %v4264
      %v4266 = vlaneseq
      %v4267 = vshrl.u32 %v4266, 7
      %v4268 = vsub.s32 %v4265, %v4267
      %v4269 = vrot.slane %v4261, %v4268
      %v4271 = vunpack.c.l.s4 1983009808
      %v4272 = vunpack.c.0.s8 %v4271
      %v4273 = vlaneseq
      %v4274 = vshrl.u32 %v4273, 7
      %v4275 = vsub.s32 %v4272, %v4274
      %v4276 = vrot.slane %v4262, %v4275
      %v4277 = vcombine.low %v4242, %v4250
      %v4278 = vcombine.high %v4242, %v4250
      %v4280 = vunpack.c.l.s4 1983009808
      %v4281 = vunpack.c.0.s8 %v4280
      %v4282 = vlaneseq
      %v4283 = vshrl.u32 %v4282, 7
      %v4284 = vsub.s32 %v4281, %v4283
      %v4285 = vrot.slane %v4277, %v4284
      %v4287 = vunpack.c.l.s4 1983009808
      %v4288 = vunpack.c.0.s8 %v4287
      %v4289 = vlaneseq
      %v4290 = vshrl.u32 %v4289, 7
      %v4291 = vsub.s32 %v4288, %v4290
      %v4292 = vrot.slane %v4278, %v4291
      %v4293 = vcombine.low %v4269, %v4285
      %v4294 = vcombine.high %v4269, %v4285
      %v4296 = vunpack.c.l.s4 1934713408
      %v4297 = vunpack.c.0.s8 %v4296
      %v4298 = vlaneseq
      %v4299 = vshrl.u32 %v4298, 7
      %v4300 = vsub.s32 %v4297, %v4299
      %v4301 = vrot.slane %v4293, %v4300
      %v4303 = vunpack.c.l.s4 1934713408
      %v4304 = vunpack.c.0.s8 %v4303
      %v4305 = vlaneseq
      %v4306 = vshrl.u32 %v4305, 7
      %v4307 = vsub.s32 %v4304, %v4306
      %v4308 = vrot.slane %v4294, %v4307
      %v4309 = vcombine.low %v4276, %v4292
      %v4310 = vcombine.high %v4276, %v4292
      %v4312 = vunpack.c.l.s4 1934713408
      %v4313 = vunpack.c.0.s8 %v4312
      %v4314 = vlaneseq
      %v4315 = vshrl.u32 %v4314, 7
      %v4316 = vsub.s32 %v4313, %v4315
      %v4317 = vrot.slane %v4309, %v4316
      %v4319 = vunpack.c.l.s4 1934713408
      %v4320 = vunpack.c.0.s8 %v4319
      %v4321 = vlaneseq
      %v4322 = vshrl.u32 %v4321, 7
      %v4323 = vsub.s32 %v4320, %v4322
      %v4324 = vrot.slane %v4310, %v4323
      %v4325 = vcombine.high %v4301, 0.0
      %v4326 = vcombine.high %v4308, 0.0
      %v4327 = vcombine.high %v4317, 0.0
      %v4328 = vcombine.high %v4324, 0.0
      %v4329 = vcombine.low %v4240, %v4248
      %v4330 = vcombine.high %v4240, %v4248
      %v4332 = vunpack.c.l.s4 1983009808
      %v4333 = vunpack.c.0.s8 %v4332
      %v4334 = vlaneseq
      %v4335 = vshrl.u32 %v4334, 7
      %v4336 = vsub.s32 %v4333, %v4335
      %v4337 = vrot.slane %v4329, %v4336
      %v4339 = vunpack.c.l.s4 1983009808
      %v4340 = vunpack.c.0.s8 %v4339
      %v4341 = vlaneseq
      %v4342 = vshrl.u32 %v4341, 7
      %v4343 = vsub.s32 %v4340, %v4342
      %v4344 = vrot.slane %v4330, %v4343
      %v4345 = vcombine.low %v4244, %v4252
      %v4346 = vcombine.high %v4244, %v4252
      %v4348 = vunpack.c.l.s4 1983009808
      %v4349 = vunpack.c.0.s8 %v4348
      %v4350 = vlaneseq
      %v4351 = vshrl.u32 %v4350, 7
      %v4352 = vsub.s32 %v4349, %v4351
      %v4353 = vrot.slane %v4345, %v4352
      %v4355 = vunpack.c.l.s4 1983009808
      %v4356 = vunpack.c.0.s8 %v4355
      %v4357 = vlaneseq
      %v4358 = vshrl.u32 %v4357, 7
      %v4359 = vsub.s32 %v4356, %v4358
      %v4360 = vrot.slane %v4346, %v4359
      %v4361 = vcombine.low %v4337, %v4353
      %v4362 = vcombine.high %v4337, %v4353
      %v4364 = vunpack.c.l.s4 1934713408
      %v4365 = vunpack.c.0.s8 %v4364
      %v4366 = vlaneseq
      %v4367 = vshrl.u32 %v4366, 7
      %v4368 = vsub.s32 %v4365, %v4367
      %v4369 = vrot.slane %v4361, %v4368
      %v4371 = vunpack.c.l.s4 1934713408
      %v4372 = vunpack.c.0.s8 %v4371
      %v4373 = vlaneseq
      %v4374 = vshrl.u32 %v4373, 7
      %v4375 = vsub.s32 %v4372, %v4374
      %v4376 = vrot.slane %v4362, %v4375
      %v4377 = vcombine.low %v4344, %v4360
      %v4378 = vcombine.high %v4344, %v4360
      %v4380 = vunpack.c.l.s4 1934713408
      %v4381 = vunpack.c.0.s8 %v4380
      %v4382 = vlaneseq
      %v4383 = vshrl.u32 %v4382, 7
      %v4384 = vsub.s32 %v4381, %v4383
      %v4385 = vrot.slane %v4377, %v4384
      %v4387 = vunpack.c.l.s4 1934713408
      %v4388 = vunpack.c.0.s8 %v4387
      %v4389 = vlaneseq
      %v4390 = vshrl.u32 %v4389, 7
      %v4391 = vsub.s32 %v4388, %v4390
      %v4392 = vrot.slane %v4378, %v4391
      %v4393 = vcombine.high %v4369, 0.0
      %v4394 = vcombine.high %v4376, 0.0
      %v4395 = vcombine.high %v4385, 0.0
      %v4396 = vcombine.high %v4392, 0.0
      %4398 = vrot.lane.b32.xlu0 %v4325, 16
      %v4399 = vpop.permute.xlu0 %4398
      %4402 = vrot.lane.b32.xlu0 %v4308, 32
      %v4403 = vpop.permute.xlu0 %4402
      %4406 = vrot.lane.b32.xlu0 %v4326, 48
      %v4407 = vpop.permute.xlu0 %4406
      %4410 = vrot.lane.b32.xlu0 %v4317, 64
      %v4411 = vpop.permute.xlu0 %4410
      %4414 = vrot.lane.b32.xlu0 %v4327, 80
      %v4415 = vpop.permute.xlu0 %4414
      %4418 = vrot.lane.b32.xlu0 %v4324, 96
      %v4419 = vpop.permute.xlu0 %4418
      %4422 = vrot.lane.b32.xlu0 %v4328, 112
      %v4423 = vpop.permute.xlu0 %4422
      %4426 = vrot.lane.b32.xlu0 %v4393, 16
      %v4427 = vpop.permute.xlu0 %4426
      %4430 = vrot.lane.b32.xlu0 %v4376, 32
      %v4431 = vpop.permute.xlu0 %4430
      %4434 = vrot.lane.b32.xlu0 %v4394, 48
      %v4435 = vpop.permute.xlu0 %4434
      %4438 = vrot.lane.b32.xlu0 %v4385, 64
      %v4439 = vpop.permute.xlu0 %4438
      %4442 = vrot.lane.b32.xlu0 %v4395, 80
      %v4443 = vpop.permute.xlu0 %4442
      %4446 = vrot.lane.b32.xlu0 %v4392, 96
      %v4447 = vpop.permute.xlu0 %4446
      %4450 = vrot.lane.b32.xlu0 %v4396, 112
      %v4451 = vpop.permute.xlu0 %4450
      %v4453 = vsel %vm824, %v4301, %v4399
      %v4454 = vsel %vm826, %v4453, %v4403
      %v4455 = vsel %vm828, %v4454, %v4407
      %v4456 = vsel %vm830, %v4455, %v4411
      %v4457 = vsel %vm832, %v4456, %v4415
      %v4458 = vsel %vm834, %v4457, %v4419
      %v4459 = vsel %vm836, %v4458, %v4423
      %v4460 = vsel %vm824, %v4369, %v4427
      %v4461 = vsel %vm826, %v4460, %v4431
      %v4462 = vsel %vm828, %v4461, %v4435
      %v4463 = vsel %vm830, %v4462, %v4439
      %v4464 = vsel %vm832, %v4463, %v4443
      %v4465 = vsel %vm834, %v4464, %v4447
      %v4466 = vsel %vm836, %v4465, %v4451
      %4467 = vst [vmem:[#allocation3 + $0x20] sm:$0xf] %v4459
      %4468 = vst [vmem:[#allocation3 + $0x28] sm:$0xf] %v4466
      %v4469 = vld [vmem:[#allocation2 + $0x1] sm:$0xff]
      %v4470 = vld [vmem:[#allocation2 + $0x9] sm:$0xff]
      %v4471 = vld [vmem:[#allocation2 + $0x19] sm:$0xff]
      %v4472 = vld [vmem:[#allocation2 + $0x21] sm:$0xff]
      %v4473 = vld [vmem:[#allocation2 + $0x31] sm:$0xff]
      %v4474 = vld [vmem:[#allocation2 + $0x39] sm:$0xff]
      %v4475 = vld [vmem:[#allocation2 + $0x49] sm:$0xff]
      %v4476 = vld [vmem:[#allocation2 + $0x51] sm:$0xff]
      %4485 = vrot.lane.b32.xlu0 %v4469, 126
      %v4486 = vpop.permute.xlu0 %4485
      %4487 = vrot.lane.b32.xlu0 %v4470, 126
      %v4488 = vpop.permute.xlu0 %4487
      %4489 = vrot.lane.b32.xlu0 %v4471, 126
      %v4490 = vpop.permute.xlu0 %4489
      %4491 = vrot.lane.b32.xlu0 %v4472, 126
      %v4492 = vpop.permute.xlu0 %4491
      %4493 = vrot.lane.b32.xlu0 %v4473, 126
      %v4494 = vpop.permute.xlu0 %4493
      %4495 = vrot.lane.b32.xlu0 %v4474, 126
      %v4496 = vpop.permute.xlu0 %4495
      %4497 = vrot.lane.b32.xlu0 %v4475, 126
      %v4498 = vpop.permute.xlu0 %4497
      %4499 = vrot.lane.b32.xlu0 %v4476, 126
      %v4500 = vpop.permute.xlu0 %4499
      %v4509 = vcombine.low %v4486, %v4494
      %v4510 = vcombine.high %v4486, %v4494
      %v4512 = vunpack.c.l.s4 1983009808
      %v4513 = vunpack.c.0.s8 %v4512
      %v4514 = vlaneseq
      %v4515 = vshrl.u32 %v4514, 7
      %v4516 = vsub.s32 %v4513, %v4515
      %v4517 = vrot.slane %v4509, %v4516
      %v4519 = vunpack.c.l.s4 1983009808
      %v4520 = vunpack.c.0.s8 %v4519
      %v4521 = vlaneseq
      %v4522 = vshrl.u32 %v4521, 7
      %v4523 = vsub.s32 %v4520, %v4522
      %v4524 = vrot.slane %v4510, %v4523
      %v4525 = vcombine.low %v4490, %v4498
      %v4526 = vcombine.high %v4490, %v4498
      %v4528 = vunpack.c.l.s4 1983009808
      %v4529 = vunpack.c.0.s8 %v4528
      %v4530 = vlaneseq
      %v4531 = vshrl.u32 %v4530, 7
      %v4532 = vsub.s32 %v4529, %v4531
      %v4533 = vrot.slane %v4525, %v4532
      %v4535 = vunpack.c.l.s4 1983009808
      %v4536 = vunpack.c.0.s8 %v4535
      %v4537 = vlaneseq
      %v4538 = vshrl.u32 %v4537, 7
      %v4539 = vsub.s32 %v4536, %v4538
      %v4540 = vrot.slane %v4526, %v4539
      %v4541 = vcombine.low %v4517, %v4533
      %v4542 = vcombine.high %v4517, %v4533
      %v4544 = vunpack.c.l.s4 1934713408
      %v4545 = vunpack.c.0.s8 %v4544
      %v4546 = vlaneseq
      %v4547 = vshrl.u32 %v4546, 7
      %v4548 = vsub.s32 %v4545, %v4547
      %v4549 = vrot.slane %v4541, %v4548
      %v4551 = vunpack.c.l.s4 1934713408
      %v4552 = vunpack.c.0.s8 %v4551
      %v4553 = vlaneseq
      %v4554 = vshrl.u32 %v4553, 7
      %v4555 = vsub.s32 %v4552, %v4554
      %v4556 = vrot.slane %v4542, %v4555
      %v4557 = vcombine.low %v4524, %v4540
      %v4558 = vcombine.high %v4524, %v4540
      %v4560 = vunpack.c.l.s4 1934713408
      %v4561 = vunpack.c.0.s8 %v4560
      %v4562 = vlaneseq
      %v4563 = vshrl.u32 %v4562, 7
      %v4564 = vsub.s32 %v4561, %v4563
      %v4565 = vrot.slane %v4557, %v4564
      %v4567 = vunpack.c.l.s4 1934713408
      %v4568 = vunpack.c.0.s8 %v4567
      %v4569 = vlaneseq
      %v4570 = vshrl.u32 %v4569, 7
      %v4571 = vsub.s32 %v4568, %v4570
      %v4572 = vrot.slane %v4558, %v4571
      %v4573 = vcombine.high %v4549, 0.0
      %v4574 = vcombine.high %v4556, 0.0
      %v4575 = vcombine.high %v4565, 0.0
      %v4576 = vcombine.high %v4572, 0.0
      %v4577 = vcombine.low %v4488, %v4496
      %v4578 = vcombine.high %v4488, %v4496
      %v4580 = vunpack.c.l.s4 1983009808
      %v4581 = vunpack.c.0.s8 %v4580
      %v4582 = vlaneseq
      %v4583 = vshrl.u32 %v4582, 7
      %v4584 = vsub.s32 %v4581, %v4583
      %v4585 = vrot.slane %v4577, %v4584
      %v4587 = vunpack.c.l.s4 1983009808
      %v4588 = vunpack.c.0.s8 %v4587
      %v4589 = vlaneseq
      %v4590 = vshrl.u32 %v4589, 7
      %v4591 = vsub.s32 %v4588, %v4590
      %v4592 = vrot.slane %v4578, %v4591
      %v4593 = vcombine.low %v4492, %v4500
      %v4594 = vcombine.high %v4492, %v4500
      %v4596 = vunpack.c.l.s4 1983009808
      %v4597 = vunpack.c.0.s8 %v4596
      %v4598 = vlaneseq
      %v4599 = vshrl.u32 %v4598, 7
      %v4600 = vsub.s32 %v4597, %v4599
      %v4601 = vrot.slane %v4593, %v4600
      %v4603 = vunpack.c.l.s4 1983009808
      %v4604 = vunpack.c.0.s8 %v4603
      %v4605 = vlaneseq
      %v4606 = vshrl.u32 %v4605, 7
      %v4607 = vsub.s32 %v4604, %v4606
      %v4608 = vrot.slane %v4594, %v4607
      %v4609 = vcombine.low %v4585, %v4601
      %v4610 = vcombine.high %v4585, %v4601
      %v4612 = vunpack.c.l.s4 1934713408
      %v4613 = vunpack.c.0.s8 %v4612
      %v4614 = vlaneseq
      %v4615 = vshrl.u32 %v4614, 7
      %v4616 = vsub.s32 %v4613, %v4615
      %v4617 = vrot.slane %v4609, %v4616
      %v4619 = vunpack.c.l.s4 1934713408
      %v4620 = vunpack.c.0.s8 %v4619
      %v4621 = vlaneseq
      %v4622 = vshrl.u32 %v4621, 7
      %v4623 = vsub.s32 %v4620, %v4622
      %v4624 = vrot.slane %v4610, %v4623
      %v4625 = vcombine.low %v4592, %v4608
      %v4626 = vcombine.high %v4592, %v4608
      %v4628 = vunpack.c.l.s4 1934713408
      %v4629 = vunpack.c.0.s8 %v4628
      %v4630 = vlaneseq
      %v4631 = vshrl.u32 %v4630, 7
      %v4632 = vsub.s32 %v4629, %v4631
      %v4633 = vrot.slane %v4625, %v4632
      %v4635 = vunpack.c.l.s4 1934713408
      %v4636 = vunpack.c.0.s8 %v4635
      %v4637 = vlaneseq
      %v4638 = vshrl.u32 %v4637, 7
      %v4639 = vsub.s32 %v4636, %v4638
      %v4640 = vrot.slane %v4626, %v4639
      %v4641 = vcombine.high %v4617, 0.0
      %v4642 = vcombine.high %v4624, 0.0
      %v4643 = vcombine.high %v4633, 0.0
      %v4644 = vcombine.high %v4640, 0.0
      %4646 = vrot.lane.b32.xlu0 %v4573, 16
      %v4647 = vpop.permute.xlu0 %4646
      %4650 = vrot.lane.b32.xlu0 %v4556, 32
      %v4651 = vpop.permute.xlu0 %4650
      %4654 = vrot.lane.b32.xlu0 %v4574, 48
      %v4655 = vpop.permute.xlu0 %4654
      %4658 = vrot.lane.b32.xlu0 %v4565, 64
      %v4659 = vpop.permute.xlu0 %4658
      %4662 = vrot.lane.b32.xlu0 %v4575, 80
      %v4663 = vpop.permute.xlu0 %4662
      %4666 = vrot.lane.b32.xlu0 %v4572, 96
      %v4667 = vpop.permute.xlu0 %4666
      %4670 = vrot.lane.b32.xlu0 %v4576, 112
      %v4671 = vpop.permute.xlu0 %4670
      %4674 = vrot.lane.b32.xlu0 %v4641, 16
      %v4675 = vpop.permute.xlu0 %4674
      %4678 = vrot.lane.b32.xlu0 %v4624, 32
      %v4679 = vpop.permute.xlu0 %4678
      %4682 = vrot.lane.b32.xlu0 %v4642, 48
      %v4683 = vpop.permute.xlu0 %4682
      %4686 = vrot.lane.b32.xlu0 %v4633, 64
      %v4687 = vpop.permute.xlu0 %4686
      %4690 = vrot.lane.b32.xlu0 %v4643, 80
      %v4691 = vpop.permute.xlu0 %4690
      %4694 = vrot.lane.b32.xlu0 %v4640, 96
      %v4695 = vpop.permute.xlu0 %4694
      %4698 = vrot.lane.b32.xlu0 %v4644, 112
      %v4699 = vpop.permute.xlu0 %4698
      %v4701 = vsel %vm824, %v4549, %v4647
      %v4702 = vsel %vm826, %v4701, %v4651
      %v4703 = vsel %vm828, %v4702, %v4655
      %v4704 = vsel %vm830, %v4703, %v4659
      %v4705 = vsel %vm832, %v4704, %v4663
      %v4706 = vsel %vm834, %v4705, %v4667
      %v4707 = vsel %vm836, %v4706, %v4671
      %v4708 = vsel %vm824, %v4617, %v4675
      %v4709 = vsel %vm826, %v4708, %v4679
      %v4710 = vsel %vm828, %v4709, %v4683
      %v4711 = vsel %vm830, %v4710, %v4687
      %v4712 = vsel %vm832, %v4711, %v4691
      %v4713 = vsel %vm834, %v4712, %v4695
      %v4714 = vsel %vm836, %v4713, %v4699
      %v4717 = vrot.slane %v4707, 4
      %v4718 = vrot.slane %v4714, 4
      %4721 = vst [vmem:[#allocation3 + $0x20] sm:$0xf0] %v4717
      %4722 = vst [vmem:[#allocation3 + $0x28] sm:$0xf0] %v4718
      %v4723 = vld [vmem:[#allocation2 + $0x2] sm:$0xff]
      %v4724 = vld [vmem:[#allocation2 + $0xa] sm:$0xff]
      %v4725 = vld [vmem:[#allocation2 + $0x1a] sm:$0xff]
      %v4726 = vld [vmem:[#allocation2 + $0x22] sm:$0xff]
      %v4727 = vld [vmem:[#allocation2 + $0x32] sm:$0xff]
      %v4728 = vld [vmem:[#allocation2 + $0x3a] sm:$0xff]
      %v4729 = vld [vmem:[#allocation2 + $0x4a] sm:$0xff]
      %v4730 = vld [vmem:[#allocation2 + $0x52] sm:$0xff]
      %v4731 = vcombine.low %v4723, %v4727
      %v4732 = vcombine.high %v4723, %v4727
      %v4734 = vunpack.c.l.s4 1983009808
      %v4735 = vunpack.c.0.s8 %v4734
      %v4736 = vlaneseq
      %v4737 = vshrl.u32 %v4736, 7
      %v4738 = vsub.s32 %v4735, %v4737
      %v4739 = vrot.slane %v4731, %v4738
      %v4741 = vunpack.c.l.s4 1983009808
      %v4742 = vunpack.c.0.s8 %v4741
      %v4743 = vlaneseq
      %v4744 = vshrl.u32 %v4743, 7
      %v4745 = vsub.s32 %v4742, %v4744
      %v4746 = vrot.slane %v4732, %v4745
      %v4747 = vcombine.low %v4725, %v4729
      %v4748 = vcombine.high %v4725, %v4729
      %v4750 = vunpack.c.l.s4 1983009808
      %v4751 = vunpack.c.0.s8 %v4750
      %v4752 = vlaneseq
      %v4753 = vshrl.u32 %v4752, 7
      %v4754 = vsub.s32 %v4751, %v4753
      %v4755 = vrot.slane %v4747, %v4754
      %v4757 = vunpack.c.l.s4 1983009808
      %v4758 = vunpack.c.0.s8 %v4757
      %v4759 = vlaneseq
      %v4760 = vshrl.u32 %v4759, 7
      %v4761 = vsub.s32 %v4758, %v4760
      %v4762 = vrot.slane %v4748, %v4761
      %v4763 = vcombine.low %v4739, %v4755
      %v4764 = vcombine.high %v4739, %v4755
      %v4766 = vunpack.c.l.s4 1934713408
      %v4767 = vunpack.c.0.s8 %v4766
      %v4768 = vlaneseq
      %v4769 = vshrl.u32 %v4768, 7
      %v4770 = vsub.s32 %v4767, %v4769
      %v4771 = vrot.slane %v4763, %v4770
      %v4773 = vunpack.c.l.s4 1934713408
      %v4774 = vunpack.c.0.s8 %v4773
      %v4775 = vlaneseq
      %v4776 = vshrl.u32 %v4775, 7
      %v4777 = vsub.s32 %v4774, %v4776
      %v4778 = vrot.slane %v4764, %v4777
      %v4779 = vcombine.low %v4746, %v4762
      %v4780 = vcombine.high %v4746, %v4762
      %v4782 = vunpack.c.l.s4 1934713408
      %v4783 = vunpack.c.0.s8 %v4782
      %v4784 = vlaneseq
      %v4785 = vshrl.u32 %v4784, 7
      %v4786 = vsub.s32 %v4783, %v4785
      %v4787 = vrot.slane %v4779, %v4786
      %v4789 = vunpack.c.l.s4 1934713408
      %v4790 = vunpack.c.0.s8 %v4789
      %v4791 = vlaneseq
      %v4792 = vshrl.u32 %v4791, 7
      %v4793 = vsub.s32 %v4790, %v4792
      %v4794 = vrot.slane %v4780, %v4793
      %v4795 = vcombine.high %v4771, 0.0
      %v4796 = vcombine.high %v4778, 0.0
      %v4797 = vcombine.high %v4787, 0.0
      %v4798 = vcombine.high %v4794, 0.0
      %v4799 = vcombine.low %v4724, %v4728
      %v4800 = vcombine.high %v4724, %v4728
      %v4802 = vunpack.c.l.s4 1983009808
      %v4803 = vunpack.c.0.s8 %v4802
      %v4804 = vlaneseq
      %v4805 = vshrl.u32 %v4804, 7
      %v4806 = vsub.s32 %v4803, %v4805
      %v4807 = vrot.slane %v4799, %v4806
      %v4809 = vunpack.c.l.s4 1983009808
      %v4810 = vunpack.c.0.s8 %v4809
      %v4811 = vlaneseq
      %v4812 = vshrl.u32 %v4811, 7
      %v4813 = vsub.s32 %v4810, %v4812
      %v4814 = vrot.slane %v4800, %v4813
      %v4815 = vcombine.low %v4726, %v4730
      %v4816 = vcombine.high %v4726, %v4730
      %v4818 = vunpack.c.l.s4 1983009808
      %v4819 = vunpack.c.0.s8 %v4818
      %v4820 = vlaneseq
      %v4821 = vshrl.u32 %v4820, 7
      %v4822 = vsub.s32 %v4819, %v4821
      %v4823 = vrot.slane %v4815, %v4822
      %v4825 = vunpack.c.l.s4 1983009808
      %v4826 = vunpack.c.0.s8 %v4825
      %v4827 = vlaneseq
      %v4828 = vshrl.u32 %v4827, 7
      %v4829 = vsub.s32 %v4826, %v4828
      %v4830 = vrot.slane %v4816, %v4829
      %v4831 = vcombine.low %v4807, %v4823
      %v4832 = vcombine.high %v4807, %v4823
      %v4834 = vunpack.c.l.s4 1934713408
      %v4835 = vunpack.c.0.s8 %v4834
      %v4836 = vlaneseq
      %v4837 = vshrl.u32 %v4836, 7
      %v4838 = vsub.s32 %v4835, %v4837
      %v4839 = vrot.slane %v4831, %v4838
      %v4841 = vunpack.c.l.s4 1934713408
      %v4842 = vunpack.c.0.s8 %v4841
      %v4843 = vlaneseq
      %v4844 = vshrl.u32 %v4843, 7
      %v4845 = vsub.s32 %v4842, %v4844
      %v4846 = vrot.slane %v4832, %v4845
      %v4847 = vcombine.low %v4814, %v4830
      %v4848 = vcombine.high %v4814, %v4830
      %v4850 = vunpack.c.l.s4 1934713408
      %v4851 = vunpack.c.0.s8 %v4850
      %v4852 = vlaneseq
      %v4853 = vshrl.u32 %v4852, 7
      %v4854 = vsub.s32 %v4851, %v4853
      %v4855 = vrot.slane %v4847, %v4854
      %v4857 = vunpack.c.l.s4 1934713408
      %v4858 = vunpack.c.0.s8 %v4857
      %v4859 = vlaneseq
      %v4860 = vshrl.u32 %v4859, 7
      %v4861 = vsub.s32 %v4858, %v4860
      %v4862 = vrot.slane %v4848, %v4861
      %v4863 = vcombine.high %v4839, 0.0
      %v4864 = vcombine.high %v4846, 0.0
      %v4865 = vcombine.high %v4855, 0.0
      %v4866 = vcombine.high %v4862, 0.0
      %4868 = vrot.lane.b32.xlu0 %v4795, 16
      %v4869 = vpop.permute.xlu0 %4868
      %4872 = vrot.lane.b32.xlu0 %v4778, 32
      %v4873 = vpop.permute.xlu0 %4872
      %4876 = vrot.lane.b32.xlu0 %v4796, 48
      %v4877 = vpop.permute.xlu0 %4876
      %4880 = vrot.lane.b32.xlu0 %v4787, 64
      %v4881 = vpop.permute.xlu0 %4880
      %4884 = vrot.lane.b32.xlu0 %v4797, 80
      %v4885 = vpop.permute.xlu0 %4884
      %4888 = vrot.lane.b32.xlu0 %v4794, 96
      %v4889 = vpop.permute.xlu0 %4888
      %4892 = vrot.lane.b32.xlu0 %v4798, 112
      %v4893 = vpop.permute.xlu0 %4892
      %4896 = vrot.lane.b32.xlu0 %v4863, 16
      %v4897 = vpop.permute.xlu0 %4896
      %4900 = vrot.lane.b32.xlu0 %v4846, 32
      %v4901 = vpop.permute.xlu0 %4900
      %4904 = vrot.lane.b32.xlu0 %v4864, 48
      %v4905 = vpop.permute.xlu0 %4904
      %4908 = vrot.lane.b32.xlu0 %v4855, 64
      %v4909 = vpop.permute.xlu0 %4908
      %4912 = vrot.lane.b32.xlu0 %v4865, 80
      %v4913 = vpop.permute.xlu0 %4912
      %4916 = vrot.lane.b32.xlu0 %v4862, 96
      %v4917 = vpop.permute.xlu0 %4916
      %4920 = vrot.lane.b32.xlu0 %v4866, 112
      %v4921 = vpop.permute.xlu0 %4920
      %v4923 = vsel %vm824, %v4771, %v4869
      %v4924 = vsel %vm826, %v4923, %v4873
      %v4925 = vsel %vm828, %v4924, %v4877
      %v4926 = vsel %vm830, %v4925, %v4881
      %v4927 = vsel %vm832, %v4926, %v4885
      %v4928 = vsel %vm834, %v4927, %v4889
      %v4929 = vsel %vm836, %v4928, %v4893
      %v4930 = vsel %vm824, %v4839, %v4897
      %v4931 = vsel %vm826, %v4930, %v4901
      %v4932 = vsel %vm828, %v4931, %v4905
      %v4933 = vsel %vm830, %v4932, %v4909
      %v4934 = vsel %vm832, %v4933, %v4913
      %v4935 = vsel %vm834, %v4934, %v4917
      %v4936 = vsel %vm836, %v4935, %v4921
      %4937 = vst [vmem:[#allocation3 + $0x30] sm:$0xf] %v4929
      %4938 = vst [vmem:[#allocation3 + $0x38] sm:$0xf] %v4936
      %v4939 = vld [vmem:[#allocation2 + $0x2] sm:$0xff]
      %v4940 = vld [vmem:[#allocation2 + $0xa] sm:$0xff]
      %v4941 = vld [vmem:[#allocation2 + $0x1a] sm:$0xff]
      %v4942 = vld [vmem:[#allocation2 + $0x22] sm:$0xff]
      %v4943 = vld [vmem:[#allocation2 + $0x32] sm:$0xff]
      %v4944 = vld [vmem:[#allocation2 + $0x3a] sm:$0xff]
      %v4945 = vld [vmem:[#allocation2 + $0x4a] sm:$0xff]
      %v4946 = vld [vmem:[#allocation2 + $0x52] sm:$0xff]
      %4955 = vrot.lane.b32.xlu0 %v4939, 127
      %v4956 = vpop.permute.xlu0 %4955
      %4957 = vrot.lane.b32.xlu0 %v4940, 127
      %v4958 = vpop.permute.xlu0 %4957
      %4959 = vrot.lane.b32.xlu0 %v4941, 127
      %v4960 = vpop.permute.xlu0 %4959
      %4961 = vrot.lane.b32.xlu0 %v4942, 127
      %v4962 = vpop.permute.xlu0 %4961
      %4963 = vrot.lane.b32.xlu0 %v4943, 127
      %v4964 = vpop.permute.xlu0 %4963
      %4965 = vrot.lane.b32.xlu0 %v4944, 127
      %v4966 = vpop.permute.xlu0 %4965
      %4967 = vrot.lane.b32.xlu0 %v4945, 127
      %v4968 = vpop.permute.xlu0 %4967
      %4969 = vrot.lane.b32.xlu0 %v4946, 127
      %v4970 = vpop.permute.xlu0 %4969
      %v4979 = vcombine.low %v4956, %v4964
      %v4980 = vcombine.high %v4956, %v4964
      %v4982 = vunpack.c.l.s4 1983009808
      %v4983 = vunpack.c.0.s8 %v4982
      %v4984 = vlaneseq
      %v4985 = vshrl.u32 %v4984, 7
      %v4986 = vsub.s32 %v4983, %v4985
      %v4987 = vrot.slane %v4979, %v4986
      %v4989 = vunpack.c.l.s4 1983009808
      %v4990 = vunpack.c.0.s8 %v4989
      %v4991 = vlaneseq
      %v4992 = vshrl.u32 %v4991, 7
      %v4993 = vsub.s32 %v4990, %v4992
      %v4994 = vrot.slane %v4980, %v4993
      %v4995 = vcombine.low %v4960, %v4968
      %v4996 = vcombine.high %v4960, %v4968
      %v4998 = vunpack.c.l.s4 1983009808
      %v4999 = vunpack.c.0.s8 %v4998
      %v5000 = vlaneseq
      %v5001 = vshrl.u32 %v5000, 7
      %v5002 = vsub.s32 %v4999, %v5001
      %v5003 = vrot.slane %v4995, %v5002
      %v5005 = vunpack.c.l.s4 1983009808
      %v5006 = vunpack.c.0.s8 %v5005
      %v5007 = vlaneseq
      %v5008 = vshrl.u32 %v5007, 7
      %v5009 = vsub.s32 %v5006, %v5008
      %v5010 = vrot.slane %v4996, %v5009
      %v5011 = vcombine.low %v4987, %v5003
      %v5012 = vcombine.high %v4987, %v5003
      %v5014 = vunpack.c.l.s4 1934713408
      %v5015 = vunpack.c.0.s8 %v5014
      %v5016 = vlaneseq
      %v5017 = vshrl.u32 %v5016, 7
      %v5018 = vsub.s32 %v5015, %v5017
      %v5019 = vrot.slane %v5011, %v5018
      %v5021 = vunpack.c.l.s4 1934713408
      %v5022 = vunpack.c.0.s8 %v5021
      %v5023 = vlaneseq
      %v5024 = vshrl.u32 %v5023, 7
      %v5025 = vsub.s32 %v5022, %v5024
      %v5026 = vrot.slane %v5012, %v5025
      %v5027 = vcombine.low %v4994, %v5010
      %v5028 = vcombine.high %v4994, %v5010
      %v5030 = vunpack.c.l.s4 1934713408
      %v5031 = vunpack.c.0.s8 %v5030
      %v5032 = vlaneseq
      %v5033 = vshrl.u32 %v5032, 7
      %v5034 = vsub.s32 %v5031, %v5033
      %v5035 = vrot.slane %v5027, %v5034
      %v5037 = vunpack.c.l.s4 1934713408
      %v5038 = vunpack.c.0.s8 %v5037
      %v5039 = vlaneseq
      %v5040 = vshrl.u32 %v5039, 7
      %v5041 = vsub.s32 %v5038, %v5040
      %v5042 = vrot.slane %v5028, %v5041
      %v5043 = vcombine.high %v5019, 0.0
      %v5044 = vcombine.high %v5026, 0.0
      %v5045 = vcombine.high %v5035, 0.0
      %v5046 = vcombine.high %v5042, 0.0
      %v5047 = vcombine.low %v4958, %v4966
      %v5048 = vcombine.high %v4958, %v4966
      %v5050 = vunpack.c.l.s4 1983009808
      %v5051 = vunpack.c.0.s8 %v5050
      %v5052 = vlaneseq
      %v5053 = vshrl.u32 %v5052, 7
      %v5054 = vsub.s32 %v5051, %v5053
      %v5055 = vrot.slane %v5047, %v5054
      %v5057 = vunpack.c.l.s4 1983009808
      %v5058 = vunpack.c.0.s8 %v5057
      %v5059 = vlaneseq
      %v5060 = vshrl.u32 %v5059, 7
      %v5061 = vsub.s32 %v5058, %v5060
      %v5062 = vrot.slane %v5048, %v5061
      %v5063 = vcombine.low %v4962, %v4970
      %v5064 = vcombine.high %v4962, %v4970
      %v5066 = vunpack.c.l.s4 1983009808
      %v5067 = vunpack.c.0.s8 %v5066
      %v5068 = vlaneseq
      %v5069 = vshrl.u32 %v5068, 7
      %v5070 = vsub.s32 %v5067, %v5069
      %v5071 = vrot.slane %v5063, %v5070
      %v5073 = vunpack.c.l.s4 1983009808
      %v5074 = vunpack.c.0.s8 %v5073
      %v5075 = vlaneseq
      %v5076 = vshrl.u32 %v5075, 7
      %v5077 = vsub.s32 %v5074, %v5076
      %v5078 = vrot.slane %v5064, %v5077
      %v5079 = vcombine.low %v5055, %v5071
      %v5080 = vcombine.high %v5055, %v5071
      %v5082 = vunpack.c.l.s4 1934713408
      %v5083 = vunpack.c.0.s8 %v5082
      %v5084 = vlaneseq
      %v5085 = vshrl.u32 %v5084, 7
      %v5086 = vsub.s32 %v5083, %v5085
      %v5087 = vrot.slane %v5079, %v5086
      %v5089 = vunpack.c.l.s4 1934713408
      %v5090 = vunpack.c.0.s8 %v5089
      %v5091 = vlaneseq
      %v5092 = vshrl.u32 %v5091, 7
      %v5093 = vsub.s32 %v5090, %v5092
      %v5094 = vrot.slane %v5080, %v5093
      %v5095 = vcombine.low %v5062, %v5078
      %v5096 = vcombine.high %v5062, %v5078
      %v5098 = vunpack.c.l.s4 1934713408
      %v5099 = vunpack.c.0.s8 %v5098
      %v5100 = vlaneseq
      %v5101 = vshrl.u32 %v5100, 7
      %v5102 = vsub.s32 %v5099, %v5101
      %v5103 = vrot.slane %v5095, %v5102
      %v5105 = vunpack.c.l.s4 1934713408
      %v5106 = vunpack.c.0.s8 %v5105
      %v5107 = vlaneseq
      %v5108 = vshrl.u32 %v5107, 7
      %v5109 = vsub.s32 %v5106, %v5108
      %v5110 = vrot.slane %v5096, %v5109
      %v5111 = vcombine.high %v5087, 0.0
      %v5112 = vcombine.high %v5094, 0.0
      %v5113 = vcombine.high %v5103, 0.0
      %v5114 = vcombine.high %v5110, 0.0
      %5116 = vrot.lane.b32.xlu0 %v5043, 16
      %v5117 = vpop.permute.xlu0 %5116
      %5120 = vrot.lane.b32.xlu0 %v5026, 32
      %v5121 = vpop.permute.xlu0 %5120
      %5124 = vrot.lane.b32.xlu0 %v5044, 48
      %v5125 = vpop.permute.xlu0 %5124
      %5128 = vrot.lane.b32.xlu0 %v5035, 64
      %v5129 = vpop.permute.xlu0 %5128
      %5132 = vrot.lane.b32.xlu0 %v5045, 80
      %v5133 = vpop.permute.xlu0 %5132
      %5136 = vrot.lane.b32.xlu0 %v5042, 96
      %v5137 = vpop.permute.xlu0 %5136
      %5140 = vrot.lane.b32.xlu0 %v5046, 112
      %v5141 = vpop.permute.xlu0 %5140
      %5144 = vrot.lane.b32.xlu0 %v5111, 16
      %v5145 = vpop.permute.xlu0 %5144
      %5148 = vrot.lane.b32.xlu0 %v5094, 32
      %v5149 = vpop.permute.xlu0 %5148
      %5152 = vrot.lane.b32.xlu0 %v5112, 48
      %v5153 = vpop.permute.xlu0 %5152
      %5156 = vrot.lane.b32.xlu0 %v5103, 64
      %v5157 = vpop.permute.xlu0 %5156
      %5160 = vrot.lane.b32.xlu0 %v5113, 80
      %v5161 = vpop.permute.xlu0 %5160
      %5164 = vrot.lane.b32.xlu0 %v5110, 96
      %v5165 = vpop.permute.xlu0 %5164
      %5168 = vrot.lane.b32.xlu0 %v5114, 112
      %v5169 = vpop.permute.xlu0 %5168
      %v5171 = vsel %vm824, %v5019, %v5117
      %v5172 = vsel %vm826, %v5171, %v5121
      %v5173 = vsel %vm828, %v5172, %v5125
      %v5174 = vsel %vm830, %v5173, %v5129
      %v5175 = vsel %vm832, %v5174, %v5133
      %v5176 = vsel %vm834, %v5175, %v5137
      %v5177 = vsel %vm836, %v5176, %v5141
      %v5178 = vsel %vm824, %v5087, %v5145
      %v5179 = vsel %vm826, %v5178, %v5149
      %v5180 = vsel %vm828, %v5179, %v5153
      %v5181 = vsel %vm830, %v5180, %v5157
      %v5182 = vsel %vm832, %v5181, %v5161
      %v5183 = vsel %vm834, %v5182, %v5165
      %v5184 = vsel %vm836, %v5183, %v5169
      %v5187 = vrot.slane %v5177, 4
      %v5188 = vrot.slane %v5184, 4
      %5191 = vst [vmem:[#allocation3 + $0x30] sm:$0xf0] %v5187
      %5192 = vst [vmem:[#allocation3 + $0x38] sm:$0xf0] %v5188
      %v5193 = vld [vmem:[#allocation2 + $0x2] sm:$0xff]
      %v5194 = vld [vmem:[#allocation2 + $0xa] sm:$0xff]
      %v5195 = vld [vmem:[#allocation2 + $0x1a] sm:$0xff]
      %v5196 = vld [vmem:[#allocation2 + $0x22] sm:$0xff]
      %v5197 = vld [vmem:[#allocation2 + $0x32] sm:$0xff]
      %v5198 = vld [vmem:[#allocation2 + $0x3a] sm:$0xff]
      %v5199 = vld [vmem:[#allocation2 + $0x4a] sm:$0xff]
      %v5200 = vld [vmem:[#allocation2 + $0x52] sm:$0xff]
      %5209 = vrot.lane.b32.xlu0 %v5193, 126
      %v5210 = vpop.permute.xlu0 %5209
      %5211 = vrot.lane.b32.xlu0 %v5194, 126
      %v5212 = vpop.permute.xlu0 %5211
      %5213 = vrot.lane.b32.xlu0 %v5195, 126
      %v5214 = vpop.permute.xlu0 %5213
      %5215 = vrot.lane.b32.xlu0 %v5196, 126
      %v5216 = vpop.permute.xlu0 %5215
      %5217 = vrot.lane.b32.xlu0 %v5197, 126
      %v5218 = vpop.permute.xlu0 %5217
      %5219 = vrot.lane.b32.xlu0 %v5198, 126
      %v5220 = vpop.permute.xlu0 %5219
      %5221 = vrot.lane.b32.xlu0 %v5199, 126
      %v5222 = vpop.permute.xlu0 %5221
      %5223 = vrot.lane.b32.xlu0 %v5200, 126
      %v5224 = vpop.permute.xlu0 %5223
      %v5233 = vcombine.low %v5210, %v5218
      %v5234 = vcombine.high %v5210, %v5218
      %v5236 = vunpack.c.l.s4 1983009808
      %v5237 = vunpack.c.0.s8 %v5236
      %v5238 = vlaneseq
      %v5239 = vshrl.u32 %v5238, 7
      %v5240 = vsub.s32 %v5237, %v5239
      %v5241 = vrot.slane %v5233, %v5240
      %v5243 = vunpack.c.l.s4 1983009808
      %v5244 = vunpack.c.0.s8 %v5243
      %v5245 = vlaneseq
      %v5246 = vshrl.u32 %v5245, 7
      %v5247 = vsub.s32 %v5244, %v5246
      %v5248 = vrot.slane %v5234, %v5247
      %v5249 = vcombine.low %v5214, %v5222
      %v5250 = vcombine.high %v5214, %v5222
      %v5252 = vunpack.c.l.s4 1983009808
      %v5253 = vunpack.c.0.s8 %v5252
      %v5254 = vlaneseq
      %v5255 = vshrl.u32 %v5254, 7
      %v5256 = vsub.s32 %v5253, %v5255
      %v5257 = vrot.slane %v5249, %v5256
      %v5259 = vunpack.c.l.s4 1983009808
      %v5260 = vunpack.c.0.s8 %v5259
      %v5261 = vlaneseq
      %v5262 = vshrl.u32 %v5261, 7
      %v5263 = vsub.s32 %v5260, %v5262
      %v5264 = vrot.slane %v5250, %v5263
      %v5265 = vcombine.low %v5241, %v5257
      %v5266 = vcombine.high %v5241, %v5257
      %v5268 = vunpack.c.l.s4 1934713408
      %v5269 = vunpack.c.0.s8 %v5268
      %v5270 = vlaneseq
      %v5271 = vshrl.u32 %v5270, 7
      %v5272 = vsub.s32 %v5269, %v5271
      %v5273 = vrot.slane %v5265, %v5272
      %v5275 = vunpack.c.l.s4 1934713408
      %v5276 = vunpack.c.0.s8 %v5275
      %v5277 = vlaneseq
      %v5278 = vshrl.u32 %v5277, 7
      %v5279 = vsub.s32 %v5276, %v5278
      %v5280 = vrot.slane %v5266, %v5279
      %v5281 = vcombine.low %v5248, %v5264
      %v5282 = vcombine.high %v5248, %v5264
      %v5284 = vunpack.c.l.s4 1934713408
      %v5285 = vunpack.c.0.s8 %v5284
      %v5286 = vlaneseq
      %v5287 = vshrl.u32 %v5286, 7
      %v5288 = vsub.s32 %v5285, %v5287
      %v5289 = vrot.slane %v5281, %v5288
      %v5291 = vunpack.c.l.s4 1934713408
      %v5292 = vunpack.c.0.s8 %v5291
      %v5293 = vlaneseq
      %v5294 = vshrl.u32 %v5293, 7
      %v5295 = vsub.s32 %v5292, %v5294
      %v5296 = vrot.slane %v5282, %v5295
      %v5297 = vcombine.high %v5273, 0.0
      %v5298 = vcombine.high %v5280, 0.0
      %v5299 = vcombine.high %v5289, 0.0
      %v5300 = vcombine.high %v5296, 0.0
      %v5301 = vcombine.low %v5212, %v5220
      %v5302 = vcombine.high %v5212, %v5220
      %v5304 = vunpack.c.l.s4 1983009808
      %v5305 = vunpack.c.0.s8 %v5304
      %v5306 = vlaneseq
      %v5307 = vshrl.u32 %v5306, 7
      %v5308 = vsub.s32 %v5305, %v5307
      %v5309 = vrot.slane %v5301, %v5308
      %v5311 = vunpack.c.l.s4 1983009808
      %v5312 = vunpack.c.0.s8 %v5311
      %v5313 = vlaneseq
      %v5314 = vshrl.u32 %v5313, 7
      %v5315 = vsub.s32 %v5312, %v5314
      %v5316 = vrot.slane %v5302, %v5315
      %v5317 = vcombine.low %v5216, %v5224
      %v5318 = vcombine.high %v5216, %v5224
      %v5320 = vunpack.c.l.s4 1983009808
      %v5321 = vunpack.c.0.s8 %v5320
      %v5322 = vlaneseq
      %v5323 = vshrl.u32 %v5322, 7
      %v5324 = vsub.s32 %v5321, %v5323
      %v5325 = vrot.slane %v5317, %v5324
      %v5327 = vunpack.c.l.s4 1983009808
      %v5328 = vunpack.c.0.s8 %v5327
      %v5329 = vlaneseq
      %v5330 = vshrl.u32 %v5329, 7
      %v5331 = vsub.s32 %v5328, %v5330
      %v5332 = vrot.slane %v5318, %v5331
      %v5333 = vcombine.low %v5309, %v5325
      %v5334 = vcombine.high %v5309, %v5325
      %v5336 = vunpack.c.l.s4 1934713408
      %v5337 = vunpack.c.0.s8 %v5336
      %v5338 = vlaneseq
      %v5339 = vshrl.u32 %v5338, 7
      %v5340 = vsub.s32 %v5337, %v5339
      %v5341 = vrot.slane %v5333, %v5340
      %v5343 = vunpack.c.l.s4 1934713408
      %v5344 = vunpack.c.0.s8 %v5343
      %v5345 = vlaneseq
      %v5346 = vshrl.u32 %v5345, 7
      %v5347 = vsub.s32 %v5344, %v5346
      %v5348 = vrot.slane %v5334, %v5347
      %v5349 = vcombine.low %v5316, %v5332
      %v5350 = vcombine.high %v5316, %v5332
      %v5352 = vunpack.c.l.s4 1934713408
      %v5353 = vunpack.c.0.s8 %v5352
      %v5354 = vlaneseq
      %v5355 = vshrl.u32 %v5354, 7
      %v5356 = vsub.s32 %v5353, %v5355
      %v5357 = vrot.slane %v5349, %v5356
      %v5359 = vunpack.c.l.s4 1934713408
      %v5360 = vunpack.c.0.s8 %v5359
      %v5361 = vlaneseq
      %v5362 = vshrl.u32 %v5361, 7
      %v5363 = vsub.s32 %v5360, %v5362
      %v5364 = vrot.slane %v5350, %v5363
      %v5365 = vcombine.high %v5341, 0.0
      %v5366 = vcombine.high %v5348, 0.0
      %v5367 = vcombine.high %v5357, 0.0
      %v5368 = vcombine.high %v5364, 0.0
      %5370 = vrot.lane.b32.xlu0 %v5297, 16
      %v5371 = vpop.permute.xlu0 %5370
      %5374 = vrot.lane.b32.xlu0 %v5280, 32
      %v5375 = vpop.permute.xlu0 %5374
      %5378 = vrot.lane.b32.xlu0 %v5298, 48
      %v5379 = vpop.permute.xlu0 %5378
      %5382 = vrot.lane.b32.xlu0 %v5289, 64
      %v5383 = vpop.permute.xlu0 %5382
      %5386 = vrot.lane.b32.xlu0 %v5299, 80
      %v5387 = vpop.permute.xlu0 %5386
      %5390 = vrot.lane.b32.xlu0 %v5296, 96
      %v5391 = vpop.permute.xlu0 %5390
      %5394 = vrot.lane.b32.xlu0 %v5300, 112
      %v5395 = vpop.permute.xlu0 %5394
      %5398 = vrot.lane.b32.xlu0 %v5365, 16
      %v5399 = vpop.permute.xlu0 %5398
      %5402 = vrot.lane.b32.xlu0 %v5348, 32
      %v5403 = vpop.permute.xlu0 %5402
      %5406 = vrot.lane.b32.xlu0 %v5366, 48
      %v5407 = vpop.permute.xlu0 %5406
      %5410 = vrot.lane.b32.xlu0 %v5357, 64
      %v5411 = vpop.permute.xlu0 %5410
      %5414 = vrot.lane.b32.xlu0 %v5367, 80
      %v5415 = vpop.permute.xlu0 %5414
      %5418 = vrot.lane.b32.xlu0 %v5364, 96
      %v5419 = vpop.permute.xlu0 %5418
      %5422 = vrot.lane.b32.xlu0 %v5368, 112
      %v5423 = vpop.permute.xlu0 %5422
      %v5425 = vsel %vm824, %v5273, %v5371
      %v5426 = vsel %vm826, %v5425, %v5375
      %v5427 = vsel %vm828, %v5426, %v5379
      %v5428 = vsel %vm830, %v5427, %v5383
      %v5429 = vsel %vm832, %v5428, %v5387
      %v5430 = vsel %vm834, %v5429, %v5391
      %v5431 = vsel %vm836, %v5430, %v5395
      %v5432 = vsel %vm824, %v5341, %v5399
      %v5433 = vsel %vm826, %v5432, %v5403
      %v5434 = vsel %vm828, %v5433, %v5407
      %v5435 = vsel %vm830, %v5434, %v5411
      %v5436 = vsel %vm832, %v5435, %v5415
      %v5437 = vsel %vm834, %v5436, %v5419
      %v5438 = vsel %vm836, %v5437, %v5423
      %5439 = vst [vmem:[#allocation3 + $0x40] sm:$0xf] %v5431
      %5440 = vst [vmem:[#allocation3 + $0x48] sm:$0xf] %v5438
      %v5441 = vld [vmem:[%s2] sm:$0xf]
      %v5442 = vld [vmem:[#allocation3] sm:$0xff]
      %v5443 = vld [vmem:[#allocation3 + $0x8] sm:$0xff]
      %v5444 = vld [vmem:[#allocation3 + $0x10] sm:$0xff]
      %v5445 = vld [vmem:[#allocation3 + $0x18] sm:$0xff]
      %v5446 = vld [vmem:[#allocation3 + $0x20] sm:$0xff]
      %v5447 = vld [vmem:[#allocation3 + $0x28] sm:$0xff]
      %v5448 = vld [vmem:[#allocation3 + $0x30] sm:$0xff]
      %v5449 = vld [vmem:[#allocation3 + $0x38] sm:$0xff]
      %v5450 = vld [vmem:[#allocation3 + $0x40] sm:$0x1f]
      %v5451 = vld [vmem:[#allocation3 + $0x48] sm:$0x1f]
      %v5453 = vsel %vm2802, %v5441, 0
      %v5456 = vsel %vm2806, %v5450, 0
      %v5459 = vsel %vm2806, %v5451, 0
      %5461 = vmatprep.subr.mxu0 0.0
      %5462 = vmatpush1.msra.mxu0 0.0
      %5463 = vmatprep.subr.mxu0 0.0
      %5464 = vmatpush1.msra.mxu0 0.0
      %5465 = vmatprep.subr.mxu0 0.0
      %5466 = vmatpush1.msra.mxu0 0.0
      %5467 = vmatprep.subr.mxu0 0.0
      %5468 = vmatpush1.msra.mxu0 0.0
      %5469 = vmatprep.subr.mxu0 0.0
      %5470 = vmatpush1.msra.mxu0 0.0
      %5471 = vmatprep.subr.mxu0 0.0
      %5472 = vmatpush1.msra.mxu0 0.0
      %5473 = vmatprep.subr.mxu0 0.0
      %5474 = vmatpush1.msra.mxu0 0.0
      %5475 = vmatprep.subr.mxu0 0.0
      %5476 = vmatpush1.msra.mxu0 0.0
      %5477 = vmatprep.subr.mxu0 0.0
      %5478 = vmatpush1.msra.mxu0 0.0
      %5479 = vmatprep.subr.mxu0 0.0
      %5480 = vmatpush1.msra.mxu0 0.0
      %5481 = vmatprep.subr.mxu0 0.0
      %5482 = vmatpush1.msra.mxu0 0.0
      %5483 = vmatprep.subr.mxu0 %v5459
      %5484 = vmatpush1.msra.mxu0 %v5456
      %5485 = vmatprep.subr.mxu0 %v5449
      %5486 = vmatpush1.msra.mxu0 %v5448
      %5487 = vmatprep.subr.mxu0 %v5447
      %5488 = vmatpush1.msra.mxu0 %v5446
      %5489 = vmatprep.subr.mxu0 %v5445
      %5490 = vmatpush1.msra.mxu0 %v5444
      %5491 = vmatprep.subr.mxu0 %v5443
      %5492 = vmatpush1.msra.mxu0 %v5442
      %5493 = vmatprep.subr.mxu0 0.0
      %5494 = vmatpush2.msra.mxu0 0.0
      %5495 = vmatprep.subr.mxu0 0.0
      %5496 = vmatpush2.msra.mxu0 0.0
      %5497 = vmatprep.subr.mxu0 0.0
      %5498 = vmatpush2.msra.mxu0 0.0
      %5499 = vmatprep.subr.mxu0 0.0
      %5500 = vmatpush2.msra.mxu0 0.0
      %5501 = vmatprep.subr.mxu0 0.0
      %5502 = vmatpush2.msra.mxu0 0.0
      %5503 = vmatprep.subr.mxu0 0.0
      %5504 = vmatpush2.msra.mxu0 0.0
      %5505 = vmatprep.subr.mxu0 0.0
      %5506 = vmatpush2.msra.mxu0 0.0
      %5507 = vmatprep.subr.mxu0 0.0
      %5508 = vmatpush2.msra.mxu0 0.0
      %5509 = vmatprep.subr.mxu0 0.0
      %5510 = vmatpush2.msra.mxu0 0.0
      %5511 = vmatprep.subr.mxu0 0.0
      %5512 = vmatpush2.msra.mxu0 0.0
      %5513 = vmatprep.subr.mxu0 0.0
      %5514 = vmatpush2.msra.mxu0 0.0
      %5515 = vmatprep.subr.mxu0 0.0
      %5516 = vmatpush2.msra.mxu0 0.0
      %5517 = vmatprep.subr.mxu0 0.0
      %5518 = vmatpush2.msra.mxu0 0.0
      %5519 = vmatprep.subr.mxu0 0.0
      %5520 = vmatpush2.msra.mxu0 0.0
      %5521 = vmatprep.subr.mxu0 0.0
      %5522 = vmatpush2.msra.mxu0 0.0
      %5523 = vmatprep.subr.mxu0 0.0
      %5524 = vmatpush2.msra.mxu0 0.0
      %5525 = vmatprep.mubr.f32.mxu0 0.0
      %5526 = vmatmul.mubr.f32.gmra.mxu0 %v5453
      %v5527 = vpop.f32.mrf.mxu0
      %v5528 = vadd.f32 0.0, %v5527
      %v5529 = vpop.f32.mrf.mxu0
      %v5530 = vadd.f32 0.0, %v5529
      %5531 = vdwg.mxu0
      %v5532 = vsel %vm2884, %v5528, 0.0
      %v5533 = vsel %vm2884, %v5530, 0.0
      %v5534 = vadd.f32 %v5532, %v5533
      %5535 = vadd.xlane.f32.xlu0 %v5534
      %v5536 = vpop.xlane.xlu0 %5535
      %v5537 = vmul.f32 %v5536, %v2890
      %v5538 = vsub.f32 %v5528, %v5537
      %v5539 = vsub.f32 %v5530, %v5537
      %v5540 = vmul.f32 %v5538, %v5538
      %v5541 = vmul.f32 %v5539, %v5539
      %v5542 = vsel %vm2884, %v5540, 0.0
      %v5543 = vsel %vm2884, %v5541, 0.0
      %v5544 = vadd.f32 %v5542, %v5543
      %5545 = vadd.xlane.f32.xlu0 %v5544
      %v5546 = vpop.xlane.xlu0 %5545
      %v5547 = vmul.f32 %v5546, %v2890
      %v5548 = vadd.f32 %v5547, 1e-05
      %v5549 = vrsqrt.pop %v5548
      %v5550 = vmul.f32 %v5538, %v5549
      %v5551 = vmul.f32 %v5539, %v5549
      %v5554 = vcombine.low %v5550, %v5551
      %v5556 = vadd.f32 %v178, %v5554
      %5557 = vst [vmem:[%s170] sm:$0xff] %v5556
      %p5558 = scmp.lt.s32.totalorder %s14, 1
      %s5559 = scalar_select %p5558, %s14, 1
      %s5560 = smul.addr %s5559, 2
      %s5561 = smul.addr %s5560, 4
      %s5562 = scalar_lea.vmem %s3, %s5561
      // Predicated region
      $region33: #{residual_block.1} parent=31 // pred_check
        %p5563 = pneg %p100
      $region34: #{residual_block.1} parent=31 // pred_check_branch
        %5565 = sbr.rel (%p5563) target = $region36
      $region35: #{residual_block.1} parent=31 // pred_region
        _
      $region36: #{residual_block.1} parent=31 // pred_fallthru
        _
    $region32: #{residual_block.1} parent=5 // pred_fallthru
      _
    %p5566 = scmp.le.s32.totalorder 2, %s9
    // Predicated region
    $region37: #{residual_block.1} parent=5 // pred_check
      %p5567 = pneg %p5566
    $region38: #{residual_block.1} parent=5 // pred_check_branch
      %5569 = sbr.rel (%p5567) target = $region40
    $region39: #{residual_block.1} parent=5 // pred_region
      %s5570 = ssub.s32 %s9, 2
      // Predicated region
      $region41: #{residual_block.1} parent=39 // pred_check
        %p5571 = pneg %p106
      $region42: #{residual_block.1} parent=39 // pred_check_branch
        %5573 = sbr.rel (%p5571) target = $region44
      $region43: #{residual_block.1} parent=39 // pred_region
        %p5574 = scmp.lt.s32.totalorder %s15, 1
        %s5575 = scalar_select %p5574, %s15, 1
        %s5576 = smul.addr %s5575, 2
        %s5577 = smul.addr %s5576, 4
        %s5578 = scalar_lea.vmem %s3, %s5577
      $region44: #{residual_block.1} parent=39 // pred_fallthru
        _
    $region40: #{residual_block.1} parent=5 // pred_fallthru
      _
  $region6: #{residual_block.1} parent=0 // loop_footer
    %s13 = sadd.s32 1, %s9
  $region7: #{residual_block.1} parent=0 // loop_footer_branch
    %8 = sbr.rel target = $region3
  $region8: #{residual_block.1} parent=0 // loop_exit
    _

</llo_original>
